<compile_context>
chip_gen: v7x
topology: tpu7x:2x2x1
jax: 0.10.0
libtpu: 0.0.40
codegen_flags: <defaults>
</compile_context>

<pallas_src>
import functools

import jax
import jax.numpy as jnp
from jax import lax
from jax.experimental import pallas as pl
from jax.experimental.pallas import tpu as pltpu

_EPS = 1e-5


def _fold_bn(gamma, beta, mean, var):
    scale = (gamma / jnp.sqrt(var + _EPS)).astype(jnp.float32)
    bias = (beta - mean * scale).astype(jnp.float32)
    return scale.reshape(1, -1), bias.reshape(1, -1)


def _pick_row_tile(Ho, stride, Wh, hidden, max_rows, budget_bytes=4 << 20):
    """Largest divisor of Ho (<= max_rows) whose hidden-channel slabs fit a VMEM budget."""
    best = 1
    for tr in range(1, min(Ho, max_rows) + 1):
        if Ho % tr:
            continue
        r_in = stride * (tr - 1) + 3
        need = (r_in + tr) * Wh * hidden * 4        # expanded slab + depthwise slab (f32)
        if need <= budget_bytes:
            best = tr
    return best


def _make_kernel(*, H, W, Wh, Cin, hidden, oup, TR, Wo, R_in, stride,
                 has_expand, use_res):
    """Kernel body for one (batch image, output-row tile) grid step."""

    def kernel(*args):
        if has_expand:
            (x_ref, we_ref, se_ref, be_ref, wd_ref, sd_ref, bd_ref,
             wp_ref, sp_ref, bp_ref, o_ref, *scratch) = args
            hbuf = scratch[0]
            scratch = scratch[1:]
        else:
            (x_ref, wd_ref, sd_ref, bd_ref, wp_ref, sp_ref, bp_ref,
             o_ref, *scratch) = args
            hbuf = None
        dwbuf = scratch[0] if stride == 2 else None

        t = pl.program_id(1)
        row_start = t * (TR * stride)       # first padded-input row of this tile's slab

        # ---------- 1x1 expand conv + folded BN + ReLU6 (bf16 MXU, f32 accum) ----------
        if has_expand:
            x_slab = x_ref[pl.ds(row_start, R_in)]                     # (R_in, Wh, Cin) f32
            h = jnp.dot(x_slab.reshape(R_in * Wh, Cin).astype(jnp.bfloat16),
                        we_ref[...],                                   # (Cin, hidden) bf16
                        preferred_element_type=jnp.float32)
            h = jnp.clip(h * se_ref[...] + be_ref[...], 0.0, 6.0)
            # The depthwise zero-padding halo must stay zero (the BN bias above made
            # it non-zero) -> apply a 0/1 interior mask, then one aligned full store.
            rows = lax.broadcasted_iota(jnp.int32, (R_in, Wh, 1), 0) + row_start
            cols = lax.broadcasted_iota(jnp.int32, (R_in, Wh, 1), 1)
            interior = ((rows >= 1) & (rows <= H) & (cols >= 1) & (cols <= W))
            hbuf[...] = h.reshape(R_in, Wh, hidden) * interior.astype(jnp.float32)

        wd = wd_ref[...]            # (3, 3, hidden)
        sd = sd_ref[0]              # (hidden,)
        bd = bd_ref[0]

        # ---------- 3x3 depthwise conv + folded BN + ReLU6 (VPU) ----------
        if stride == 1:
            # Per-tap windows sliced lazily from the ref (keeps vreg live ranges small).
            acc = jnp.zeros((TR, W, hidden), jnp.float32)
            for dy in range(3):
                for dx in range(3):
                    if has_expand:
                        win = hbuf[dy:dy + TR, dx:dx + W, :]
                    else:
                        win = x_ref[pl.ds(row_start + dy, TR), dx:dx + W, :]
                    acc = acc + win * wd[dy, dx]
            dw = jnp.clip(acc * sd + bd, 0.0, 6.0)                     # (TR, Wo, hidden)
        else:
            # Row at a time: even/odd column decimation done once per input line
            # and reused by the 3 column taps (instead of per-tap strided windows).
            @pl.loop(0, TR)
            def _(r):
                acc = jnp.zeros((Wo, hidden), jnp.float32)
                for dy in range(3):
                    if has_expand:
                        line = hbuf[2 * r + dy]                        # (Wh, hidden)
                    else:
                        line = x_ref[row_start + 2 * r + dy]
                    even = lax.slice(line, (0, 0), (2 * Wo + 1, hidden), (2, 1))  # (Wo+1, hid)
                    odd = lax.slice(line, (1, 0), (2 * Wo, hidden), (2, 1))       # (Wo,   hid)
                    acc = acc + even[0:Wo, :] * wd[dy, 0]
                    acc = acc + odd * wd[dy, 1]
                    acc = acc + even[1:Wo + 1, :] * wd[dy, 2]
                dwbuf[r] = jnp.clip(acc * sd + bd, 0.0, 6.0)
            dw = dwbuf[...]                                            # (TR, Wo, hidden)

        # ---------- 1x1 projection conv + folded BN (bf16 MXU, f32 accum) ----------
        y = jnp.dot(dw.reshape(TR * Wo, hidden).astype(jnp.bfloat16),
                    wp_ref[...],                                       # (hidden, oup) bf16
                    preferred_element_type=jnp.float32)
        y = (y * sp_ref[...] + bp_ref[...]).reshape(TR, Wo, oup)

        if use_res:                                                    # stride==1, Cin==oup
            y = y + x_ref[pl.ds(row_start + 1, TR), 1:W + 1, :]
        o_ref[...] = y.astype(o_ref.dtype)

    return kernel


def inverted_residual_nhwc(x_nhwc, params, *, stride, expand_ratio, max_rows_per_tile=64):
    """InvertedResidual forward, NHWC in / NHWC out (preferred for chaining blocks)."""
    N, H, W, Cin = x_nhwc.shape
    assert stride in (1, 2)
    hidden = int(round(Cin * expand_ratio))
    has_expand = expand_ratio != 1
    wp_pt = params["wp"]
    oup = wp_pt.shape[0]
    use_res = (stride == 1) and (Cin == oup)

    Ho = (H - 1) // stride + 1
    Wo = (W - 1) // stride + 1
    Hp = H + 2
    Wh = W + 2
    if stride == 2 and Wh % 2:
        Wh += 1                       # keep padded width even for even/odd decimation

    # ---- fold BN into per-channel scale/bias; rearrange weights to kernel layout ----
    if has_expand:
        we = params["w1"][:, :, 0, 0].T.astype(jnp.bfloat16)                     # (Cin, hidden)
        se, be = _fold_bn(params["g1"], params["b1"], params["m1"], params["v1"])
    wd = jnp.transpose(params["wd"][:, 0, :, :], (1, 2, 0)).astype(jnp.float32)  # (3, 3, hidden)
    sd, bd = _fold_bn(params["g2"], params["b2"], params["m2"], params["v2"])
    wp = wp_pt[:, :, 0, 0].T.astype(jnp.bfloat16)                                # (hidden, oup)
    sp, bp = _fold_bn(params["g3"], params["b3"], params["m3"], params["v3"])

    # Zero-pad H and W once in HBM; the halo is genuine conv zero-padding.
    x_pad = jnp.pad(x_nhwc.astype(jnp.float32),
                    ((0, 0), (1, 1), (1, Wh - 1 - W), (0, 0)))                   # (N, Hp, Wh, Cin)

    TR = _pick_row_tile(Ho, stride, Wh, hidden, max_rows_per_tile)
    nt = Ho // TR
    R_in = stride * (TR - 1) + 3                 # slab rows needed per tile (1-row halo)

    kernel = _make_kernel(H=H, W=W, Wh=Wh, Cin=Cin, hidden=hidden, oup=oup,
                          TR=TR, Wo=Wo, R_in=R_in, stride=stride,
                          has_expand=has_expand, use_res=use_res)

    def _full(arr):
        nd = arr.ndim
        return pl.BlockSpec(arr.shape, lambda n, t, _nd=nd: (0,) * _nd)

    # Full padded image stays resident across the row-tile axis (raw Cin channels are
    # cheap); the hidden-channel slabs are per-row-tile scratch.
    x_spec = pl.BlockSpec((None, Hp, Wh, Cin), lambda n, t: (n, 0, 0, 0))

    if has_expand:
        args = (x_pad, we, se, be, wd, sd, bd, wp, sp, bp)
        in_specs = [x_spec, _full(we), _full(se), _full(be),
                    _full(wd), _full(sd), _full(bd),
                    _full(wp), _full(sp), _full(bp)]
        scratch = [pltpu.VMEM((R_in, Wh, hidden), jnp.float32)]
    else:
        # expand_ratio == 1: no expand conv, no identity matrix / dummy BN DMA.
        args = (x_pad, wd, sd, bd, wp, sp, bp)
        in_specs = [x_spec, _full(wd), _full(sd), _full(bd),
                    _full(wp), _full(sp), _full(bp)]
        scratch = []
    if stride == 2:
        scratch = scratch + [pltpu.VMEM((TR, Wo, hidden), jnp.float32)]

    # TODO(synk): for blocks with oup/hidden far below 128 lanes, pad channel dims to a
    # lane-dense multiple of 128 (or fuse several blocks) to avoid masked vst.msk stores.
    out = pl.pallas_call(
        kernel,
        out_shape=jax.ShapeDtypeStruct((N, Ho, Wo, oup), jnp.float32),
        grid_spec=pltpu.PrefetchScalarGridSpec(
            num_scalar_prefetch=0,
            grid=(N, nt),
            in_specs=in_specs,
            out_specs=pl.BlockSpec((None, TR, Wo, oup), lambda n, t: (n, t, 0, 0)),
            scratch_shapes=scratch,
        ),
        compiler_params=pltpu.CompilerParams(
            dimension_semantics=("parallel", "parallel"),
            vmem_limit_bytes=48 * 1024 * 1024,
        ),
    )(*args)
    return out


def inverted_residual(x_nchw, params, *, stride, expand_ratio, max_rows_per_tile=64):
    """PyTorch-layout (NCHW) entry point."""
    # TODO(synk): keep activations NHWC across chained InvertedResidual blocks to avoid
    # these HBM round-trip transposes at every block boundary.
    x_nhwc = jnp.transpose(x_nchw, (0, 2, 3, 1))
    out = inverted_residual_nhwc(x_nhwc, params, stride=stride, expand_ratio=expand_ratio,
                                 max_rows_per_tile=max_rows_per_tile)
    return jnp.transpose(out, (0, 3, 1, 2))


# ---------------- pure-JAX reference (mirrors the PyTorch module) ----------------
def _bn_ref(y, g, b, m, v):
    return (y - m[None, :, None, None]) / jnp.sqrt(v[None, :, None, None] + _EPS) \
        * g[None, :, None, None] + b[None, :, None, None]


def inverted_residual_ref(x, params, *, stride, expand_ratio):
    """Reference in NCHW.  The two 1x1 convs use bf16 operands with f32 accumulation,
    matching the kernel's native-MXU numerics; everything else is f32."""
    dn = ("NCHW", "OIHW", "NCHW")
    Cin = x.shape[1]
    hidden = int(round(Cin * expand_ratio))
    oup = params["wp"].shape[0]
    h = x
    if expand_ratio != 1:
        h = lax.conv_general_dilated(
            h.astype(jnp.bfloat16), params["w1"].astype(jnp.bfloat16), (1, 1),
            [(0, 0), (0, 0)], dimension_numbers=dn,
            preferred_element_type=jnp.float32)
        h = jnp.clip(_bn_ref(h, params["g1"], params["b1"], params["m1"], params["v1"]), 0.0, 6.0)
    h = lax.conv_general_dilated(
        h, params["wd"], (stride, stride), [(1, 1), (1, 1)],
        dimension_numbers=dn, feature_group_count=hidden,
        precision=lax.Precision.HIGHEST)
    h = jnp.clip(_bn_ref(h, params["g2"], params["b2"], params["m2"], params["v2"]), 0.0, 6.0)
    h = lax.conv_general_dilated(
        h.astype(jnp.bfloat16), params["wp"].astype(jnp.bfloat16), (1, 1),
        [(0, 0), (0, 0)], dimension_numbers=dn,
        preferred_element_type=jnp.float32)
    h = _bn_ref(h, params["g3"], params["b3"], params["m3"], params["v3"])
    if stride == 1 and Cin == oup:
        h = h + x
    return h


def _make_params(key, inp, oup, expand_ratio):
    hidden = int(round(inp * expand_ratio))
    ks = jax.random.split(key, 16)

    def _n(k, shape, scale):
        return jax.random.normal(k, shape, jnp.float32) * scale

    p = {
        "wd": _n(ks[5], (hidden, 1, 3, 3), 0.3),
        "g2": _n(ks[6], (hidden,), 0.1) + 1.0,
        "b2": _n(ks[7], (hidden,), 0.1),
        "m2": _n(ks[8], (hidden,), 0.1),
        "v2": jnp.abs(_n(ks[9], (hidden,), 1.0)) * 0.1 + 0.9,
        "wp": _n(ks[10], (oup, hidden, 1, 1), 0.3),
        "g3": _n(ks[11], (oup,), 0.1) + 1.0,
        "b3": _n(ks[12], (oup,), 0.1),
        "m3": _n(ks[13], (oup,), 0.1),
        "v3": jnp.abs(_n(ks[14], (oup,), 1.0)) * 0.1 + 0.9,
    }
    if expand_ratio != 1:
        p.update({
            "w1": _n(ks[0], (hidden, inp, 1, 1), 0.3),
            "g1": _n(ks[1], (hidden,), 0.1) + 1.0,
            "b1": _n(ks[2], (hidden,), 0.1),
            "m1": _n(ks[3], (hidden,), 0.1),
            "v1": jnp.abs(_n(ks[4], (hidden,), 1.0)) * 0.1 + 0.9,
        })
    return p


if __name__ == "__main__":
    key = jax.random.PRNGKey(0)
    cases = [
        # (N, inp, H,  W,  oup, stride, expand_ratio, max_rows_per_tile)
        (2, 4, 16, 16, 4, 1, 4, 8),    # expand + residual, 2 row tiles
        (2, 4, 15, 15, 8, 2, 6, 4),    # expand + stride 2, odd spatial size
        (1, 8, 16, 16, 8, 1, 1, 4),    # no expand + residual, 4 row tiles
        (1, 8, 16, 16, 16, 2, 1, 8),   # no expand + stride 2
    ]
    for i, (N, inp, H, W, oup, stride, er, mrt) in enumerate(cases):
        kp, kx, key = jax.random.split(key, 3)
        params = _make_params(kp, inp, oup, er)
        x = jax.random.normal(kx, (N, inp, H, W), jnp.float32)

        run = jax.jit(functools.partial(inverted_residual, stride=stride,
                                        expand_ratio=er, max_rows_per_tile=mrt))
        out = jax.block_until_ready(run(x, params))
        ref = inverted_residual_ref(x, params, stride=stride, expand_ratio=er)

        assert out.shape == ref.shape, (i, out.shape, ref.shape)
        max_err = float(jnp.max(jnp.abs(out - ref)))
        assert bool(jnp.allclose(out, ref, rtol=1e-2, atol=1e-2)), (i, max_err)

    print("KERNEL_OK")
</pallas_src>

<mosaic_0001>
module attributes {stable_mosaic.version = 11 : i64} {
  func.func @kernel(%arg0: i32, %arg1: i32, %arg2: memref<1x18x18x4xf32, #tpu.memory_space<vmem>>, %arg3: memref<4x16xbf16, #tpu.memory_space<vmem>>, %arg4: memref<1x16xf32, #tpu.memory_space<vmem>>, %arg5: memref<1x16xf32, #tpu.memory_space<vmem>>, %arg6: memref<3x3x16xf32, #tpu.memory_space<vmem>>, %arg7: memref<1x16xf32, #tpu.memory_space<vmem>>, %arg8: memref<1x16xf32, #tpu.memory_space<vmem>>, %arg9: memref<16x4xbf16, #tpu.memory_space<vmem>>, %arg10: memref<1x4xf32, #tpu.memory_space<vmem>>, %arg11: memref<1x4xf32, #tpu.memory_space<vmem>>, %arg12: memref<1x8x16x4xf32, #tpu.memory_space<vmem>>, %arg13: memref<10x18x16xf32, #tpu.memory_space<vmem>>) attributes {dimension_semantics = [#tpu.dimension_semantics<parallel>, #tpu.dimension_semantics<parallel>], iteration_bounds = array<i64: 2, 2>, scalar_prefetch = 0 : i64, scratch_operands = 1 : i64, tpu.core_type = #tpu.core_type<tc>, window_params = [{transform_indices = @transform_0, window_bounds = array<i64: 1, 18, 18, 4>}, {pipeline_mode = #tpu.pipeline_mode<synchronous>, transform_indices = @transform_1, window_bounds = array<i64: 4, 16>}, {pipeline_mode = #tpu.pipeline_mode<synchronous>, transform_indices = @transform_2, window_bounds = array<i64: 1, 16>}, {pipeline_mode = #tpu.pipeline_mode<synchronous>, transform_indices = @transform_3, window_bounds = array<i64: 1, 16>}, {pipeline_mode = #tpu.pipeline_mode<synchronous>, transform_indices = @transform_4, window_bounds = array<i64: 3, 3, 16>}, {pipeline_mode = #tpu.pipeline_mode<synchronous>, transform_indices = @transform_5, window_bounds = array<i64: 1, 16>}, {pipeline_mode = #tpu.pipeline_mode<synchronous>, transform_indices = @transform_6, window_bounds = array<i64: 1, 16>}, {pipeline_mode = #tpu.pipeline_mode<synchronous>, transform_indices = @transform_7, window_bounds = array<i64: 16, 4>}, {pipeline_mode = #tpu.pipeline_mode<synchronous>, transform_indices = @transform_8, window_bounds = array<i64: 1, 4>}, {pipeline_mode = #tpu.pipeline_mode<synchronous>, transform_indices = @transform_9, window_bounds = array<i64: 1, 4>}, {transform_indices = @transform_10, window_bounds = array<i64: 1, 8, 16, 4>}]} {
    %c8_i32 = arith.constant 8 : i32
    %0 = arith.muli %arg1, %c8_i32 : i32
    %c0 = arith.constant 0 : index
    %1 = arith.index_cast %0 : i32 to index
    %c0_0 = arith.constant 0 : index
    %c0_1 = arith.constant 0 : index
    %2 = vector.load %arg2[%c0, %1, %c0_0, %c0_1] : memref<1x18x18x4xf32, #tpu.memory_space<vmem>>, vector<1x10x18x4xf32>
    %3 = vector.shape_cast %2 : vector<1x10x18x4xf32> to vector<10x18x4xf32>
    %4 = vector.shape_cast %3 : vector<10x18x4xf32> to vector<180x4xf32>
    %5 = arith.truncf %4 : vector<180x4xf32> to vector<180x4xbf16>
    %c0_2 = arith.constant 0 : index
    %c0_3 = arith.constant 0 : index
    %6 = vector.load %arg3[%c0_2, %c0_3] : memref<4x16xbf16, #tpu.memory_space<vmem>>, vector<4x16xbf16>
    %cst = arith.constant dense<0.000000e+00> : vector<180x16xf32>
    %7 = tpu.matmul %5, %6, %cst {dimension_numbers = #tpu.dot_dimension_numbers<[1], [0], [0], [1], [0, 0, 1, 1], [], []>} : vector<180x4xbf16>, vector<4x16xbf16>, vector<180x16xf32> -> vector<180x16xf32>
    %c0_4 = arith.constant 0 : index
    %c0_5 = arith.constant 0 : index
    %8 = vector.load %arg4[%c0_4, %c0_5] : memref<1x16xf32, #tpu.memory_space<vmem>>, vector<1x16xf32>
    %9 = vector.broadcast %8 : vector<1x16xf32> to vector<180x16xf32>
    %10 = arith.mulf %7, %9 : vector<180x16xf32>
    %c0_6 = arith.constant 0 : index
    %c0_7 = arith.constant 0 : index
    %11 = vector.load %arg5[%c0_6, %c0_7] : memref<1x16xf32, #tpu.memory_space<vmem>>, vector<1x16xf32>
    %12 = vector.broadcast %11 : vector<1x16xf32> to vector<180x16xf32>
    %13 = arith.addf %10, %12 : vector<180x16xf32>
    %cst_8 = arith.constant 0.000000e+00 : f32
    %cst_9 = arith.constant 6.000000e+00 : f32
    %14 = vector.broadcast %cst_8 : f32 to vector<180x16xf32>
    %15 = arith.maximumf %14, %13 : vector<180x16xf32>
    %16 = vector.broadcast %cst_9 : f32 to vector<180x16xf32>
    %17 = arith.minimumf %16, %15 : vector<180x16xf32>
    %18 = tpu.iota {dimensions = array<i32: 0>} : vector<10x18x1xi32>
    %19 = vector.broadcast %0 : i32 to vector<10x18x1xi32>
    %20 = arith.addi %18, %19 : vector<10x18x1xi32>
    %21 = tpu.iota {dimensions = array<i32: 1>} : vector<10x18x1xi32>
    %c1_i32 = arith.constant 1 : i32
    %22 = vector.broadcast %c1_i32 : i32 to vector<10x18x1xi32>
    %23 = arith.cmpi sge, %20, %22 : vector<10x18x1xi32>
    %c16_i32 = arith.constant 16 : i32
    %24 = vector.broadcast %c16_i32 : i32 to vector<10x18x1xi32>
    %25 = arith.cmpi sle, %20, %24 : vector<10x18x1xi32>
    %26 = arith.andi %23, %25 : vector<10x18x1xi1>
    %c1_i32_10 = arith.constant 1 : i32
    %27 = vector.broadcast %c1_i32_10 : i32 to vector<10x18x1xi32>
    %28 = arith.cmpi sge, %21, %27 : vector<10x18x1xi32>
    %29 = arith.andi %26, %28 : vector<10x18x1xi1>
    %c16_i32_11 = arith.constant 16 : i32
    %30 = vector.broadcast %c16_i32_11 : i32 to vector<10x18x1xi32>
    %31 = arith.cmpi sle, %21, %30 : vector<10x18x1xi32>
    %32 = arith.andi %29, %31 : vector<10x18x1xi1>
    %33 = vector.shape_cast %17 : vector<180x16xf32> to vector<10x18x16xf32>
    %34 = arith.extui %32 : vector<10x18x1xi1> to vector<10x18x1xi32>
    %35 = arith.sitofp %34 : vector<10x18x1xi32> to vector<10x18x1xf32>
    %36 = vector.broadcast %35 : vector<10x18x1xf32> to vector<10x18x16xf32>
    %37 = arith.mulf %33, %36 : vector<10x18x16xf32>
    %c0_12 = arith.constant 0 : index
    %c0_13 = arith.constant 0 : index
    %c0_14 = arith.constant 0 : index
    %38 = vector.load %arg13[%c0_12, %c0_13, %c0_14] : memref<10x18x16xf32, #tpu.memory_space<vmem>>, vector<10x18x16xf32>
    tpu.vector_store %arg13[%c0_12, %c0_13, %c0_14], %37 {strides = array<i32>} : memref<10x18x16xf32, #tpu.memory_space<vmem>>, vector<10x18x16xf32>,
    %c0_15 = arith.constant 0 : index
    %c0_16 = arith.constant 0 : index
    %c0_17 = arith.constant 0 : index
    %39 = vector.load %arg6[%c0_15, %c0_16, %c0_17] : memref<3x3x16xf32, #tpu.memory_space<vmem>>, vector<3x3x16xf32>
    %c0_18 = arith.constant 0 : index
    %c0_19 = arith.constant 0 : index
    %40 = vector.load %arg7[%c0_18, %c0_19] : memref<1x16xf32, #tpu.memory_space<vmem>>, vector<1x16xf32>
    %41 = vector.shape_cast %40 : vector<1x16xf32> to vector<16xf32>
    %c0_20 = arith.constant 0 : index
    %c0_21 = arith.constant 0 : index
    %42 = vector.load %arg8[%c0_20, %c0_21] : memref<1x16xf32, #tpu.memory_space<vmem>>, vector<1x16xf32>
    %43 = vector.shape_cast %42 : vector<1x16xf32> to vector<16xf32>
    %cst_22 = arith.constant 0.000000e+00 : f32
    %44 = vector.broadcast %cst_22 : f32 to vector<8x16x16xf32>
    %c0_23 = arith.constant 0 : index
    %c0_24 = arith.constant 0 : index
    %c0_25 = arith.constant 0 : index
    %45 = vector.load %arg13[%c0_23, %c0_24, %c0_25] : memref<10x18x16xf32, #tpu.memory_space<vmem>>, vector<8x16x16xf32>
    %46 = vector.extract_strided_slice %39 {offsets = [0, 0, 0], sizes = [1, 1, 16], strides = [1, 1, 1]} : vector<3x3x16xf32> to vector<1x1x16xf32>
    %47 = vector.shape_cast %46 : vector<1x1x16xf32> to vector<16xf32>
    %48 = vector.shape_cast %47 : vector<16xf32> to vector<1x1x16xf32>
    %49 = vector.broadcast %48 : vector<1x1x16xf32> to vector<8x16x16xf32>
    %50 = arith.mulf %45, %49 : vector<8x16x16xf32>
    %51 = arith.addf %44, %50 : vector<8x16x16xf32>
    %c0_26 = arith.constant 0 : index
    %c1 = arith.constant 1 : index
    %c0_27 = arith.constant 0 : index
    %52 = vector.load %arg13[%c0_26, %c1, %c0_27] : memref<10x18x16xf32, #tpu.memory_space<vmem>>, vector<8x16x16xf32>
    %53 = vector.extract_strided_slice %39 {offsets = [0, 1, 0], sizes = [1, 1, 16], strides = [1, 1, 1]} : vector<3x3x16xf32> to vector<1x1x16xf32>
    %54 = vector.shape_cast %53 : vector<1x1x16xf32> to vector<16xf32>
    %55 = vector.shape_cast %54 : vector<16xf32> to vector<1x1x16xf32>
    %56 = vector.broadcast %55 : vector<1x1x16xf32> to vector<8x16x16xf32>
    %57 = arith.mulf %52, %56 : vector<8x16x16xf32>
    %58 = arith.addf %51, %57 : vector<8x16x16xf32>
    %c0_28 = arith.constant 0 : index
    %c2 = arith.constant 2 : index
    %c0_29 = arith.constant 0 : index
    %59 = vector.load %arg13[%c0_28, %c2, %c0_29] : memref<10x18x16xf32, #tpu.memory_space<vmem>>, vector<8x16x16xf32>
    %60 = vector.extract_strided_slice %39 {offsets = [0, 2, 0], sizes = [1, 1, 16], strides = [1, 1, 1]} : vector<3x3x16xf32> to vector<1x1x16xf32>
    %61 = vector.shape_cast %60 : vector<1x1x16xf32> to vector<16xf32>
    %62 = vector.shape_cast %61 : vector<16xf32> to vector<1x1x16xf32>
    %63 = vector.broadcast %62 : vector<1x1x16xf32> to vector<8x16x16xf32>
    %64 = arith.mulf %59, %63 : vector<8x16x16xf32>
    %65 = arith.addf %58, %64 : vector<8x16x16xf32>
    %c1_30 = arith.constant 1 : index
    %c0_31 = arith.constant 0 : index
    %c0_32 = arith.constant 0 : index
    %66 = vector.load %arg13[%c1_30, %c0_31, %c0_32] : memref<10x18x16xf32, #tpu.memory_space<vmem>>, vector<8x16x16xf32>
    %67 = vector.extract_strided_slice %39 {offsets = [1, 0, 0], sizes = [1, 1, 16], strides = [1, 1, 1]} : vector<3x3x16xf32> to vector<1x1x16xf32>
    %68 = vector.shape_cast %67 : vector<1x1x16xf32> to vector<16xf32>
    %69 = vector.shape_cast %68 : vector<16xf32> to vector<1x1x16xf32>
    %70 = vector.broadcast %69 : vector<1x1x16xf32> to vector<8x16x16xf32>
    %71 = arith.mulf %66, %70 : vector<8x16x16xf32>
    %72 = arith.addf %65, %71 : vector<8x16x16xf32>
    %c1_33 = arith.constant 1 : index
    %c1_34 = arith.constant 1 : index
    %c0_35 = arith.constant 0 : index
    %73 = vector.load %arg13[%c1_33, %c1_34, %c0_35] : memref<10x18x16xf32, #tpu.memory_space<vmem>>, vector<8x16x16xf32>
    %74 = vector.extract_strided_slice %39 {offsets = [1, 1, 0], sizes = [1, 1, 16], strides = [1, 1, 1]} : vector<3x3x16xf32> to vector<1x1x16xf32>
    %75 = vector.shape_cast %74 : vector<1x1x16xf32> to vector<16xf32>
    %76 = vector.shape_cast %75 : vector<16xf32> to vector<1x1x16xf32>
    %77 = vector.broadcast %76 : vector<1x1x16xf32> to vector<8x16x16xf32>
    %78 = arith.mulf %73, %77 : vector<8x16x16xf32>
    %79 = arith.addf %72, %78 : vector<8x16x16xf32>
    %c1_36 = arith.constant 1 : index
    %c2_37 = arith.constant 2 : index
    %c0_38 = arith.constant 0 : index
    %80 = vector.load %arg13[%c1_36, %c2_37, %c0_38] : memref<10x18x16xf32, #tpu.memory_space<vmem>>, vector<8x16x16xf32>
    %81 = vector.extract_strided_slice %39 {offsets = [1, 2, 0], sizes = [1, 1, 16], strides = [1, 1, 1]} : vector<3x3x16xf32> to vector<1x1x16xf32>
    %82 = vector.shape_cast %81 : vector<1x1x16xf32> to vector<16xf32>
    %83 = vector.shape_cast %82 : vector<16xf32> to vector<1x1x16xf32>
    %84 = vector.broadcast %83 : vector<1x1x16xf32> to vector<8x16x16xf32>
    %85 = arith.mulf %80, %84 : vector<8x16x16xf32>
    %86 = arith.addf %79, %85 : vector<8x16x16xf32>
    %c2_39 = arith.constant 2 : index
    %c0_40 = arith.constant 0 : index
    %c0_41 = arith.constant 0 : index
    %87 = vector.load %arg13[%c2_39, %c0_40, %c0_41] : memref<10x18x16xf32, #tpu.memory_space<vmem>>, vector<8x16x16xf32>
    %88 = vector.extract_strided_slice %39 {offsets = [2, 0, 0], sizes = [1, 1, 16], strides = [1, 1, 1]} : vector<3x3x16xf32> to vector<1x1x16xf32>
    %89 = vector.shape_cast %88 : vector<1x1x16xf32> to vector<16xf32>
    %90 = vector.shape_cast %89 : vector<16xf32> to vector<1x1x16xf32>
    %91 = vector.broadcast %90 : vector<1x1x16xf32> to vector<8x16x16xf32>
    %92 = arith.mulf %87, %91 : vector<8x16x16xf32>
    %93 = arith.addf %86, %92 : vector<8x16x16xf32>
    %c2_42 = arith.constant 2 : index
    %c1_43 = arith.constant 1 : index
    %c0_44 = arith.constant 0 : index
    %94 = vector.load %arg13[%c2_42, %c1_43, %c0_44] : memref<10x18x16xf32, #tpu.memory_space<vmem>>, vector<8x16x16xf32>
    %95 = vector.extract_strided_slice %39 {offsets = [2, 1, 0], sizes = [1, 1, 16], strides = [1, 1, 1]} : vector<3x3x16xf32> to vector<1x1x16xf32>
    %96 = vector.shape_cast %95 : vector<1x1x16xf32> to vector<16xf32>
    %97 = vector.shape_cast %96 : vector<16xf32> to vector<1x1x16xf32>
    %98 = vector.broadcast %97 : vector<1x1x16xf32> to vector<8x16x16xf32>
    %99 = arith.mulf %94, %98 : vector<8x16x16xf32>
    %100 = arith.addf %93, %99 : vector<8x16x16xf32>
    %c2_45 = arith.constant 2 : index
    %c2_46 = arith.constant 2 : index
    %c0_47 = arith.constant 0 : index
    %101 = vector.load %arg13[%c2_45, %c2_46, %c0_47] : memref<10x18x16xf32, #tpu.memory_space<vmem>>, vector<8x16x16xf32>
    %102 = vector.extract_strided_slice %39 {offsets = [2, 2, 0], sizes = [1, 1, 16], strides = [1, 1, 1]} : vector<3x3x16xf32> to vector<1x1x16xf32>
    %103 = vector.shape_cast %102 : vector<1x1x16xf32> to vector<16xf32>
    %104 = vector.shape_cast %103 : vector<16xf32> to vector<1x1x16xf32>
    %105 = vector.broadcast %104 : vector<1x1x16xf32> to vector<8x16x16xf32>
    %106 = arith.mulf %101, %105 : vector<8x16x16xf32>
    %107 = arith.addf %100, %106 : vector<8x16x16xf32>
    %108 = vector.shape_cast %41 : vector<16xf32> to vector<1x1x16xf32>
    %109 = vector.broadcast %108 : vector<1x1x16xf32> to vector<8x16x16xf32>
    %110 = arith.mulf %107, %109 : vector<8x16x16xf32>
    %111 = vector.shape_cast %43 : vector<16xf32> to vector<1x1x16xf32>
    %112 = vector.broadcast %111 : vector<1x1x16xf32> to vector<8x16x16xf32>
    %113 = arith.addf %110, %112 : vector<8x16x16xf32>
    %cst_48 = arith.constant 0.000000e+00 : f32
    %cst_49 = arith.constant 6.000000e+00 : f32
    %114 = vector.broadcast %cst_48 : f32 to vector<8x16x16xf32>
    %115 = arith.maximumf %114, %113 : vector<8x16x16xf32>
    %116 = vector.broadcast %cst_49 : f32 to vector<8x16x16xf32>
    %117 = arith.minimumf %116, %115 : vector<8x16x16xf32>
    %118 = vector.shape_cast %117 : vector<8x16x16xf32> to vector<128x16xf32>
    %119 = arith.truncf %118 : vector<128x16xf32> to vector<128x16xbf16>
    %c0_50 = arith.constant 0 : index
    %c0_51 = arith.constant 0 : index
    %120 = vector.load %arg9[%c0_50, %c0_51] : memref<16x4xbf16, #tpu.memory_space<vmem>>, vector<16x4xbf16>
    %cst_52 = arith.constant dense<0.000000e+00> : vector<128x4xf32>
    %121 = tpu.matmul %119, %120, %cst_52 {dimension_numbers = #tpu.dot_dimension_numbers<[1], [0], [0], [1], [0, 0, 1, 1], [], []>} : vector<128x16xbf16>, vector<16x4xbf16>, vector<128x4xf32> -> vector<128x4xf32>
    %c0_53 = arith.constant 0 : index
    %c0_54 = arith.constant 0 : index
    %122 = vector.load %arg10[%c0_53, %c0_54] : memref<1x4xf32, #tpu.memory_space<vmem>>, vector<1x4xf32>
    %123 = vector.broadcast %122 : vector<1x4xf32> to vector<128x4xf32>
    %124 = arith.mulf %121, %123 : vector<128x4xf32>
    %c0_55 = arith.constant 0 : index
    %c0_56 = arith.constant 0 : index
    %125 = vector.load %arg11[%c0_55, %c0_56] : memref<1x4xf32, #tpu.memory_space<vmem>>, vector<1x4xf32>
    %126 = vector.broadcast %125 : vector<1x4xf32> to vector<128x4xf32>
    %127 = arith.addf %124, %126 : vector<128x4xf32>
    %128 = vector.shape_cast %127 : vector<128x4xf32> to vector<8x16x4xf32>
    %c1_i32_57 = arith.constant 1 : i32
    %129 = arith.addi %0, %c1_i32_57 : i32
    %c0_58 = arith.constant 0 : index
    %130 = arith.index_cast %129 : i32 to index
    %c1_59 = arith.constant 1 : index
    %c0_60 = arith.constant 0 : index
    %131 = vector.load %arg2[%c0_58, %130, %c1_59, %c0_60] : memref<1x18x18x4xf32, #tpu.memory_space<vmem>>, vector<1x8x16x4xf32>
    %132 = vector.shape_cast %131 : vector<1x8x16x4xf32> to vector<8x16x4xf32>
    %133 = arith.addf %128, %132 : vector<8x16x4xf32>
    %c0_61 = arith.constant 0 : index
    %c0_62 = arith.constant 0 : index
    %c0_63 = arith.constant 0 : index
    %c0_64 = arith.constant 0 : index
    %134 = vector.load %arg12[%c0_61, %c0_62, %c0_63, %c0_64] : memref<1x8x16x4xf32, #tpu.memory_space<vmem>>, vector<1x8x16x4xf32>
    %135 = vector.shape_cast %134 : vector<1x8x16x4xf32> to vector<8x16x4xf32>
    %136 = vector.shape_cast %133 : vector<8x16x4xf32> to vector<1x8x16x4xf32>
    tpu.vector_store %arg12[%c0_61, %c0_62, %c0_63, %c0_64], %136 {strides = array<i32>} : memref<1x8x16x4xf32, #tpu.memory_space<vmem>>, vector<1x8x16x4xf32>,
    return
  }
  func.func @transform_0(%arg0: i32, %arg1: i32) -> (i32, i32, i32, i32) {
    %c0_i32 = arith.constant 0 : i32
    %c0_i32_0 = arith.constant 0 : i32
    %c0_i32_1 = arith.constant 0 : i32
    %c0_i32_2 = arith.constant 0 : i32
    return %arg0, %c0_i32, %c0_i32_0, %c0_i32_1 : i32, i32, i32, i32
  }
  func.func @transform_1(%arg0: i32, %arg1: i32) -> (i32, i32) {
    %c0_i32 = arith.constant 0 : i32
    %c0_i32_0 = arith.constant 0 : i32
    %c0_i32_1 = arith.constant 0 : i32
    return %c0_i32, %c0_i32_0 : i32, i32
  }
  func.func @transform_2(%arg0: i32, %arg1: i32) -> (i32, i32) {
    %c0_i32 = arith.constant 0 : i32
    %c0_i32_0 = arith.constant 0 : i32
    %c0_i32_1 = arith.constant 0 : i32
    return %c0_i32, %c0_i32_0 : i32, i32
  }
  func.func @transform_3(%arg0: i32, %arg1: i32) -> (i32, i32) {
    %c0_i32 = arith.constant 0 : i32
    %c0_i32_0 = arith.constant 0 : i32
    %c0_i32_1 = arith.constant 0 : i32
    return %c0_i32, %c0_i32_0 : i32, i32
  }
  func.func @transform_4(%arg0: i32, %arg1: i32) -> (i32, i32, i32) {
    %c0_i32 = arith.constant 0 : i32
    %c0_i32_0 = arith.constant 0 : i32
    %c0_i32_1 = arith.constant 0 : i32
    %c0_i32_2 = arith.constant 0 : i32
    return %c0_i32, %c0_i32_0, %c0_i32_1 : i32, i32, i32
  }
  func.func @transform_5(%arg0: i32, %arg1: i32) -> (i32, i32) {
    %c0_i32 = arith.constant 0 : i32
    %c0_i32_0 = arith.constant 0 : i32
    %c0_i32_1 = arith.constant 0 : i32
    return %c0_i32, %c0_i32_0 : i32, i32
  }
  func.func @transform_6(%arg0: i32, %arg1: i32) -> (i32, i32) {
    %c0_i32 = arith.constant 0 : i32
    %c0_i32_0 = arith.constant 0 : i32
    %c0_i32_1 = arith.constant 0 : i32
    return %c0_i32, %c0_i32_0 : i32, i32
  }
  func.func @transform_7(%arg0: i32, %arg1: i32) -> (i32, i32) {
    %c0_i32 = arith.constant 0 : i32
    %c0_i32_0 = arith.constant 0 : i32
    %c0_i32_1 = arith.constant 0 : i32
    return %c0_i32, %c0_i32_0 : i32, i32
  }
  func.func @transform_8(%arg0: i32, %arg1: i32) -> (i32, i32) {
    %c0_i32 = arith.constant 0 : i32
    %c0_i32_0 = arith.constant 0 : i32
    %c0_i32_1 = arith.constant 0 : i32
    return %c0_i32, %c0_i32_0 : i32, i32
  }
  func.func @transform_9(%arg0: i32, %arg1: i32) -> (i32, i32) {
    %c0_i32 = arith.constant 0 : i32
    %c0_i32_0 = arith.constant 0 : i32
    %c0_i32_1 = arith.constant 0 : i32
    return %c0_i32, %c0_i32_0 : i32, i32
  }
  func.func @transform_10(%arg0: i32, %arg1: i32) -> (i32, i32, i32, i32) {
    %c0_i32 = arith.constant 0 : i32
    %c0_i32_0 = arith.constant 0 : i32
    %c0_i32_1 = arith.constant 0 : i32
    return %arg0, %arg1, %c0_i32, %c0_i32_0 : i32, i32, i32, i32
  }
}

</mosaic_0001>

<llo_original>
// kernel: inverted_residual.1
$region0: #{inverted_residual.1}
  #allocation0 [shape = 'u32[]', space=smem, size = 0x4, offset = 0x4, fixed_abs, tag = 'smem constant byte address 0x4 - core index']
  #allocation1 [shape = 'u32[144,128]{1,0:T(1,128)}', space=vmem, size = 0x12000, scoped, tag = 'internal scratch']
  #allocation2 [shape = 'f32[10,18,16]{2,1,0:T(8,128)}', space=vmem, size = 0x1e000, scoped, tag = 'scratch operand']
  %s0 = inlined_call_operand.vmem [shape: f32[2,18,18,4], index: 0, kind: input, shape index: {}]
  %s1 = inlined_call_operand.vmem [shape: bf16[4,16], index: 1, kind: input, shape index: {}]
  %s2 = inlined_call_operand.vmem [shape: f32[1,16], index: 2, kind: input, shape index: {}]
  %s3 = inlined_call_operand.vmem [shape: f32[1,16], index: 3, kind: input, shape index: {}]
  %s4 = inlined_call_operand.vmem [shape: f32[3,3,16], index: 4, kind: input, shape index: {}]
  %s5 = inlined_call_operand.vmem [shape: f32[1,16], index: 5, kind: input, shape index: {}]
  %s6 = inlined_call_operand.vmem [shape: f32[1,16], index: 6, kind: input, shape index: {}]
  %s7 = inlined_call_operand.vmem [shape: bf16[16,4], index: 7, kind: input, shape index: {}]
  %s8 = inlined_call_operand.vmem [shape: f32[1,4], index: 8, kind: input, shape index: {}]
  %s9 = inlined_call_operand.vmem [shape: f32[1,4], index: 9, kind: input, shape index: {}]
  %s10 = inlined_call_operand.vmem [shape: f32[2,16,16,4], index: 10, kind: output, shape index: {}]
  %s11 = sld [smem:[#allocation0]]
  $region73: #{inverted_residual.1} parent=0
    _
  %s13 = ssub.s32 1, %s11
  %s14 = scalar_select 0, %s13, %s11
  loop: start=0, step=1, limit=6
  $region2: #{inverted_residual.1} parent=0 // loop_pre_header
    _
  $region3: #{inverted_residual.1} parent=0 // loop_header
    %s16 = sphi 0, %s20
    %p17 = scmp.ge.s32.totalorder %s16, 6
    %s23 = sphi 0, %s35
    %s24 = sphi 0, %s31
    %s25 = sphi 0, %s23
    %s26 = sphi 0, %s24
    %s27 = sphi 0, %s25
    %s28 = sphi 0, %s26
    %s38 = sphi 0, %s40
    %s41 = sphi 0, %s38
    %s42 = sphi 0, %s41
    %s58 = sphi 0, %s42
    %s62 = sphi 0, %s62
    %s64 = sphi 0, %s62
    %s65 = sphi 0, %s64
    %s79 = sphi 0, %s65
    %s83 = sphi 0, %s83
    %s85 = sphi 0, %s83
    %s86 = sphi 0, %s85
    %s100 = sphi 0, %s86
    %s104 = sphi 0, %s104
    %s106 = sphi 0, %s104
    %s107 = sphi 0, %s106
    %s121 = sphi 0, %s107
    %s125 = sphi 0, %s125
    %s127 = sphi 0, %s125
    %s128 = sphi 0, %s127
    %s142 = sphi 0, %s128
    %s146 = sphi 0, %s146
    %s148 = sphi 0, %s146
    %s149 = sphi 0, %s148
    %s163 = sphi 0, %s149
    %s167 = sphi 0, %s167
    %s169 = sphi 0, %s167
    %s170 = sphi 0, %s169
    %s184 = sphi 0, %s170
    %s188 = sphi 0, %s188
    %s190 = sphi 0, %s188
    %s191 = sphi 0, %s190
    %s205 = sphi 0, %s191
    %s209 = sphi 0, %s209
    %s211 = sphi 0, %s209
    %s212 = sphi 0, %s211
    %s226 = sphi 0, %s212
    %s230 = sphi 0, %s230
    %s232 = sphi 0, %s230
    %s233 = sphi 0, %s232
    %s247 = sphi 0, %s233
    %s255 = sphi 0, %s257
    %s258 = sphi 0, %s255
    %s259 = sphi 0, %s258
    %s275 = sphi 0, %s259
  $region4: #{inverted_residual.1} parent=0 // loop_header_branch
    %19 = sbr.rel (%p17) target = $region8
  $region5: #{inverted_residual.1} parent=0 // loop_body
    %s21 = ssub.s32 %s16, 1
    %s22 = ssub.s32 %s16, 2
    %s29 = sadd.s32 1, %s24
    %p30 = scmp.ge.s32.totalorder %s29, 2
    %s31 = scalar_select %p30, 0, %s29
    %s32 = sadd.s32 1, %s23
    %s33 = scalar_select %p30, %s32, %s23
    %p34 = scmp.ge.s32.totalorder %s33, 2
    %s35 = scalar_select %p34, 0, %s33
    %s36 = ssub.s32 %s23, %s35
    %p37 = scmp.eq.s32.totalorder %s36, 0
    %s39 = sadd.s32 %s38, 1
    %s40 = scalar_select %p37, %s38, %s39
    %p43 = pneg %p37
    %p44 = scmp.eq.s32.totalorder %s16, 3
    %p45 = por %p43, %p44
    %p46 = scmp.ne.s32.totalorder %s38, %s41
    %p47 = scmp.eq.s32.totalorder %s16, 0
    %p48 = por %p46, %p47
    %p49 = scmp.ne.s32.totalorder %s38, %s41
    %p50 = scmp.eq.s32.totalorder %s21, 3
    %p51 = por %p49, %p50
    %p52 = scmp.ne.s32.totalorder %s41, %s42
    %p53 = scmp.eq.s32.totalorder %s21, 0
    %p54 = por %p52, %p53
    %p55 = scmp.ne.s32.totalorder %s41, %s42
    %p56 = scmp.eq.s32.totalorder %s22, 3
    %p57 = por %p55, %p56
    %p59 = scmp.ne.s32.totalorder %s42, %s58
    %p60 = scmp.eq.s32.totalorder %s22, 0
    %p61 = por %p59, %p60
    %s63 = sadd.s32 %s62, 1
    %p66 = scmp.eq.s32.totalorder %s16, 3
    %p67 = scmp.ne.s32.totalorder %s62, %s64
    %p68 = scmp.eq.s32.totalorder %s16, 0
    %p69 = por %p67, %p68
    %p70 = scmp.ne.s32.totalorder %s62, %s64
    %p71 = scmp.eq.s32.totalorder %s21, 3
    %p72 = por %p70, %p71
    %p73 = scmp.ne.s32.totalorder %s64, %s65
    %p74 = scmp.eq.s32.totalorder %s21, 0
    %p75 = por %p73, %p74
    %p76 = scmp.ne.s32.totalorder %s64, %s65
    %p77 = scmp.eq.s32.totalorder %s22, 3
    %p78 = por %p76, %p77
    %p80 = scmp.ne.s32.totalorder %s65, %s79
    %p81 = scmp.eq.s32.totalorder %s22, 0
    %p82 = por %p80, %p81
    %s84 = sadd.s32 %s83, 1
    %p87 = scmp.eq.s32.totalorder %s16, 3
    %p88 = scmp.ne.s32.totalorder %s83, %s85
    %p89 = scmp.eq.s32.totalorder %s16, 0
    %p90 = por %p88, %p89
    %p91 = scmp.ne.s32.totalorder %s83, %s85
    %p92 = scmp.eq.s32.totalorder %s21, 3
    %p93 = por %p91, %p92
    %p94 = scmp.ne.s32.totalorder %s85, %s86
    %p95 = scmp.eq.s32.totalorder %s21, 0
    %p96 = por %p94, %p95
    %p97 = scmp.ne.s32.totalorder %s85, %s86
    %p98 = scmp.eq.s32.totalorder %s22, 3
    %p99 = por %p97, %p98
    %p101 = scmp.ne.s32.totalorder %s86, %s100
    %p102 = scmp.eq.s32.totalorder %s22, 0
    %p103 = por %p101, %p102
    %s105 = sadd.s32 %s104, 1
    %p108 = scmp.eq.s32.totalorder %s16, 3
    %p109 = scmp.ne.s32.totalorder %s104, %s106
    %p110 = scmp.eq.s32.totalorder %s16, 0
    %p111 = por %p109, %p110
    %p112 = scmp.ne.s32.totalorder %s104, %s106
    %p113 = scmp.eq.s32.totalorder %s21, 3
    %p114 = por %p112, %p113
    %p115 = scmp.ne.s32.totalorder %s106, %s107
    %p116 = scmp.eq.s32.totalorder %s21, 0
    %p117 = por %p115, %p116
    %p118 = scmp.ne.s32.totalorder %s106, %s107
    %p119 = scmp.eq.s32.totalorder %s22, 3
    %p120 = por %p118, %p119
    %p122 = scmp.ne.s32.totalorder %s107, %s121
    %p123 = scmp.eq.s32.totalorder %s22, 0
    %p124 = por %p122, %p123
    %s126 = sadd.s32 %s125, 1
    %p129 = scmp.eq.s32.totalorder %s16, 3
    %p130 = scmp.ne.s32.totalorder %s125, %s127
    %p131 = scmp.eq.s32.totalorder %s16, 0
    %p132 = por %p130, %p131
    %p133 = scmp.ne.s32.totalorder %s125, %s127
    %p134 = scmp.eq.s32.totalorder %s21, 3
    %p135 = por %p133, %p134
    %p136 = scmp.ne.s32.totalorder %s127, %s128
    %p137 = scmp.eq.s32.totalorder %s21, 0
    %p138 = por %p136, %p137
    %p139 = scmp.ne.s32.totalorder %s127, %s128
    %p140 = scmp.eq.s32.totalorder %s22, 3
    %p141 = por %p139, %p140
    %p143 = scmp.ne.s32.totalorder %s128, %s142
    %p144 = scmp.eq.s32.totalorder %s22, 0
    %p145 = por %p143, %p144
    %s147 = sadd.s32 %s146, 1
    %p150 = scmp.eq.s32.totalorder %s16, 3
    %p151 = scmp.ne.s32.totalorder %s146, %s148
    %p152 = scmp.eq.s32.totalorder %s16, 0
    %p153 = por %p151, %p152
    %p154 = scmp.ne.s32.totalorder %s146, %s148
    %p155 = scmp.eq.s32.totalorder %s21, 3
    %p156 = por %p154, %p155
    %p157 = scmp.ne.s32.totalorder %s148, %s149
    %p158 = scmp.eq.s32.totalorder %s21, 0
    %p159 = por %p157, %p158
    %p160 = scmp.ne.s32.totalorder %s148, %s149
    %p161 = scmp.eq.s32.totalorder %s22, 3
    %p162 = por %p160, %p161
    %p164 = scmp.ne.s32.totalorder %s149, %s163
    %p165 = scmp.eq.s32.totalorder %s22, 0
    %p166 = por %p164, %p165
    %s168 = sadd.s32 %s167, 1
    %p171 = scmp.eq.s32.totalorder %s16, 3
    %p172 = scmp.ne.s32.totalorder %s167, %s169
    %p173 = scmp.eq.s32.totalorder %s16, 0
    %p174 = por %p172, %p173
    %p175 = scmp.ne.s32.totalorder %s167, %s169
    %p176 = scmp.eq.s32.totalorder %s21, 3
    %p177 = por %p175, %p176
    %p178 = scmp.ne.s32.totalorder %s169, %s170
    %p179 = scmp.eq.s32.totalorder %s21, 0
    %p180 = por %p178, %p179
    %p181 = scmp.ne.s32.totalorder %s169, %s170
    %p182 = scmp.eq.s32.totalorder %s22, 3
    %p183 = por %p181, %p182
    %p185 = scmp.ne.s32.totalorder %s170, %s184
    %p186 = scmp.eq.s32.totalorder %s22, 0
    %p187 = por %p185, %p186
    %s189 = sadd.s32 %s188, 1
    %p192 = scmp.eq.s32.totalorder %s16, 3
    %p193 = scmp.ne.s32.totalorder %s188, %s190
    %p194 = scmp.eq.s32.totalorder %s16, 0
    %p195 = por %p193, %p194
    %p196 = scmp.ne.s32.totalorder %s188, %s190
    %p197 = scmp.eq.s32.totalorder %s21, 3
    %p198 = por %p196, %p197
    %p199 = scmp.ne.s32.totalorder %s190, %s191
    %p200 = scmp.eq.s32.totalorder %s21, 0
    %p201 = por %p199, %p200
    %p202 = scmp.ne.s32.totalorder %s190, %s191
    %p203 = scmp.eq.s32.totalorder %s22, 3
    %p204 = por %p202, %p203
    %p206 = scmp.ne.s32.totalorder %s191, %s205
    %p207 = scmp.eq.s32.totalorder %s22, 0
    %p208 = por %p206, %p207
    %s210 = sadd.s32 %s209, 1
    %p213 = scmp.eq.s32.totalorder %s16, 3
    %p214 = scmp.ne.s32.totalorder %s209, %s211
    %p215 = scmp.eq.s32.totalorder %s16, 0
    %p216 = por %p214, %p215
    %p217 = scmp.ne.s32.totalorder %s209, %s211
    %p218 = scmp.eq.s32.totalorder %s21, 3
    %p219 = por %p217, %p218
    %p220 = scmp.ne.s32.totalorder %s211, %s212
    %p221 = scmp.eq.s32.totalorder %s21, 0
    %p222 = por %p220, %p221
    %p223 = scmp.ne.s32.totalorder %s211, %s212
    %p224 = scmp.eq.s32.totalorder %s22, 3
    %p225 = por %p223, %p224
    %p227 = scmp.ne.s32.totalorder %s212, %s226
    %p228 = scmp.eq.s32.totalorder %s22, 0
    %p229 = por %p227, %p228
    %s231 = sadd.s32 %s230, 1
    %p234 = scmp.eq.s32.totalorder %s16, 3
    %p235 = scmp.ne.s32.totalorder %s230, %s232
    %p236 = scmp.eq.s32.totalorder %s16, 0
    %p237 = por %p235, %p236
    %p238 = scmp.ne.s32.totalorder %s230, %s232
    %p239 = scmp.eq.s32.totalorder %s21, 3
    %p240 = por %p238, %p239
    %p241 = scmp.ne.s32.totalorder %s232, %s233
    %p242 = scmp.eq.s32.totalorder %s21, 0
    %p243 = por %p241, %p242
    %p244 = scmp.ne.s32.totalorder %s232, %s233
    %p245 = scmp.eq.s32.totalorder %s22, 3
    %p246 = por %p244, %p245
    %p248 = scmp.ne.s32.totalorder %s233, %s247
    %p249 = scmp.eq.s32.totalorder %s22, 0
    %p250 = por %p248, %p249
    %s251 = ssub.s32 %s23, %s35
    %s252 = ssub.s32 %s24, %s31
    %s253 = sor.u32 %s251, %s252
    %p254 = scmp.eq.s32.totalorder %s253, 0
    %s256 = sadd.s32 %s255, 1
    %s257 = scalar_select %p254, %s255, %s256
    %p260 = pneg %p254
    %p261 = scmp.eq.s32.totalorder %s16, 3
    %p262 = por %p260, %p261
    %p263 = scmp.ne.s32.totalorder %s255, %s258
    %p264 = scmp.eq.s32.totalorder %s16, 0
    %p265 = por %p263, %p264
    %p266 = scmp.ne.s32.totalorder %s255, %s258
    %p267 = scmp.eq.s32.totalorder %s21, 3
    %p268 = por %p266, %p267
    %p269 = scmp.ne.s32.totalorder %s258, %s259
    %p270 = scmp.eq.s32.totalorder %s21, 0
    %p271 = por %p269, %p270
    %p272 = scmp.ne.s32.totalorder %s258, %s259
    %p273 = scmp.eq.s32.totalorder %s22, 3
    %p274 = por %p272, %p273
    %p276 = scmp.ne.s32.totalorder %s259, %s275
    %p277 = scmp.eq.s32.totalorder %s22, 0
    %p278 = por %p276, %p277
    %p279 = scmp.le.s32.totalorder 1, %s16
    %p280 = scmp.lt.s32.totalorder %s16, 5
    %p281 = pnand %p279, %p280
    %p282 = pneg %p281
    // Predicated region
    $region9: #{inverted_residual.1} parent=5 // pred_check
      _
    $region10: #{inverted_residual.1} parent=5 // pred_check_branch
      %284 = sbr.rel (%p281) target = $region12
    $region11: #{inverted_residual.1} parent=5 // pred_region
      %s285 = ssub.s32 %s16, 1
      // Predicated region
      $region13: #{inverted_residual.1} parent=11 // pred_check
        %p286 = pneg %p75
      $region14: #{inverted_residual.1} parent=11 // pred_check_branch
        %288 = sbr.rel (%p286) target = $region16
      $region15: #{inverted_residual.1} parent=11 // pred_region
        _
      $region16: #{inverted_residual.1} parent=11 // pred_fallthru
        _
      // Predicated region
      $region17: #{inverted_residual.1} parent=11 // pred_check
        %p289 = pneg %p96
      $region18: #{inverted_residual.1} parent=11 // pred_check_branch
        %291 = sbr.rel (%p289) target = $region20
      $region19: #{inverted_residual.1} parent=11 // pred_region
        _
      $region20: #{inverted_residual.1} parent=11 // pred_fallthru
        _
      // Predicated region
      $region21: #{inverted_residual.1} parent=11 // pred_check
        %p292 = pneg %p117
      $region22: #{inverted_residual.1} parent=11 // pred_check_branch
        %294 = sbr.rel (%p292) target = $region24
      $region23: #{inverted_residual.1} parent=11 // pred_region
        _
      $region24: #{inverted_residual.1} parent=11 // pred_fallthru
        _
      // Predicated region
      $region25: #{inverted_residual.1} parent=11 // pred_check
        %p295 = pneg %p138
      $region26: #{inverted_residual.1} parent=11 // pred_check_branch
        %297 = sbr.rel (%p295) target = $region28
      $region27: #{inverted_residual.1} parent=11 // pred_region
        _
      $region28: #{inverted_residual.1} parent=11 // pred_fallthru
        _
      // Predicated region
      $region29: #{inverted_residual.1} parent=11 // pred_check
        %p298 = pneg %p159
      $region30: #{inverted_residual.1} parent=11 // pred_check_branch
        %300 = sbr.rel (%p298) target = $region32
      $region31: #{inverted_residual.1} parent=11 // pred_region
        _
      $region32: #{inverted_residual.1} parent=11 // pred_fallthru
        _
      // Predicated region
      $region33: #{inverted_residual.1} parent=11 // pred_check
        %p301 = pneg %p180
      $region34: #{inverted_residual.1} parent=11 // pred_check_branch
        %303 = sbr.rel (%p301) target = $region36
      $region35: #{inverted_residual.1} parent=11 // pred_region
        _
      $region36: #{inverted_residual.1} parent=11 // pred_fallthru
        _
      // Predicated region
      $region37: #{inverted_residual.1} parent=11 // pred_check
        %p304 = pneg %p201
      $region38: #{inverted_residual.1} parent=11 // pred_check_branch
        %306 = sbr.rel (%p304) target = $region40
      $region39: #{inverted_residual.1} parent=11 // pred_region
        _
      $region40: #{inverted_residual.1} parent=11 // pred_fallthru
        _
      // Predicated region
      $region41: #{inverted_residual.1} parent=11 // pred_check
        %p307 = pneg %p222
      $region42: #{inverted_residual.1} parent=11 // pred_check_branch
        %309 = sbr.rel (%p307) target = $region44
      $region43: #{inverted_residual.1} parent=11 // pred_region
        _
      $region44: #{inverted_residual.1} parent=11 // pred_fallthru
        _
      // Predicated region
      $region45: #{inverted_residual.1} parent=11 // pred_check
        %p310 = pneg %p243
      $region46: #{inverted_residual.1} parent=11 // pred_check_branch
        %312 = sbr.rel (%p310) target = $region48
      $region47: #{inverted_residual.1} parent=11 // pred_region
        _
      $region48: #{inverted_residual.1} parent=11 // pred_fallthru
        _
    $region12: #{inverted_residual.1} parent=5 // pred_fallthru
      _
    %p313 = scmp.lt.s32.totalorder %s16, 4
    // Predicated region
    $region49: #{inverted_residual.1} parent=5 // pred_check
      %p314 = pneg %p313
    $region50: #{inverted_residual.1} parent=5 // pred_check_branch
      %316 = sbr.rel (%p314) target = $region52
    $region51: #{inverted_residual.1} parent=5 // pred_region
      // Predicated region
      $region53: #{inverted_residual.1} parent=51 // pred_check
        %p317 = pneg %p48
      $region54: #{inverted_residual.1} parent=51 // pred_check_branch
        %319 = sbr.rel (%p317) target = $region56
      $region55: #{inverted_residual.1} parent=51 // pred_region
        %p320 = scmp.lt.s32.totalorder %s23, 1
        %s321 = scalar_select %p320, %s23, 1
        %s322 = smul.addr %s321, 54
        %s323 = smul.addr %s322, 8
        %s324 = scalar_lea.vmem %s0, %s323
      $region56: #{inverted_residual.1} parent=51 // pred_fallthru
        _
    $region52: #{inverted_residual.1} parent=5 // pred_fallthru
      _
    %p325 = scmp.le.s32.totalorder 1, %s16
    %p326 = scmp.lt.s32.totalorder %s16, 5
    %p327 = pnand %p325, %p326
    %p328 = pneg %p327
    // Predicated region
    $region57: #{inverted_residual.1} parent=5 // pred_check
      _
    $region58: #{inverted_residual.1} parent=5 // pred_check_branch
      %330 = sbr.rel (%p327) target = $region60
    $region59: #{inverted_residual.1} parent=5 // pred_region
      %s331 = ssub.s32 %s16, 1
      %p332 = scmp.lt.s32.totalorder %s25, 1
      %s333 = scalar_select %p332, %s25, 1
      %s334 = smul.addr %s333, 54
      %s335 = smul.addr %s334, 8
      %s336 = scalar_lea.vmem %s0, %s335
      %p337 = pneg %p54
      %p338 = pneg %p51
      %p339 = pneg %p75
      %p340 = pneg %p72
      %p341 = pneg %p96
      %p342 = pneg %p93
      %p343 = pneg %p117
      %p344 = pneg %p114
      %p345 = pneg %p138
      %p346 = pneg %p135
      %p347 = pneg %p159
      %p348 = pneg %p156
      %p349 = pneg %p180
      %p350 = pneg %p177
      %p351 = pneg %p201
      %p352 = pneg %p198
      %p353 = pneg %p222
      %p354 = pneg %p219
      %p355 = pneg %p243
      %p356 = pneg %p240
      %p357 = pneg %p271
      %p358 = pneg %p268
      %s359 = smul.u32 8, %s26
      %p360 = scmp.lt.s32.totalorder %s25, 1
      %s361 = scalar_select %p360, %s25, 1
      %p362 = scmp.lt.s32.totalorder %s359, 15
      %s363 = scalar_select %p362, %s359, 15
      %s364 = smul.addr %s363, 2
      %s365 = smul.addr %s361, 32
      %s366 = sadd.s32 %s364, %s365
      %s367 = smul.addr %s366, 8
      %s368 = scalar_lea.vmem %s10, %s367
      %p369 = scmp.lt.s32.totalorder %s25, 1
      %s370 = scalar_select %p369, %s25, 1
      %s371 = smul.addr %s370, 54
      %s372 = smul.addr %s371, 8
      %s373 = scalar_lea.vmem %s0, %s372
      %s374 = smul.u32 8, %s26
      %p375 = scmp.lt.s32.totalorder %s25, 1
      %s376 = scalar_select %p375, %s25, 1
      %p377 = scmp.lt.s32.totalorder %s374, 15
      %s378 = scalar_select %p377, %s374, 15
      %s379 = smul.addr %s378, 2
      %s380 = smul.addr %s376, 32
      %s381 = sadd.s32 %s379, %s380
      %s382 = smul.addr %s381, 8
      %s383 = scalar_lea.vmem %s10, %s382
      %s384 = smul.u32 8, %s26
      %s386 = smul.u32 %s26, 8
      %s387 = smul.u32 %s386, 24
      %s388 = scalar_lea.vmem %s373, %s387
      %v389 = vld [vmem:[%s388] sm:$0xff]
      %v390 = vld [vmem:[%s388 + $0x8] sm:$0xff]
      %v391 = vld [vmem:[%s388 + $0x10] sm:$0x3]
      %v392 = vld [vmem:[%s388 + $0x18] sm:$0xff]
      %v393 = vld [vmem:[%s388 + $0x20] sm:$0xff]
      %v394 = vld [vmem:[%s388 + $0x28] sm:$0x3]
      %v395 = vld [vmem:[%s388 + $0x30] sm:$0xff]
      %v396 = vld [vmem:[%s388 + $0x38] sm:$0xff]
      %v397 = vld [vmem:[%s388 + $0x40] sm:$0x3]
      %v398 = vld [vmem:[%s388 + $0x48] sm:$0xff]
      %v399 = vld [vmem:[%s388 + $0x50] sm:$0xff]
      %v400 = vld [vmem:[%s388 + $0x58] sm:$0x3]
      %v401 = vld [vmem:[%s388 + $0x60] sm:$0xff]
      %v402 = vld [vmem:[%s388 + $0x68] sm:$0xff]
      %v403 = vld [vmem:[%s388 + $0x70] sm:$0x3]
      %v404 = vld [vmem:[%s388 + $0x78] sm:$0xff]
      %v405 = vld [vmem:[%s388 + $0x80] sm:$0xff]
      %v406 = vld [vmem:[%s388 + $0x88] sm:$0x3]
      %v407 = vld [vmem:[%s388 + $0x90] sm:$0xff]
      %v408 = vld [vmem:[%s388 + $0x98] sm:$0xff]
      %v409 = vld [vmem:[%s388 + $0xa0] sm:$0x3]
      %v410 = vld [vmem:[%s388 + $0xa8] sm:$0xff]
      %v411 = vld [vmem:[%s388 + $0xb0] sm:$0xff]
      %v412 = vld [vmem:[%s388 + $0xb8] sm:$0x3]
      %v413 = vld [vmem:[%s388 + $0xc0] sm:$0xff]
      %v414 = vld [vmem:[%s388 + $0xc8] sm:$0xff]
      %v415 = vld [vmem:[%s388 + $0xd0] sm:$0x3]
      %v416 = vld [vmem:[%s388 + $0xd8] sm:$0xff]
      %v417 = vld [vmem:[%s388 + $0xe0] sm:$0xff]
      %v418 = vld [vmem:[%s388 + $0xe8] sm:$0x3]
      %v449 = vcombine.high %v389, %v389
      %v451 = vunpack.c.l.s4 1983009808
      %v452 = vunpack.c.0.s8 %v451
      %v453 = vlaneseq
      %v454 = vshrl.u32 %v453, 7
      %v455 = vsub.s32 %v452, %v454
      %v456 = vrot.slane %v389, %v455
      %v458 = vunpack.c.l.s4 1983009808
      %v459 = vunpack.c.0.s8 %v458
      %v460 = vlaneseq
      %v461 = vshrl.u32 %v460, 7
      %v462 = vsub.s32 %v459, %v461
      %v463 = vrot.slane %v449, %v462
      %v464 = vcombine.high %v456, %v456
      %v465 = vcombine.high %v463, %v463
      %v466 = vcombine.high %v390, %v390
      %v468 = vunpack.c.l.s4 1983009808
      %v469 = vunpack.c.0.s8 %v468
      %v470 = vlaneseq
      %v471 = vshrl.u32 %v470, 7
      %v472 = vsub.s32 %v469, %v471
      %v473 = vrot.slane %v390, %v472
      %v475 = vunpack.c.l.s4 1983009808
      %v476 = vunpack.c.0.s8 %v475
      %v477 = vlaneseq
      %v478 = vshrl.u32 %v477, 7
      %v479 = vsub.s32 %v476, %v478
      %v480 = vrot.slane %v466, %v479
      %v481 = vcombine.high %v473, %v473
      %v482 = vcombine.high %v480, %v480
      %v484 = vunpack.c.l.s4 1983009808
      %v485 = vunpack.c.0.s8 %v484
      %v486 = vlaneseq
      %v487 = vshrl.u32 %v486, 7
      %v488 = vsub.s32 %v485, %v487
      %v489 = vrot.slane %v391, %v488
      %v490 = vcombine.high %v392, %v392
      %v492 = vunpack.c.l.s4 1983009808
      %v493 = vunpack.c.0.s8 %v492
      %v494 = vlaneseq
      %v495 = vshrl.u32 %v494, 7
      %v496 = vsub.s32 %v493, %v495
      %v497 = vrot.slane %v392, %v496
      %v499 = vunpack.c.l.s4 1983009808
      %v500 = vunpack.c.0.s8 %v499
      %v501 = vlaneseq
      %v502 = vshrl.u32 %v501, 7
      %v503 = vsub.s32 %v500, %v502
      %v504 = vrot.slane %v490, %v503
      %v505 = vcombine.high %v497, %v497
      %v506 = vcombine.high %v504, %v504
      %v507 = vcombine.high %v393, %v393
      %v509 = vunpack.c.l.s4 1983009808
      %v510 = vunpack.c.0.s8 %v509
      %v511 = vlaneseq
      %v512 = vshrl.u32 %v511, 7
      %v513 = vsub.s32 %v510, %v512
      %v514 = vrot.slane %v393, %v513
      %v516 = vunpack.c.l.s4 1983009808
      %v517 = vunpack.c.0.s8 %v516
      %v518 = vlaneseq
      %v519 = vshrl.u32 %v518, 7
      %v520 = vsub.s32 %v517, %v519
      %v521 = vrot.slane %v507, %v520
      %v522 = vcombine.high %v514, %v514
      %v523 = vcombine.high %v521, %v521
      %v525 = vunpack.c.l.s4 1983009808
      %v526 = vunpack.c.0.s8 %v525
      %v527 = vlaneseq
      %v528 = vshrl.u32 %v527, 7
      %v529 = vsub.s32 %v526, %v528
      %v530 = vrot.slane %v394, %v529
      %v531 = vcombine.high %v395, %v395
      %v533 = vunpack.c.l.s4 1983009808
      %v534 = vunpack.c.0.s8 %v533
      %v535 = vlaneseq
      %v536 = vshrl.u32 %v535, 7
      %v537 = vsub.s32 %v534, %v536
      %v538 = vrot.slane %v395, %v537
      %v540 = vunpack.c.l.s4 1983009808
      %v541 = vunpack.c.0.s8 %v540
      %v542 = vlaneseq
      %v543 = vshrl.u32 %v542, 7
      %v544 = vsub.s32 %v541, %v543
      %v545 = vrot.slane %v531, %v544
      %v546 = vcombine.high %v538, %v538
      %v547 = vcombine.high %v545, %v545
      %v548 = vcombine.high %v396, %v396
      %v550 = vunpack.c.l.s4 1983009808
      %v551 = vunpack.c.0.s8 %v550
      %v552 = vlaneseq
      %v553 = vshrl.u32 %v552, 7
      %v554 = vsub.s32 %v551, %v553
      %v555 = vrot.slane %v396, %v554
      %v557 = vunpack.c.l.s4 1983009808
      %v558 = vunpack.c.0.s8 %v557
      %v559 = vlaneseq
      %v560 = vshrl.u32 %v559, 7
      %v561 = vsub.s32 %v558, %v560
      %v562 = vrot.slane %v548, %v561
      %v563 = vcombine.high %v555, %v555
      %v564 = vcombine.high %v562, %v562
      %v566 = vunpack.c.l.s4 1983009808
      %v567 = vunpack.c.0.s8 %v566
      %v568 = vlaneseq
      %v569 = vshrl.u32 %v568, 7
      %v570 = vsub.s32 %v567, %v569
      %v571 = vrot.slane %v397, %v570
      %v572 = vcombine.high %v398, %v398
      %v574 = vunpack.c.l.s4 1983009808
      %v575 = vunpack.c.0.s8 %v574
      %v576 = vlaneseq
      %v577 = vshrl.u32 %v576, 7
      %v578 = vsub.s32 %v575, %v577
      %v579 = vrot.slane %v398, %v578
      %v581 = vunpack.c.l.s4 1983009808
      %v582 = vunpack.c.0.s8 %v581
      %v583 = vlaneseq
      %v584 = vshrl.u32 %v583, 7
      %v585 = vsub.s32 %v582, %v584
      %v586 = vrot.slane %v572, %v585
      %v587 = vcombine.high %v579, %v579
      %v588 = vcombine.high %v586, %v586
      %v589 = vcombine.high %v399, %v399
      %v591 = vunpack.c.l.s4 1983009808
      %v592 = vunpack.c.0.s8 %v591
      %v593 = vlaneseq
      %v594 = vshrl.u32 %v593, 7
      %v595 = vsub.s32 %v592, %v594
      %v596 = vrot.slane %v399, %v595
      %v598 = vunpack.c.l.s4 1983009808
      %v599 = vunpack.c.0.s8 %v598
      %v600 = vlaneseq
      %v601 = vshrl.u32 %v600, 7
      %v602 = vsub.s32 %v599, %v601
      %v603 = vrot.slane %v589, %v602
      %v604 = vcombine.high %v596, %v596
      %v605 = vcombine.high %v603, %v603
      %v607 = vunpack.c.l.s4 1983009808
      %v608 = vunpack.c.0.s8 %v607
      %v609 = vlaneseq
      %v610 = vshrl.u32 %v609, 7
      %v611 = vsub.s32 %v608, %v610
      %v612 = vrot.slane %v400, %v611
      %v613 = vcombine.high %v401, %v401
      %v615 = vunpack.c.l.s4 1983009808
      %v616 = vunpack.c.0.s8 %v615
      %v617 = vlaneseq
      %v618 = vshrl.u32 %v617, 7
      %v619 = vsub.s32 %v616, %v618
      %v620 = vrot.slane %v401, %v619
      %v622 = vunpack.c.l.s4 1983009808
      %v623 = vunpack.c.0.s8 %v622
      %v624 = vlaneseq
      %v625 = vshrl.u32 %v624, 7
      %v626 = vsub.s32 %v623, %v625
      %v627 = vrot.slane %v613, %v626
      %v628 = vcombine.high %v620, %v620
      %v629 = vcombine.high %v627, %v627
      %v630 = vcombine.high %v402, %v402
      %v632 = vunpack.c.l.s4 1983009808
      %v633 = vunpack.c.0.s8 %v632
      %v634 = vlaneseq
      %v635 = vshrl.u32 %v634, 7
      %v636 = vsub.s32 %v633, %v635
      %v637 = vrot.slane %v402, %v636
      %v639 = vunpack.c.l.s4 1983009808
      %v640 = vunpack.c.0.s8 %v639
      %v641 = vlaneseq
      %v642 = vshrl.u32 %v641, 7
      %v643 = vsub.s32 %v640, %v642
      %v644 = vrot.slane %v630, %v643
      %v645 = vcombine.high %v637, %v637
      %v646 = vcombine.high %v644, %v644
      %v648 = vunpack.c.l.s4 1983009808
      %v649 = vunpack.c.0.s8 %v648
      %v650 = vlaneseq
      %v651 = vshrl.u32 %v650, 7
      %v652 = vsub.s32 %v649, %v651
      %v653 = vrot.slane %v403, %v652
      %v654 = vcombine.high %v404, %v404
      %v656 = vunpack.c.l.s4 1983009808
      %v657 = vunpack.c.0.s8 %v656
      %v658 = vlaneseq
      %v659 = vshrl.u32 %v658, 7
      %v660 = vsub.s32 %v657, %v659
      %v661 = vrot.slane %v404, %v660
      %v663 = vunpack.c.l.s4 1983009808
      %v664 = vunpack.c.0.s8 %v663
      %v665 = vlaneseq
      %v666 = vshrl.u32 %v665, 7
      %v667 = vsub.s32 %v664, %v666
      %v668 = vrot.slane %v654, %v667
      %v669 = vcombine.high %v661, %v661
      %v670 = vcombine.high %v668, %v668
      %v671 = vcombine.high %v405, %v405
      %v673 = vunpack.c.l.s4 1983009808
      %v674 = vunpack.c.0.s8 %v673
      %v675 = vlaneseq
      %v676 = vshrl.u32 %v675, 7
      %v677 = vsub.s32 %v674, %v676
      %v678 = vrot.slane %v405, %v677
      %v680 = vunpack.c.l.s4 1983009808
      %v681 = vunpack.c.0.s8 %v680
      %v682 = vlaneseq
      %v683 = vshrl.u32 %v682, 7
      %v684 = vsub.s32 %v681, %v683
      %v685 = vrot.slane %v671, %v684
      %v686 = vcombine.high %v678, %v678
      %v687 = vcombine.high %v685, %v685
      %v689 = vunpack.c.l.s4 1983009808
      %v690 = vunpack.c.0.s8 %v689
      %v691 = vlaneseq
      %v692 = vshrl.u32 %v691, 7
      %v693 = vsub.s32 %v690, %v692
      %v694 = vrot.slane %v406, %v693
      %v695 = vcombine.high %v407, %v407
      %v697 = vunpack.c.l.s4 1983009808
      %v698 = vunpack.c.0.s8 %v697
      %v699 = vlaneseq
      %v700 = vshrl.u32 %v699, 7
      %v701 = vsub.s32 %v698, %v700
      %v702 = vrot.slane %v407, %v701
      %v704 = vunpack.c.l.s4 1983009808
      %v705 = vunpack.c.0.s8 %v704
      %v706 = vlaneseq
      %v707 = vshrl.u32 %v706, 7
      %v708 = vsub.s32 %v705, %v707
      %v709 = vrot.slane %v695, %v708
      %v710 = vcombine.high %v702, %v702
      %v711 = vcombine.high %v709, %v709
      %v712 = vcombine.high %v408, %v408
      %v714 = vunpack.c.l.s4 1983009808
      %v715 = vunpack.c.0.s8 %v714
      %v716 = vlaneseq
      %v717 = vshrl.u32 %v716, 7
      %v718 = vsub.s32 %v715, %v717
      %v719 = vrot.slane %v408, %v718
      %v721 = vunpack.c.l.s4 1983009808
      %v722 = vunpack.c.0.s8 %v721
      %v723 = vlaneseq
      %v724 = vshrl.u32 %v723, 7
      %v725 = vsub.s32 %v722, %v724
      %v726 = vrot.slane %v712, %v725
      %v727 = vcombine.high %v719, %v719
      %v728 = vcombine.high %v726, %v726
      %v730 = vunpack.c.l.s4 1983009808
      %v731 = vunpack.c.0.s8 %v730
      %v732 = vlaneseq
      %v733 = vshrl.u32 %v732, 7
      %v734 = vsub.s32 %v731, %v733
      %v735 = vrot.slane %v409, %v734
      %v736 = vcombine.high %v410, %v410
      %v738 = vunpack.c.l.s4 1983009808
      %v739 = vunpack.c.0.s8 %v738
      %v740 = vlaneseq
      %v741 = vshrl.u32 %v740, 7
      %v742 = vsub.s32 %v739, %v741
      %v743 = vrot.slane %v410, %v742
      %v745 = vunpack.c.l.s4 1983009808
      %v746 = vunpack.c.0.s8 %v745
      %v747 = vlaneseq
      %v748 = vshrl.u32 %v747, 7
      %v749 = vsub.s32 %v746, %v748
      %v750 = vrot.slane %v736, %v749
      %v751 = vcombine.high %v743, %v743
      %v752 = vcombine.high %v750, %v750
      %v753 = vcombine.high %v411, %v411
      %v755 = vunpack.c.l.s4 1983009808
      %v756 = vunpack.c.0.s8 %v755
      %v757 = vlaneseq
      %v758 = vshrl.u32 %v757, 7
      %v759 = vsub.s32 %v756, %v758
      %v760 = vrot.slane %v411, %v759
      %v762 = vunpack.c.l.s4 1983009808
      %v763 = vunpack.c.0.s8 %v762
      %v764 = vlaneseq
      %v765 = vshrl.u32 %v764, 7
      %v766 = vsub.s32 %v763, %v765
      %v767 = vrot.slane %v753, %v766
      %v768 = vcombine.high %v760, %v760
      %v769 = vcombine.high %v767, %v767
      %v771 = vunpack.c.l.s4 1983009808
      %v772 = vunpack.c.0.s8 %v771
      %v773 = vlaneseq
      %v774 = vshrl.u32 %v773, 7
      %v775 = vsub.s32 %v772, %v774
      %v776 = vrot.slane %v412, %v775
      %v777 = vcombine.high %v413, %v413
      %v779 = vunpack.c.l.s4 1983009808
      %v780 = vunpack.c.0.s8 %v779
      %v781 = vlaneseq
      %v782 = vshrl.u32 %v781, 7
      %v783 = vsub.s32 %v780, %v782
      %v784 = vrot.slane %v413, %v783
      %v786 = vunpack.c.l.s4 1983009808
      %v787 = vunpack.c.0.s8 %v786
      %v788 = vlaneseq
      %v789 = vshrl.u32 %v788, 7
      %v790 = vsub.s32 %v787, %v789
      %v791 = vrot.slane %v777, %v790
      %v792 = vcombine.high %v784, %v784
      %v793 = vcombine.high %v791, %v791
      %v794 = vcombine.high %v414, %v414
      %v796 = vunpack.c.l.s4 1983009808
      %v797 = vunpack.c.0.s8 %v796
      %v798 = vlaneseq
      %v799 = vshrl.u32 %v798, 7
      %v800 = vsub.s32 %v797, %v799
      %v801 = vrot.slane %v414, %v800
      %v803 = vunpack.c.l.s4 1983009808
      %v804 = vunpack.c.0.s8 %v803
      %v805 = vlaneseq
      %v806 = vshrl.u32 %v805, 7
      %v807 = vsub.s32 %v804, %v806
      %v808 = vrot.slane %v794, %v807
      %v809 = vcombine.high %v801, %v801
      %v810 = vcombine.high %v808, %v808
      %v812 = vunpack.c.l.s4 1983009808
      %v813 = vunpack.c.0.s8 %v812
      %v814 = vlaneseq
      %v815 = vshrl.u32 %v814, 7
      %v816 = vsub.s32 %v813, %v815
      %v817 = vrot.slane %v415, %v816
      %v818 = vcombine.high %v416, %v416
      %v820 = vunpack.c.l.s4 1983009808
      %v821 = vunpack.c.0.s8 %v820
      %v822 = vlaneseq
      %v823 = vshrl.u32 %v822, 7
      %v824 = vsub.s32 %v821, %v823
      %v825 = vrot.slane %v416, %v824
      %v827 = vunpack.c.l.s4 1983009808
      %v828 = vunpack.c.0.s8 %v827
      %v829 = vlaneseq
      %v830 = vshrl.u32 %v829, 7
      %v831 = vsub.s32 %v828, %v830
      %v832 = vrot.slane %v818, %v831
      %v833 = vcombine.high %v825, %v825
      %v834 = vcombine.high %v832, %v832
      %v835 = vcombine.high %v417, %v417
      %v837 = vunpack.c.l.s4 1983009808
      %v838 = vunpack.c.0.s8 %v837
      %v839 = vlaneseq
      %v840 = vshrl.u32 %v839, 7
      %v841 = vsub.s32 %v838, %v840
      %v842 = vrot.slane %v417, %v841
      %v844 = vunpack.c.l.s4 1983009808
      %v845 = vunpack.c.0.s8 %v844
      %v846 = vlaneseq
      %v847 = vshrl.u32 %v846, 7
      %v848 = vsub.s32 %v845, %v847
      %v849 = vrot.slane %v835, %v848
      %v850 = vcombine.high %v842, %v842
      %v851 = vcombine.high %v849, %v849
      %v853 = vunpack.c.l.s4 1983009808
      %v854 = vunpack.c.0.s8 %v853
      %v855 = vlaneseq
      %v856 = vshrl.u32 %v855, 7
      %v857 = vsub.s32 %v854, %v856
      %v858 = vrot.slane %v418, %v857
      %v859 = vcombine.low %v456, %v464
      %v860 = vcombine.low %v463, %v465
      %v862 = vunpack.c.l.s4 1983009808
      %v863 = vunpack.c.0.s8 %v862
      %v864 = vlaneseq
      %v865 = vshrl.u32 %v864, 7
      %v866 = vsub.s32 %v863, %v865
      %v867 = vrot.slane %v859, %v866
      %v869 = vunpack.c.l.s4 1983009808
      %v870 = vunpack.c.0.s8 %v869
      %v871 = vlaneseq
      %v872 = vshrl.u32 %v871, 7
      %v873 = vsub.s32 %v870, %v872
      %v874 = vrot.slane %v860, %v873
      %v875 = vcombine.low %v867, %v874
      %v876 = vcombine.low %v473, %v481
      %v877 = vcombine.low %v480, %v482
      %v879 = vunpack.c.l.s4 1983009808
      %v880 = vunpack.c.0.s8 %v879
      %v881 = vlaneseq
      %v882 = vshrl.u32 %v881, 7
      %v883 = vsub.s32 %v880, %v882
      %v884 = vrot.slane %v876, %v883
      %v886 = vunpack.c.l.s4 1983009808
      %v887 = vunpack.c.0.s8 %v886
      %v888 = vlaneseq
      %v889 = vshrl.u32 %v888, 7
      %v890 = vsub.s32 %v887, %v889
      %v891 = vrot.slane %v877, %v890
      %v892 = vcombine.low %v884, %v891
      %v893 = vcombine.low %v489, %v497
      %v894 = vcombine.low %v505, %v504
      %v896 = vunpack.c.l.s4 1983009808
      %v897 = vunpack.c.0.s8 %v896
      %v898 = vlaneseq
      %v899 = vshrl.u32 %v898, 7
      %v900 = vsub.s32 %v897, %v899
      %v901 = vrot.slane %v893, %v900
      %v903 = vunpack.c.l.s4 1983009808
      %v904 = vunpack.c.0.s8 %v903
      %v905 = vlaneseq
      %v906 = vshrl.u32 %v905, 7
      %v907 = vsub.s32 %v904, %v906
      %v908 = vrot.slane %v894, %v907
      %v909 = vcombine.low %v901, %v908
      %v910 = vcombine.low %v506, %v514
      %v911 = vcombine.low %v522, %v521
      %v913 = vunpack.c.l.s4 1983009808
      %v914 = vunpack.c.0.s8 %v913
      %v915 = vlaneseq
      %v916 = vshrl.u32 %v915, 7
      %v917 = vsub.s32 %v914, %v916
      %v918 = vrot.slane %v910, %v917
      %v920 = vunpack.c.l.s4 1983009808
      %v921 = vunpack.c.0.s8 %v920
      %v922 = vlaneseq
      %v923 = vshrl.u32 %v922, 7
      %v924 = vsub.s32 %v921, %v923
      %v925 = vrot.slane %v911, %v924
      %v926 = vcombine.low %v918, %v925
      %v927 = vcombine.low %v523, %v530
      %v928 = vcombine.low %v538, %v546
      %v930 = vunpack.c.l.s4 1983009808
      %v931 = vunpack.c.0.s8 %v930
      %v932 = vlaneseq
      %v933 = vshrl.u32 %v932, 7
      %v934 = vsub.s32 %v931, %v933
      %v935 = vrot.slane %v927, %v934
      %v937 = vunpack.c.l.s4 1983009808
      %v938 = vunpack.c.0.s8 %v937
      %v939 = vlaneseq
      %v940 = vshrl.u32 %v939, 7
      %v941 = vsub.s32 %v938, %v940
      %v942 = vrot.slane %v928, %v941
      %v943 = vcombine.low %v935, %v942
      %v944 = vcombine.low %v545, %v547
      %v945 = vcombine.low %v555, %v563
      %v947 = vunpack.c.l.s4 1983009808
      %v948 = vunpack.c.0.s8 %v947
      %v949 = vlaneseq
      %v950 = vshrl.u32 %v949, 7
      %v951 = vsub.s32 %v948, %v950
      %v952 = vrot.slane %v944, %v951
      %v954 = vunpack.c.l.s4 1983009808
      %v955 = vunpack.c.0.s8 %v954
      %v956 = vlaneseq
      %v957 = vshrl.u32 %v956, 7
      %v958 = vsub.s32 %v955, %v957
      %v959 = vrot.slane %v945, %v958
      %v960 = vcombine.low %v952, %v959
      %v961 = vcombine.low %v562, %v564
      %v962 = vcombine.low %v571, %v579
      %v964 = vunpack.c.l.s4 1983009808
      %v965 = vunpack.c.0.s8 %v964
      %v966 = vlaneseq
      %v967 = vshrl.u32 %v966, 7
      %v968 = vsub.s32 %v965, %v967
      %v969 = vrot.slane %v961, %v968
      %v971 = vunpack.c.l.s4 1983009808
      %v972 = vunpack.c.0.s8 %v971
      %v973 = vlaneseq
      %v974 = vshrl.u32 %v973, 7
      %v975 = vsub.s32 %v972, %v974
      %v976 = vrot.slane %v962, %v975
      %v977 = vcombine.low %v969, %v976
      %v978 = vcombine.low %v587, %v586
      %v979 = vcombine.low %v588, %v596
      %v981 = vunpack.c.l.s4 1983009808
      %v982 = vunpack.c.0.s8 %v981
      %v983 = vlaneseq
      %v984 = vshrl.u32 %v983, 7
      %v985 = vsub.s32 %v982, %v984
      %v986 = vrot.slane %v978, %v985
      %v988 = vunpack.c.l.s4 1983009808
      %v989 = vunpack.c.0.s8 %v988
      %v990 = vlaneseq
      %v991 = vshrl.u32 %v990, 7
      %v992 = vsub.s32 %v989, %v991
      %v993 = vrot.slane %v979, %v992
      %v994 = vcombine.low %v986, %v993
      %v995 = vcombine.low %v604, %v603
      %v996 = vcombine.low %v605, %v612
      %v998 = vunpack.c.l.s4 1983009808
      %v999 = vunpack.c.0.s8 %v998
      %v1000 = vlaneseq
      %v1001 = vshrl.u32 %v1000, 7
      %v1002 = vsub.s32 %v999, %v1001
      %v1003 = vrot.slane %v995, %v1002
      %v1005 = vunpack.c.l.s4 1983009808
      %v1006 = vunpack.c.0.s8 %v1005
      %v1007 = vlaneseq
      %v1008 = vshrl.u32 %v1007, 7
      %v1009 = vsub.s32 %v1006, %v1008
      %v1010 = vrot.slane %v996, %v1009
      %v1011 = vcombine.low %v1003, %v1010
      %v1012 = vcombine.low %v620, %v628
      %v1013 = vcombine.low %v627, %v629
      %v1015 = vunpack.c.l.s4 1983009808
      %v1016 = vunpack.c.0.s8 %v1015
      %v1017 = vlaneseq
      %v1018 = vshrl.u32 %v1017, 7
      %v1019 = vsub.s32 %v1016, %v1018
      %v1020 = vrot.slane %v1012, %v1019
      %v1022 = vunpack.c.l.s4 1983009808
      %v1023 = vunpack.c.0.s8 %v1022
      %v1024 = vlaneseq
      %v1025 = vshrl.u32 %v1024, 7
      %v1026 = vsub.s32 %v1023, %v1025
      %v1027 = vrot.slane %v1013, %v1026
      %v1028 = vcombine.low %v1020, %v1027
      %v1029 = vcombine.low %v637, %v645
      %v1030 = vcombine.low %v644, %v646
      %v1032 = vunpack.c.l.s4 1983009808
      %v1033 = vunpack.c.0.s8 %v1032
      %v1034 = vlaneseq
      %v1035 = vshrl.u32 %v1034, 7
      %v1036 = vsub.s32 %v1033, %v1035
      %v1037 = vrot.slane %v1029, %v1036
      %v1039 = vunpack.c.l.s4 1983009808
      %v1040 = vunpack.c.0.s8 %v1039
      %v1041 = vlaneseq
      %v1042 = vshrl.u32 %v1041, 7
      %v1043 = vsub.s32 %v1040, %v1042
      %v1044 = vrot.slane %v1030, %v1043
      %v1045 = vcombine.low %v1037, %v1044
      %v1046 = vcombine.low %v653, %v661
      %v1047 = vcombine.low %v669, %v668
      %v1049 = vunpack.c.l.s4 1983009808
      %v1050 = vunpack.c.0.s8 %v1049
      %v1051 = vlaneseq
      %v1052 = vshrl.u32 %v1051, 7
      %v1053 = vsub.s32 %v1050, %v1052
      %v1054 = vrot.slane %v1046, %v1053
      %v1056 = vunpack.c.l.s4 1983009808
      %v1057 = vunpack.c.0.s8 %v1056
      %v1058 = vlaneseq
      %v1059 = vshrl.u32 %v1058, 7
      %v1060 = vsub.s32 %v1057, %v1059
      %v1061 = vrot.slane %v1047, %v1060
      %v1062 = vcombine.low %v1054, %v1061
      %v1063 = vcombine.low %v670, %v678
      %v1064 = vcombine.low %v686, %v685
      %v1066 = vunpack.c.l.s4 1983009808
      %v1067 = vunpack.c.0.s8 %v1066
      %v1068 = vlaneseq
      %v1069 = vshrl.u32 %v1068, 7
      %v1070 = vsub.s32 %v1067, %v1069
      %v1071 = vrot.slane %v1063, %v1070
      %v1073 = vunpack.c.l.s4 1983009808
      %v1074 = vunpack.c.0.s8 %v1073
      %v1075 = vlaneseq
      %v1076 = vshrl.u32 %v1075, 7
      %v1077 = vsub.s32 %v1074, %v1076
      %v1078 = vrot.slane %v1064, %v1077
      %v1079 = vcombine.low %v1071, %v1078
      %v1080 = vcombine.low %v687, %v694
      %v1081 = vcombine.low %v702, %v710
      %v1083 = vunpack.c.l.s4 1983009808
      %v1084 = vunpack.c.0.s8 %v1083
      %v1085 = vlaneseq
      %v1086 = vshrl.u32 %v1085, 7
      %v1087 = vsub.s32 %v1084, %v1086
      %v1088 = vrot.slane %v1080, %v1087
      %v1090 = vunpack.c.l.s4 1983009808
      %v1091 = vunpack.c.0.s8 %v1090
      %v1092 = vlaneseq
      %v1093 = vshrl.u32 %v1092, 7
      %v1094 = vsub.s32 %v1091, %v1093
      %v1095 = vrot.slane %v1081, %v1094
      %v1096 = vcombine.low %v1088, %v1095
      %v1097 = vcombine.low %v709, %v711
      %v1098 = vcombine.low %v719, %v727
      %v1100 = vunpack.c.l.s4 1983009808
      %v1101 = vunpack.c.0.s8 %v1100
      %v1102 = vlaneseq
      %v1103 = vshrl.u32 %v1102, 7
      %v1104 = vsub.s32 %v1101, %v1103
      %v1105 = vrot.slane %v1097, %v1104
      %v1107 = vunpack.c.l.s4 1983009808
      %v1108 = vunpack.c.0.s8 %v1107
      %v1109 = vlaneseq
      %v1110 = vshrl.u32 %v1109, 7
      %v1111 = vsub.s32 %v1108, %v1110
      %v1112 = vrot.slane %v1098, %v1111
      %v1113 = vcombine.low %v1105, %v1112
      %v1114 = vcombine.low %v726, %v728
      %v1115 = vcombine.low %v735, %v743
      %v1117 = vunpack.c.l.s4 1983009808
      %v1118 = vunpack.c.0.s8 %v1117
      %v1119 = vlaneseq
      %v1120 = vshrl.u32 %v1119, 7
      %v1121 = vsub.s32 %v1118, %v1120
      %v1122 = vrot.slane %v1114, %v1121
      %v1124 = vunpack.c.l.s4 1983009808
      %v1125 = vunpack.c.0.s8 %v1124
      %v1126 = vlaneseq
      %v1127 = vshrl.u32 %v1126, 7
      %v1128 = vsub.s32 %v1125, %v1127
      %v1129 = vrot.slane %v1115, %v1128
      %v1130 = vcombine.low %v1122, %v1129
      %v1131 = vcombine.low %v751, %v750
      %v1132 = vcombine.low %v752, %v760
      %v1134 = vunpack.c.l.s4 1983009808
      %v1135 = vunpack.c.0.s8 %v1134
      %v1136 = vlaneseq
      %v1137 = vshrl.u32 %v1136, 7
      %v1138 = vsub.s32 %v1135, %v1137
      %v1139 = vrot.slane %v1131, %v1138
      %v1141 = vunpack.c.l.s4 1983009808
      %v1142 = vunpack.c.0.s8 %v1141
      %v1143 = vlaneseq
      %v1144 = vshrl.u32 %v1143, 7
      %v1145 = vsub.s32 %v1142, %v1144
      %v1146 = vrot.slane %v1132, %v1145
      %v1147 = vcombine.low %v1139, %v1146
      %v1148 = vcombine.low %v768, %v767
      %v1149 = vcombine.low %v769, %v776
      %v1151 = vunpack.c.l.s4 1983009808
      %v1152 = vunpack.c.0.s8 %v1151
      %v1153 = vlaneseq
      %v1154 = vshrl.u32 %v1153, 7
      %v1155 = vsub.s32 %v1152, %v1154
      %v1156 = vrot.slane %v1148, %v1155
      %v1158 = vunpack.c.l.s4 1983009808
      %v1159 = vunpack.c.0.s8 %v1158
      %v1160 = vlaneseq
      %v1161 = vshrl.u32 %v1160, 7
      %v1162 = vsub.s32 %v1159, %v1161
      %v1163 = vrot.slane %v1149, %v1162
      %v1164 = vcombine.low %v1156, %v1163
      %v1165 = vcombine.low %v784, %v792
      %v1166 = vcombine.low %v791, %v793
      %v1168 = vunpack.c.l.s4 1983009808
      %v1169 = vunpack.c.0.s8 %v1168
      %v1170 = vlaneseq
      %v1171 = vshrl.u32 %v1170, 7
      %v1172 = vsub.s32 %v1169, %v1171
      %v1173 = vrot.slane %v1165, %v1172
      %v1175 = vunpack.c.l.s4 1983009808
      %v1176 = vunpack.c.0.s8 %v1175
      %v1177 = vlaneseq
      %v1178 = vshrl.u32 %v1177, 7
      %v1179 = vsub.s32 %v1176, %v1178
      %v1180 = vrot.slane %v1166, %v1179
      %v1181 = vcombine.low %v1173, %v1180
      %v1182 = vcombine.low %v801, %v809
      %v1183 = vcombine.low %v808, %v810
      %v1185 = vunpack.c.l.s4 1983009808
      %v1186 = vunpack.c.0.s8 %v1185
      %v1187 = vlaneseq
      %v1188 = vshrl.u32 %v1187, 7
      %v1189 = vsub.s32 %v1186, %v1188
      %v1190 = vrot.slane %v1182, %v1189
      %v1192 = vunpack.c.l.s4 1983009808
      %v1193 = vunpack.c.0.s8 %v1192
      %v1194 = vlaneseq
      %v1195 = vshrl.u32 %v1194, 7
      %v1196 = vsub.s32 %v1193, %v1195
      %v1197 = vrot.slane %v1183, %v1196
      %v1198 = vcombine.low %v1190, %v1197
      %v1199 = vcombine.low %v817, %v825
      %v1200 = vcombine.low %v833, %v832
      %v1202 = vunpack.c.l.s4 1983009808
      %v1203 = vunpack.c.0.s8 %v1202
      %v1204 = vlaneseq
      %v1205 = vshrl.u32 %v1204, 7
      %v1206 = vsub.s32 %v1203, %v1205
      %v1207 = vrot.slane %v1199, %v1206
      %v1209 = vunpack.c.l.s4 1983009808
      %v1210 = vunpack.c.0.s8 %v1209
      %v1211 = vlaneseq
      %v1212 = vshrl.u32 %v1211, 7
      %v1213 = vsub.s32 %v1210, %v1212
      %v1214 = vrot.slane %v1200, %v1213
      %v1215 = vcombine.low %v1207, %v1214
      %v1216 = vcombine.low %v834, %v842
      %v1217 = vcombine.low %v850, %v849
      %v1219 = vunpack.c.l.s4 1983009808
      %v1220 = vunpack.c.0.s8 %v1219
      %v1221 = vlaneseq
      %v1222 = vshrl.u32 %v1221, 7
      %v1223 = vsub.s32 %v1220, %v1222
      %v1224 = vrot.slane %v1216, %v1223
      %v1226 = vunpack.c.l.s4 1983009808
      %v1227 = vunpack.c.0.s8 %v1226
      %v1228 = vlaneseq
      %v1229 = vshrl.u32 %v1228, 7
      %v1230 = vsub.s32 %v1227, %v1229
      %v1231 = vrot.slane %v1217, %v1230
      %v1232 = vcombine.low %v1224, %v1231
      %v1233 = vcombine.low %v851, %v858
      %v1235 = vunpack.c.l.s4 1983009808
      %v1236 = vunpack.c.0.s8 %v1235
      %v1237 = vlaneseq
      %v1238 = vshrl.u32 %v1237, 7
      %v1239 = vsub.s32 %v1236, %v1238
      %v1240 = vrot.slane %v1233, %v1239
      %v1264 = vpack.c.bf16 %v892, %v875
      %v1265 = vpack.c.bf16 %v926, %v909
      %v1266 = vpack.c.bf16 %v960, %v943
      %v1267 = vpack.c.bf16 %v994, %v977
      %v1268 = vpack.c.bf16 %v1028, %v1011
      %v1269 = vpack.c.bf16 %v1062, %v1045
      %v1270 = vpack.c.bf16 %v1096, %v1079
      %v1271 = vpack.c.bf16 %v1130, %v1113
      %v1272 = vpack.c.bf16 %v1164, %v1147
      %v1273 = vpack.c.bf16 %v1198, %v1181
      %v1274 = vpack.c.bf16 %v1232, %v1215
      %v1275 = vpack.c.bf16 %v1240, %v1240
      %v1276 = vld [vmem:[%s1] sm:$0x3]
      %vm1277 = vcmask 31744
      %v1279 = vsel %vm1277, %v1264, 0
      %v1282 = vsel %vm1277, %v1265, 0
      %v1285 = vsel %vm1277, %v1266, 0
      %v1288 = vsel %vm1277, %v1267, 0
      %v1291 = vsel %vm1277, %v1268, 0
      %v1294 = vsel %vm1277, %v1269, 0
      %v1297 = vsel %vm1277, %v1270, 0
      %v1300 = vsel %vm1277, %v1271, 0
      %v1303 = vsel %vm1277, %v1272, 0
      %v1306 = vsel %vm1277, %v1273, 0
      %v1309 = vsel %vm1277, %v1274, 0
      %v1312 = vsel %vm1277, %v1275, 0
      %vm1314 = vcmask 1041408
      %v1316 = vsel %vm1314, %v1276, 0
      %1318 = vmatprep.subr.bf16.mxu0 0
      %1319 = vmatpush1.bf16.msra.mxu0 %v1316
      %1320 = vmatprep.subr.bf16.mxu0 0
      %1321 = vmatpush1.bf16.msra.mxu0 0
      %1322 = vmatprep.subr.bf16.mxu0 0
      %1323 = vmatpush1.bf16.msra.mxu0 0
      %1324 = vmatprep.subr.bf16.mxu0 0
      %1325 = vmatpush1.bf16.msra.mxu0 0
      %1326 = vmatprep.subr.bf16.mxu0 0
      %1327 = vmatpush1.bf16.msra.mxu0 0
      %1328 = vmatprep.subr.bf16.mxu0 0
      %1329 = vmatpush1.bf16.msra.mxu0 0
      %1330 = vmatprep.subr.bf16.mxu0 0
      %1331 = vmatpush1.bf16.msra.mxu0 0
      %1332 = vmatprep.subr.bf16.mxu0 0
      %1333 = vmatpush1.bf16.msra.mxu0 0
      %1334 = vmatprep.subr.bf16.mxu0 0
      %1335 = vmatpush1.bf16.msra.mxu0 0
      %1336 = vmatprep.subr.bf16.mxu0 0
      %1337 = vmatpush1.bf16.msra.mxu0 0
      %1338 = vmatprep.subr.bf16.mxu0 0
      %1339 = vmatpush1.bf16.msra.mxu0 0
      %1340 = vmatprep.subr.bf16.mxu0 0
      %1341 = vmatpush1.bf16.msra.mxu0 0
      %1342 = vmatprep.subr.bf16.mxu0 0
      %1343 = vmatpush1.bf16.msra.mxu0 0
      %1344 = vmatprep.subr.bf16.mxu0 0
      %1345 = vmatpush1.bf16.msra.mxu0 0
      %1346 = vmatprep.subr.bf16.mxu0 0
      %1347 = vmatpush1.bf16.msra.mxu0 0
      %1348 = vmatprep.subr.bf16.mxu0 0
      %1349 = vmatpush1.bf16.msra.mxu0 0
      %1350 = vmatprep.mubr.bf16.mxu0 0
      %1351 = vmatmul.mubr.bf16.gmra.mrb[0].mxu0 %v1279
      %v1352 = vpop.f32.mrb[0].mxu0
      %v1353 = vadd.f32 0.0, %v1352
      %v1354 = vpop.f32.mrb[0].mxu0
      %v1355 = vpop.f32.mrb[0].mxu0
      %v1356 = vadd.f32 0.0, %v1355
      %v1357 = vpop.f32.mrb[0].mxu0
      %1358 = vmatprep.mubr.bf16.mxu0 0
      %1359 = vmatmul.mubr.bf16.gmra.mrb[0].mxu0 %v1282
      %v1360 = vpop.f32.mrb[0].mxu0
      %v1361 = vadd.f32 0.0, %v1360
      %v1362 = vpop.f32.mrb[0].mxu0
      %v1363 = vpop.f32.mrb[0].mxu0
      %v1364 = vadd.f32 0.0, %v1363
      %v1365 = vpop.f32.mrb[0].mxu0
      %1366 = vmatprep.mubr.bf16.mxu0 0
      %1367 = vmatmul.mubr.bf16.gmra.mrb[0].mxu0 %v1285
      %v1368 = vpop.f32.mrb[0].mxu0
      %v1369 = vadd.f32 0.0, %v1368
      %v1370 = vpop.f32.mrb[0].mxu0
      %v1371 = vpop.f32.mrb[0].mxu0
      %v1372 = vadd.f32 0.0, %v1371
      %v1373 = vpop.f32.mrb[0].mxu0
      %1374 = vmatprep.mubr.bf16.mxu0 0
      %1375 = vmatmul.mubr.bf16.gmra.mrb[0].mxu0 %v1288
      %v1376 = vpop.f32.mrb[0].mxu0
      %v1377 = vadd.f32 0.0, %v1376
      %v1378 = vpop.f32.mrb[0].mxu0
      %v1379 = vpop.f32.mrb[0].mxu0
      %v1380 = vadd.f32 0.0, %v1379
      %v1381 = vpop.f32.mrb[0].mxu0
      %1382 = vmatprep.mubr.bf16.mxu0 0
      %1383 = vmatmul.mubr.bf16.gmra.mrb[0].mxu0 %v1291
      %v1384 = vpop.f32.mrb[0].mxu0
      %v1385 = vadd.f32 0.0, %v1384
      %v1386 = vpop.f32.mrb[0].mxu0
      %v1387 = vpop.f32.mrb[0].mxu0
      %v1388 = vadd.f32 0.0, %v1387
      %v1389 = vpop.f32.mrb[0].mxu0
      %1390 = vmatprep.mubr.bf16.mxu0 0
      %1391 = vmatmul.mubr.bf16.gmra.mrb[0].mxu0 %v1294
      %v1392 = vpop.f32.mrb[0].mxu0
      %v1393 = vadd.f32 0.0, %v1392
      %v1394 = vpop.f32.mrb[0].mxu0
      %v1395 = vpop.f32.mrb[0].mxu0
      %v1396 = vadd.f32 0.0, %v1395
      %v1397 = vpop.f32.mrb[0].mxu0
      %1398 = vmatprep.mubr.bf16.mxu0 0
      %1399 = vmatmul.mubr.bf16.gmra.mrb[0].mxu0 %v1297
      %v1400 = vpop.f32.mrb[0].mxu0
      %v1401 = vadd.f32 0.0, %v1400
      %v1402 = vpop.f32.mrb[0].mxu0
      %v1403 = vpop.f32.mrb[0].mxu0
      %v1404 = vadd.f32 0.0, %v1403
      %v1405 = vpop.f32.mrb[0].mxu0
      %1406 = vmatprep.mubr.bf16.mxu0 0
      %1407 = vmatmul.mubr.bf16.gmra.mrb[0].mxu0 %v1300
      %v1408 = vpop.f32.mrb[0].mxu0
      %v1409 = vadd.f32 0.0, %v1408
      %v1410 = vpop.f32.mrb[0].mxu0
      %v1411 = vpop.f32.mrb[0].mxu0
      %v1412 = vadd.f32 0.0, %v1411
      %v1413 = vpop.f32.mrb[0].mxu0
      %1414 = vmatprep.mubr.bf16.mxu0 0
      %1415 = vmatmul.mubr.bf16.gmra.mrb[0].mxu0 %v1303
      %v1416 = vpop.f32.mrb[0].mxu0
      %v1417 = vadd.f32 0.0, %v1416
      %v1418 = vpop.f32.mrb[0].mxu0
      %v1419 = vpop.f32.mrb[0].mxu0
      %v1420 = vadd.f32 0.0, %v1419
      %v1421 = vpop.f32.mrb[0].mxu0
      %1422 = vmatprep.mubr.bf16.mxu0 0
      %1423 = vmatmul.mubr.bf16.gmra.mrb[0].mxu0 %v1306
      %v1424 = vpop.f32.mrb[0].mxu0
      %v1425 = vadd.f32 0.0, %v1424
      %v1426 = vpop.f32.mrb[0].mxu0
      %v1427 = vpop.f32.mrb[0].mxu0
      %v1428 = vadd.f32 0.0, %v1427
      %v1429 = vpop.f32.mrb[0].mxu0
      %1430 = vmatprep.mubr.bf16.mxu0 0
      %1431 = vmatmul.mubr.bf16.gmra.mrb[0].mxu0 %v1309
      %v1432 = vpop.f32.mrb[0].mxu0
      %v1433 = vadd.f32 0.0, %v1432
      %v1434 = vpop.f32.mrb[0].mxu0
      %v1435 = vpop.f32.mrb[0].mxu0
      %v1436 = vadd.f32 0.0, %v1435
      %v1437 = vpop.f32.mrb[0].mxu0
      %1438 = vmatprep.mubr.bf16.mxu0 0
      %1439 = vmatmul.mubr.bf16.gmra.mrb[0].mxu0 %v1312
      %v1440 = vpop.f32.mrb[0].mxu0
      %v1441 = vadd.f32 0.0, %v1440
      %v1442 = vpop.f32.mrb[0].mxu0
      %v1443 = vpop.f32.mrb[0].mxu0
      %v1444 = vpop.f32.mrb[0].mxu0
      %1445 = vdwg.mxu0
      %v1446 = vld [vmem:[%s2] sm:$0x1]
      %v1448 = vlaneseq
      %v1449 = vshrl.u32 %v1448, 7
      %v1450 = vsub.s32 0, %v1449
      %v1451 = vrot.slane %v1446, %v1450
      %v1453 = vmul.f32 %v1353, %v1451
      %v1454 = vmul.f32 %v1356, %v1451
      %v1455 = vmul.f32 %v1361, %v1451
      %v1456 = vmul.f32 %v1364, %v1451
      %v1457 = vmul.f32 %v1369, %v1451
      %v1458 = vmul.f32 %v1372, %v1451
      %v1459 = vmul.f32 %v1377, %v1451
      %v1460 = vmul.f32 %v1380, %v1451
      %v1461 = vmul.f32 %v1385, %v1451
      %v1462 = vmul.f32 %v1388, %v1451
      %v1463 = vmul.f32 %v1393, %v1451
      %v1464 = vmul.f32 %v1396, %v1451
      %v1465 = vmul.f32 %v1401, %v1451
      %v1466 = vmul.f32 %v1404, %v1451
      %v1467 = vmul.f32 %v1409, %v1451
      %v1468 = vmul.f32 %v1412, %v1451
      %v1469 = vmul.f32 %v1417, %v1451
      %v1470 = vmul.f32 %v1420, %v1451
      %v1471 = vmul.f32 %v1425, %v1451
      %v1472 = vmul.f32 %v1428, %v1451
      %v1473 = vmul.f32 %v1433, %v1451
      %v1474 = vmul.f32 %v1436, %v1451
      %v1475 = vmul.f32 %v1441, %v1451
      %v1476 = vld [vmem:[%s3] sm:$0x1]
      %v1478 = vlaneseq
      %v1479 = vshrl.u32 %v1478, 7
      %v1480 = vsub.s32 0, %v1479
      %v1481 = vrot.slane %v1476, %v1480
      %v1483 = vadd.f32 %v1453, %v1481
      %v1484 = vadd.f32 %v1454, %v1481
      %v1485 = vadd.f32 %v1455, %v1481
      %v1486 = vadd.f32 %v1456, %v1481
      %v1487 = vadd.f32 %v1457, %v1481
      %v1488 = vadd.f32 %v1458, %v1481
      %v1489 = vadd.f32 %v1459, %v1481
      %v1490 = vadd.f32 %v1460, %v1481
      %v1491 = vadd.f32 %v1461, %v1481
      %v1492 = vadd.f32 %v1462, %v1481
      %v1493 = vadd.f32 %v1463, %v1481
      %v1494 = vadd.f32 %v1464, %v1481
      %v1495 = vadd.f32 %v1465, %v1481
      %v1496 = vadd.f32 %v1466, %v1481
      %v1497 = vadd.f32 %v1467, %v1481
      %v1498 = vadd.f32 %v1468, %v1481
      %v1499 = vadd.f32 %v1469, %v1481
      %v1500 = vadd.f32 %v1470, %v1481
      %v1501 = vadd.f32 %v1471, %v1481
      %v1502 = vadd.f32 %v1472, %v1481
      %v1503 = vadd.f32 %v1473, %v1481
      %v1504 = vadd.f32 %v1474, %v1481
      %v1505 = vadd.f32 %v1475, %v1481
      %v1506 = vmax.f32 %v1483, 0.0
      %v1507 = vmax.f32 %v1484, 0.0
      %v1508 = vmax.f32 %v1485, 0.0
      %v1509 = vmax.f32 %v1486, 0.0
      %v1510 = vmax.f32 %v1487, 0.0
      %v1511 = vmax.f32 %v1488, 0.0
      %v1512 = vmax.f32 %v1489, 0.0
      %v1513 = vmax.f32 %v1490, 0.0
      %v1514 = vmax.f32 %v1491, 0.0
      %v1515 = vmax.f32 %v1492, 0.0
      %v1516 = vmax.f32 %v1493, 0.0
      %v1517 = vmax.f32 %v1494, 0.0
      %v1518 = vmax.f32 %v1495, 0.0
      %v1519 = vmax.f32 %v1496, 0.0
      %v1520 = vmax.f32 %v1497, 0.0
      %v1521 = vmax.f32 %v1498, 0.0
      %v1522 = vmax.f32 %v1499, 0.0
      %v1523 = vmax.f32 %v1500, 0.0
      %v1524 = vmax.f32 %v1501, 0.0
      %v1525 = vmax.f32 %v1502, 0.0
      %v1526 = vmax.f32 %v1503, 0.0
      %v1527 = vmax.f32 %v1504, 0.0
      %v1528 = vmax.f32 %v1505, 0.0
      %v1529 = vmin.f32 %v1506, 6.0
      %v1530 = vmin.f32 %v1507, 6.0
      %v1531 = vmin.f32 %v1508, 6.0
      %v1532 = vmin.f32 %v1509, 6.0
      %v1533 = vmin.f32 %v1510, 6.0
      %v1534 = vmin.f32 %v1511, 6.0
      %v1535 = vmin.f32 %v1512, 6.0
      %v1536 = vmin.f32 %v1513, 6.0
      %v1537 = vmin.f32 %v1514, 6.0
      %v1538 = vmin.f32 %v1515, 6.0
      %v1539 = vmin.f32 %v1516, 6.0
      %v1540 = vmin.f32 %v1517, 6.0
      %v1541 = vmin.f32 %v1518, 6.0
      %v1542 = vmin.f32 %v1519, 6.0
      %v1543 = vmin.f32 %v1520, 6.0
      %v1544 = vmin.f32 %v1521, 6.0
      %v1545 = vmin.f32 %v1522, 6.0
      %v1546 = vmin.f32 %v1523, 6.0
      %v1547 = vmin.f32 %v1524, 6.0
      %v1548 = vmin.f32 %v1525, 6.0
      %v1549 = vmin.f32 %v1526, 6.0
      %v1550 = vmin.f32 %v1527, 6.0
      %v1551 = vmin.f32 %v1528, 6.0
      %v1552 = vstv %s386
      %v1553 = vadd.s32 %v1552, 1
      %v1554 = vadd.s32 %v1552, 2
      %v1555 = vadd.s32 %v1552, 3
      %v1556 = vadd.s32 %v1552, 4
      %v1557 = vadd.s32 %v1552, 5
      %v1558 = vadd.s32 %v1552, 6
      %v1559 = vadd.s32 %v1552, 7
      %v1560 = vadd.s32 %v1552, 8
      %v1561 = vadd.s32 %v1552, 9
      %v1562 = vlaneseq
      %v1563 = vshrl.u32 %v1562, 7
      %v1564 = vadd.s32 %v1563, 8
      %v1565 = vadd.s32 %v1563, 16
      %vm1566 = vcmp.ge.s32.totalorder %v1552, 1
      %vm1567 = vcmp.ge.s32.totalorder %v1553, 1
      %vm1568 = vcmp.ge.s32.totalorder %v1554, 1
      %vm1569 = vcmp.ge.s32.totalorder %v1555, 1
      %vm1570 = vcmp.ge.s32.totalorder %v1556, 1
      %vm1571 = vcmp.ge.s32.totalorder %v1557, 1
      %vm1572 = vcmp.ge.s32.totalorder %v1558, 1
      %vm1573 = vcmp.ge.s32.totalorder %v1559, 1
      %vm1574 = vcmp.ge.s32.totalorder %v1560, 1
      %vm1575 = vcmp.ge.s32.totalorder %v1561, 1
      %vm1576 = vcmp.le.s32.totalorder %v1552, 16
      %vm1577 = vcmp.le.s32.totalorder %v1553, 16
      %vm1578 = vcmp.le.s32.totalorder %v1554, 16
      %vm1579 = vcmp.le.s32.totalorder %v1555, 16
      %vm1580 = vcmp.le.s32.totalorder %v1556, 16
      %vm1581 = vcmp.le.s32.totalorder %v1557, 16
      %vm1582 = vcmp.le.s32.totalorder %v1558, 16
      %vm1583 = vcmp.le.s32.totalorder %v1559, 16
      %vm1584 = vcmp.le.s32.totalorder %v1560, 16
      %vm1585 = vcmp.le.s32.totalorder %v1561, 16
      %vm1586 = vmand %vm1566, %vm1576
      %vm1587 = vmand %vm1567, %vm1577
      %vm1588 = vmand %vm1568, %vm1578
      %vm1589 = vmand %vm1569, %vm1579
      %vm1590 = vmand %vm1570, %vm1580
      %vm1591 = vmand %vm1571, %vm1581
      %vm1592 = vmand %vm1572, %vm1582
      %vm1593 = vmand %vm1573, %vm1583
      %vm1594 = vmand %vm1574, %vm1584
      %vm1595 = vmand %vm1575, %vm1585
      %vm1596 = vcmp.ge.s32.totalorder %v1563, 1
      %vm1597 = vcmp.ge.s32.totalorder %v1564, 1
      %vm1598 = vcmp.ge.s32.totalorder %v1565, 1
      %vm1599 = vmand %vm1586, %vm1596
      %vm1600 = vmand %vm1586, %vm1597
      %vm1601 = vmand %vm1586, %vm1598
      %vm1602 = vmand %vm1587, %vm1596
      %vm1603 = vmand %vm1587, %vm1597
      %vm1604 = vmand %vm1587, %vm1598
      %vm1605 = vmand %vm1588, %vm1596
      %vm1606 = vmand %vm1588, %vm1597
      %vm1607 = vmand %vm1588, %vm1598
      %vm1608 = vmand %vm1589, %vm1596
      %vm1609 = vmand %vm1589, %vm1597
      %vm1610 = vmand %vm1589, %vm1598
      %vm1611 = vmand %vm1590, %vm1596
      %vm1612 = vmand %vm1590, %vm1597
      %vm1613 = vmand %vm1590, %vm1598
      %vm1614 = vmand %vm1591, %vm1596
      %vm1615 = vmand %vm1591, %vm1597
      %vm1616 = vmand %vm1591, %vm1598
      %vm1617 = vmand %vm1592, %vm1596
      %vm1618 = vmand %vm1592, %vm1597
      %vm1619 = vmand %vm1592, %vm1598
      %vm1620 = vmand %vm1593, %vm1596
      %vm1621 = vmand %vm1593, %vm1597
      %vm1622 = vmand %vm1593, %vm1598
      %vm1623 = vmand %vm1594, %vm1596
      %vm1624 = vmand %vm1594, %vm1597
      %vm1625 = vmand %vm1594, %vm1598
      %vm1626 = vmand %vm1595, %vm1596
      %vm1627 = vmand %vm1595, %vm1597
      %vm1628 = vmand %vm1595, %vm1598
      %vm1629 = vcmp.le.s32.totalorder %v1563, 16
      %vm1630 = vcmp.le.s32.totalorder %v1564, 16
      %vm1631 = vcmp.le.s32.totalorder %v1565, 16
      %vm1632 = vmand %vm1599, %vm1629
      %vm1633 = vmand %vm1600, %vm1630
      %vm1634 = vmand %vm1601, %vm1631
      %vm1635 = vmand %vm1602, %vm1629
      %vm1636 = vmand %vm1603, %vm1630
      %vm1637 = vmand %vm1604, %vm1631
      %vm1638 = vmand %vm1605, %vm1629
      %vm1639 = vmand %vm1606, %vm1630
      %vm1640 = vmand %vm1607, %vm1631
      %vm1641 = vmand %vm1608, %vm1629
      %vm1642 = vmand %vm1609, %vm1630
      %vm1643 = vmand %vm1610, %vm1631
      %vm1644 = vmand %vm1611, %vm1629
      %vm1645 = vmand %vm1612, %vm1630
      %vm1646 = vmand %vm1613, %vm1631
      %vm1647 = vmand %vm1614, %vm1629
      %vm1648 = vmand %vm1615, %vm1630
      %vm1649 = vmand %vm1616, %vm1631
      %vm1650 = vmand %vm1617, %vm1629
      %vm1651 = vmand %vm1618, %vm1630
      %vm1652 = vmand %vm1619, %vm1631
      %vm1653 = vmand %vm1620, %vm1629
      %vm1654 = vmand %vm1621, %vm1630
      %vm1655 = vmand %vm1622, %vm1631
      %vm1656 = vmand %vm1623, %vm1629
      %vm1657 = vmand %vm1624, %vm1630
      %vm1658 = vmand %vm1625, %vm1631
      %vm1659 = vmand %vm1626, %vm1629
      %vm1660 = vmand %vm1627, %vm1630
      %vm1661 = vmand %vm1628, %vm1631
      %v1685 = vcombine.high %v1529, %v1529
      %v1687 = vunpack.c.l.s4 1983009808
      %v1688 = vunpack.c.0.s8 %v1687
      %v1689 = vlaneseq
      %v1690 = vshrl.u32 %v1689, 7
      %v1691 = vsub.s32 %v1688, %v1690
      %v1692 = vrot.slane %v1529, %v1691
      %v1694 = vunpack.c.l.s4 1983009808
      %v1695 = vunpack.c.0.s8 %v1694
      %v1696 = vlaneseq
      %v1697 = vshrl.u32 %v1696, 7
      %v1698 = vsub.s32 %v1695, %v1697
      %v1699 = vrot.slane %v1685, %v1698
      %v1700 = vcombine.high %v1692, %v1692
      %v1701 = vcombine.high %v1699, %v1699
      %v1702 = vcombine.high %v1530, %v1530
      %v1704 = vunpack.c.l.s4 1983009808
      %v1705 = vunpack.c.0.s8 %v1704
      %v1706 = vlaneseq
      %v1707 = vshrl.u32 %v1706, 7
      %v1708 = vsub.s32 %v1705, %v1707
      %v1709 = vrot.slane %v1530, %v1708
      %v1711 = vunpack.c.l.s4 1983009808
      %v1712 = vunpack.c.0.s8 %v1711
      %v1713 = vlaneseq
      %v1714 = vshrl.u32 %v1713, 7
      %v1715 = vsub.s32 %v1712, %v1714
      %v1716 = vrot.slane %v1702, %v1715
      %v1717 = vcombine.high %v1709, %v1709
      %v1718 = vcombine.high %v1716, %v1716
      %v1719 = vcombine.high %v1531, %v1531
      %v1721 = vunpack.c.l.s4 1983009808
      %v1722 = vunpack.c.0.s8 %v1721
      %v1723 = vlaneseq
      %v1724 = vshrl.u32 %v1723, 7
      %v1725 = vsub.s32 %v1722, %v1724
      %v1726 = vrot.slane %v1531, %v1725
      %v1728 = vunpack.c.l.s4 1983009808
      %v1729 = vunpack.c.0.s8 %v1728
      %v1730 = vlaneseq
      %v1731 = vshrl.u32 %v1730, 7
      %v1732 = vsub.s32 %v1729, %v1731
      %v1733 = vrot.slane %v1719, %v1732
      %v1734 = vcombine.high %v1726, %v1726
      %v1735 = vcombine.high %v1733, %v1733
      %v1736 = vcombine.high %v1532, %v1532
      %v1738 = vunpack.c.l.s4 1983009808
      %v1739 = vunpack.c.0.s8 %v1738
      %v1740 = vlaneseq
      %v1741 = vshrl.u32 %v1740, 7
      %v1742 = vsub.s32 %v1739, %v1741
      %v1743 = vrot.slane %v1532, %v1742
      %v1745 = vunpack.c.l.s4 1983009808
      %v1746 = vunpack.c.0.s8 %v1745
      %v1747 = vlaneseq
      %v1748 = vshrl.u32 %v1747, 7
      %v1749 = vsub.s32 %v1746, %v1748
      %v1750 = vrot.slane %v1736, %v1749
      %v1751 = vcombine.high %v1743, %v1743
      %v1752 = vcombine.high %v1750, %v1750
      %v1753 = vcombine.high %v1533, %v1533
      %v1755 = vunpack.c.l.s4 1983009808
      %v1756 = vunpack.c.0.s8 %v1755
      %v1757 = vlaneseq
      %v1758 = vshrl.u32 %v1757, 7
      %v1759 = vsub.s32 %v1756, %v1758
      %v1760 = vrot.slane %v1533, %v1759
      %v1762 = vunpack.c.l.s4 1983009808
      %v1763 = vunpack.c.0.s8 %v1762
      %v1764 = vlaneseq
      %v1765 = vshrl.u32 %v1764, 7
      %v1766 = vsub.s32 %v1763, %v1765
      %v1767 = vrot.slane %v1753, %v1766
      %v1768 = vcombine.high %v1760, %v1760
      %v1769 = vcombine.high %v1767, %v1767
      %v1770 = vcombine.high %v1534, %v1534
      %v1772 = vunpack.c.l.s4 1983009808
      %v1773 = vunpack.c.0.s8 %v1772
      %v1774 = vlaneseq
      %v1775 = vshrl.u32 %v1774, 7
      %v1776 = vsub.s32 %v1773, %v1775
      %v1777 = vrot.slane %v1534, %v1776
      %v1779 = vunpack.c.l.s4 1983009808
      %v1780 = vunpack.c.0.s8 %v1779
      %v1781 = vlaneseq
      %v1782 = vshrl.u32 %v1781, 7
      %v1783 = vsub.s32 %v1780, %v1782
      %v1784 = vrot.slane %v1770, %v1783
      %v1785 = vcombine.high %v1777, %v1777
      %v1786 = vcombine.high %v1784, %v1784
      %v1787 = vcombine.high %v1535, %v1535
      %v1789 = vunpack.c.l.s4 1983009808
      %v1790 = vunpack.c.0.s8 %v1789
      %v1791 = vlaneseq
      %v1792 = vshrl.u32 %v1791, 7
      %v1793 = vsub.s32 %v1790, %v1792
      %v1794 = vrot.slane %v1535, %v1793
      %v1796 = vunpack.c.l.s4 1983009808
      %v1797 = vunpack.c.0.s8 %v1796
      %v1798 = vlaneseq
      %v1799 = vshrl.u32 %v1798, 7
      %v1800 = vsub.s32 %v1797, %v1799
      %v1801 = vrot.slane %v1787, %v1800
      %v1802 = vcombine.high %v1794, %v1794
      %v1803 = vcombine.high %v1801, %v1801
      %v1804 = vcombine.high %v1536, %v1536
      %v1806 = vunpack.c.l.s4 1983009808
      %v1807 = vunpack.c.0.s8 %v1806
      %v1808 = vlaneseq
      %v1809 = vshrl.u32 %v1808, 7
      %v1810 = vsub.s32 %v1807, %v1809
      %v1811 = vrot.slane %v1536, %v1810
      %v1813 = vunpack.c.l.s4 1983009808
      %v1814 = vunpack.c.0.s8 %v1813
      %v1815 = vlaneseq
      %v1816 = vshrl.u32 %v1815, 7
      %v1817 = vsub.s32 %v1814, %v1816
      %v1818 = vrot.slane %v1804, %v1817
      %v1819 = vcombine.high %v1811, %v1811
      %v1820 = vcombine.high %v1818, %v1818
      %v1821 = vcombine.high %v1537, %v1537
      %v1823 = vunpack.c.l.s4 1983009808
      %v1824 = vunpack.c.0.s8 %v1823
      %v1825 = vlaneseq
      %v1826 = vshrl.u32 %v1825, 7
      %v1827 = vsub.s32 %v1824, %v1826
      %v1828 = vrot.slane %v1537, %v1827
      %v1830 = vunpack.c.l.s4 1983009808
      %v1831 = vunpack.c.0.s8 %v1830
      %v1832 = vlaneseq
      %v1833 = vshrl.u32 %v1832, 7
      %v1834 = vsub.s32 %v1831, %v1833
      %v1835 = vrot.slane %v1821, %v1834
      %v1836 = vcombine.high %v1828, %v1828
      %v1837 = vcombine.high %v1835, %v1835
      %v1838 = vcombine.high %v1538, %v1538
      %v1840 = vunpack.c.l.s4 1983009808
      %v1841 = vunpack.c.0.s8 %v1840
      %v1842 = vlaneseq
      %v1843 = vshrl.u32 %v1842, 7
      %v1844 = vsub.s32 %v1841, %v1843
      %v1845 = vrot.slane %v1538, %v1844
      %v1847 = vunpack.c.l.s4 1983009808
      %v1848 = vunpack.c.0.s8 %v1847
      %v1849 = vlaneseq
      %v1850 = vshrl.u32 %v1849, 7
      %v1851 = vsub.s32 %v1848, %v1850
      %v1852 = vrot.slane %v1838, %v1851
      %v1853 = vcombine.high %v1845, %v1845
      %v1854 = vcombine.high %v1852, %v1852
      %v1855 = vcombine.high %v1539, %v1539
      %v1857 = vunpack.c.l.s4 1983009808
      %v1858 = vunpack.c.0.s8 %v1857
      %v1859 = vlaneseq
      %v1860 = vshrl.u32 %v1859, 7
      %v1861 = vsub.s32 %v1858, %v1860
      %v1862 = vrot.slane %v1539, %v1861
      %v1864 = vunpack.c.l.s4 1983009808
      %v1865 = vunpack.c.0.s8 %v1864
      %v1866 = vlaneseq
      %v1867 = vshrl.u32 %v1866, 7
      %v1868 = vsub.s32 %v1865, %v1867
      %v1869 = vrot.slane %v1855, %v1868
      %v1870 = vcombine.high %v1862, %v1862
      %v1871 = vcombine.high %v1869, %v1869
      %v1872 = vcombine.high %v1540, %v1540
      %v1874 = vunpack.c.l.s4 1983009808
      %v1875 = vunpack.c.0.s8 %v1874
      %v1876 = vlaneseq
      %v1877 = vshrl.u32 %v1876, 7
      %v1878 = vsub.s32 %v1875, %v1877
      %v1879 = vrot.slane %v1540, %v1878
      %v1881 = vunpack.c.l.s4 1983009808
      %v1882 = vunpack.c.0.s8 %v1881
      %v1883 = vlaneseq
      %v1884 = vshrl.u32 %v1883, 7
      %v1885 = vsub.s32 %v1882, %v1884
      %v1886 = vrot.slane %v1872, %v1885
      %v1887 = vcombine.high %v1879, %v1879
      %v1888 = vcombine.high %v1886, %v1886
      %v1889 = vcombine.high %v1541, %v1541
      %v1891 = vunpack.c.l.s4 1983009808
      %v1892 = vunpack.c.0.s8 %v1891
      %v1893 = vlaneseq
      %v1894 = vshrl.u32 %v1893, 7
      %v1895 = vsub.s32 %v1892, %v1894
      %v1896 = vrot.slane %v1541, %v1895
      %v1898 = vunpack.c.l.s4 1983009808
      %v1899 = vunpack.c.0.s8 %v1898
      %v1900 = vlaneseq
      %v1901 = vshrl.u32 %v1900, 7
      %v1902 = vsub.s32 %v1899, %v1901
      %v1903 = vrot.slane %v1889, %v1902
      %v1904 = vcombine.high %v1896, %v1896
      %v1905 = vcombine.high %v1903, %v1903
      %v1906 = vcombine.high %v1542, %v1542
      %v1908 = vunpack.c.l.s4 1983009808
      %v1909 = vunpack.c.0.s8 %v1908
      %v1910 = vlaneseq
      %v1911 = vshrl.u32 %v1910, 7
      %v1912 = vsub.s32 %v1909, %v1911
      %v1913 = vrot.slane %v1542, %v1912
      %v1915 = vunpack.c.l.s4 1983009808
      %v1916 = vunpack.c.0.s8 %v1915
      %v1917 = vlaneseq
      %v1918 = vshrl.u32 %v1917, 7
      %v1919 = vsub.s32 %v1916, %v1918
      %v1920 = vrot.slane %v1906, %v1919
      %v1921 = vcombine.high %v1913, %v1913
      %v1922 = vcombine.high %v1920, %v1920
      %v1923 = vcombine.high %v1543, %v1543
      %v1925 = vunpack.c.l.s4 1983009808
      %v1926 = vunpack.c.0.s8 %v1925
      %v1927 = vlaneseq
      %v1928 = vshrl.u32 %v1927, 7
      %v1929 = vsub.s32 %v1926, %v1928
      %v1930 = vrot.slane %v1543, %v1929
      %v1932 = vunpack.c.l.s4 1983009808
      %v1933 = vunpack.c.0.s8 %v1932
      %v1934 = vlaneseq
      %v1935 = vshrl.u32 %v1934, 7
      %v1936 = vsub.s32 %v1933, %v1935
      %v1937 = vrot.slane %v1923, %v1936
      %v1938 = vcombine.high %v1930, %v1930
      %v1939 = vcombine.high %v1937, %v1937
      %v1940 = vcombine.high %v1544, %v1544
      %v1942 = vunpack.c.l.s4 1983009808
      %v1943 = vunpack.c.0.s8 %v1942
      %v1944 = vlaneseq
      %v1945 = vshrl.u32 %v1944, 7
      %v1946 = vsub.s32 %v1943, %v1945
      %v1947 = vrot.slane %v1544, %v1946
      %v1949 = vunpack.c.l.s4 1983009808
      %v1950 = vunpack.c.0.s8 %v1949
      %v1951 = vlaneseq
      %v1952 = vshrl.u32 %v1951, 7
      %v1953 = vsub.s32 %v1950, %v1952
      %v1954 = vrot.slane %v1940, %v1953
      %v1955 = vcombine.high %v1947, %v1947
      %v1956 = vcombine.high %v1954, %v1954
      %v1957 = vcombine.high %v1545, %v1545
      %v1959 = vunpack.c.l.s4 1983009808
      %v1960 = vunpack.c.0.s8 %v1959
      %v1961 = vlaneseq
      %v1962 = vshrl.u32 %v1961, 7
      %v1963 = vsub.s32 %v1960, %v1962
      %v1964 = vrot.slane %v1545, %v1963
      %v1966 = vunpack.c.l.s4 1983009808
      %v1967 = vunpack.c.0.s8 %v1966
      %v1968 = vlaneseq
      %v1969 = vshrl.u32 %v1968, 7
      %v1970 = vsub.s32 %v1967, %v1969
      %v1971 = vrot.slane %v1957, %v1970
      %v1972 = vcombine.high %v1964, %v1964
      %v1973 = vcombine.high %v1971, %v1971
      %v1974 = vcombine.high %v1546, %v1546
      %v1976 = vunpack.c.l.s4 1983009808
      %v1977 = vunpack.c.0.s8 %v1976
      %v1978 = vlaneseq
      %v1979 = vshrl.u32 %v1978, 7
      %v1980 = vsub.s32 %v1977, %v1979
      %v1981 = vrot.slane %v1546, %v1980
      %v1983 = vunpack.c.l.s4 1983009808
      %v1984 = vunpack.c.0.s8 %v1983
      %v1985 = vlaneseq
      %v1986 = vshrl.u32 %v1985, 7
      %v1987 = vsub.s32 %v1984, %v1986
      %v1988 = vrot.slane %v1974, %v1987
      %v1989 = vcombine.high %v1981, %v1981
      %v1990 = vcombine.high %v1988, %v1988
      %v1991 = vcombine.high %v1547, %v1547
      %v1993 = vunpack.c.l.s4 1983009808
      %v1994 = vunpack.c.0.s8 %v1993
      %v1995 = vlaneseq
      %v1996 = vshrl.u32 %v1995, 7
      %v1997 = vsub.s32 %v1994, %v1996
      %v1998 = vrot.slane %v1547, %v1997
      %v2000 = vunpack.c.l.s4 1983009808
      %v2001 = vunpack.c.0.s8 %v2000
      %v2002 = vlaneseq
      %v2003 = vshrl.u32 %v2002, 7
      %v2004 = vsub.s32 %v2001, %v2003
      %v2005 = vrot.slane %v1991, %v2004
      %v2006 = vcombine.high %v1998, %v1998
      %v2007 = vcombine.high %v2005, %v2005
      %v2008 = vcombine.high %v1548, %v1548
      %v2010 = vunpack.c.l.s4 1983009808
      %v2011 = vunpack.c.0.s8 %v2010
      %v2012 = vlaneseq
      %v2013 = vshrl.u32 %v2012, 7
      %v2014 = vsub.s32 %v2011, %v2013
      %v2015 = vrot.slane %v1548, %v2014
      %v2017 = vunpack.c.l.s4 1983009808
      %v2018 = vunpack.c.0.s8 %v2017
      %v2019 = vlaneseq
      %v2020 = vshrl.u32 %v2019, 7
      %v2021 = vsub.s32 %v2018, %v2020
      %v2022 = vrot.slane %v2008, %v2021
      %v2023 = vcombine.high %v2015, %v2015
      %v2024 = vcombine.high %v2022, %v2022
      %v2025 = vcombine.high %v1549, %v1549
      %v2027 = vunpack.c.l.s4 1983009808
      %v2028 = vunpack.c.0.s8 %v2027
      %v2029 = vlaneseq
      %v2030 = vshrl.u32 %v2029, 7
      %v2031 = vsub.s32 %v2028, %v2030
      %v2032 = vrot.slane %v1549, %v2031
      %v2034 = vunpack.c.l.s4 1983009808
      %v2035 = vunpack.c.0.s8 %v2034
      %v2036 = vlaneseq
      %v2037 = vshrl.u32 %v2036, 7
      %v2038 = vsub.s32 %v2035, %v2037
      %v2039 = vrot.slane %v2025, %v2038
      %v2040 = vcombine.high %v2032, %v2032
      %v2041 = vcombine.high %v2039, %v2039
      %v2042 = vcombine.high %v1550, %v1550
      %v2044 = vunpack.c.l.s4 1983009808
      %v2045 = vunpack.c.0.s8 %v2044
      %v2046 = vlaneseq
      %v2047 = vshrl.u32 %v2046, 7
      %v2048 = vsub.s32 %v2045, %v2047
      %v2049 = vrot.slane %v1550, %v2048
      %v2051 = vunpack.c.l.s4 1983009808
      %v2052 = vunpack.c.0.s8 %v2051
      %v2053 = vlaneseq
      %v2054 = vshrl.u32 %v2053, 7
      %v2055 = vsub.s32 %v2052, %v2054
      %v2056 = vrot.slane %v2042, %v2055
      %v2057 = vcombine.high %v2049, %v2049
      %v2058 = vcombine.high %v2056, %v2056
      %v2060 = vunpack.c.l.s4 1983009808
      %v2061 = vunpack.c.0.s8 %v2060
      %v2062 = vlaneseq
      %v2063 = vshrl.u32 %v2062, 7
      %v2064 = vsub.s32 %v2061, %v2063
      %v2065 = vrot.slane %v1551, %v2064
      %v2066 = vcombine.high %v2065, %v2065
      %v2157 = vsel %vm1632, 1, 0
      %v2158 = vsel %vm1633, 1, 0
      %v2159 = vsel %vm1634, 1, 0
      %v2160 = vsel %vm1635, 1, 0
      %v2161 = vsel %vm1636, 1, 0
      %v2162 = vsel %vm1637, 1, 0
      %v2163 = vsel %vm1638, 1, 0
      %v2164 = vsel %vm1639, 1, 0
      %v2165 = vsel %vm1640, 1, 0
      %v2166 = vsel %vm1641, 1, 0
      %v2167 = vsel %vm1642, 1, 0
      %v2168 = vsel %vm1643, 1, 0
      %v2169 = vsel %vm1644, 1, 0
      %v2170 = vsel %vm1645, 1, 0
      %v2171 = vsel %vm1646, 1, 0
      %v2172 = vsel %vm1647, 1, 0
      %v2173 = vsel %vm1648, 1, 0
      %v2174 = vsel %vm1649, 1, 0
      %v2175 = vsel %vm1650, 1, 0
      %v2176 = vsel %vm1651, 1, 0
      %v2177 = vsel %vm1652, 1, 0
      %v2178 = vsel %vm1653, 1, 0
      %v2179 = vsel %vm1654, 1, 0
      %v2180 = vsel %vm1655, 1, 0
      %v2181 = vsel %vm1656, 1, 0
      %v2182 = vsel %vm1657, 1, 0
      %v2183 = vsel %vm1658, 1, 0
      %v2184 = vsel %vm1659, 1, 0
      %v2185 = vsel %vm1660, 1, 0
      %v2186 = vsel %vm1661, 1, 0
      %v2187 = vcvt.s32.f32 %v2157
      %v2188 = vcvt.s32.f32 %v2158
      %v2189 = vcvt.s32.f32 %v2159
      %v2190 = vcvt.s32.f32 %v2160
      %v2191 = vcvt.s32.f32 %v2161
      %v2192 = vcvt.s32.f32 %v2162
      %v2193 = vcvt.s32.f32 %v2163
      %v2194 = vcvt.s32.f32 %v2164
      %v2195 = vcvt.s32.f32 %v2165
      %v2196 = vcvt.s32.f32 %v2166
      %v2197 = vcvt.s32.f32 %v2167
      %v2198 = vcvt.s32.f32 %v2168
      %v2199 = vcvt.s32.f32 %v2169
      %v2200 = vcvt.s32.f32 %v2170
      %v2201 = vcvt.s32.f32 %v2171
      %v2202 = vcvt.s32.f32 %v2172
      %v2203 = vcvt.s32.f32 %v2173
      %v2204 = vcvt.s32.f32 %v2174
      %v2205 = vcvt.s32.f32 %v2175
      %v2206 = vcvt.s32.f32 %v2176
      %v2207 = vcvt.s32.f32 %v2177
      %v2208 = vcvt.s32.f32 %v2178
      %v2209 = vcvt.s32.f32 %v2179
      %v2210 = vcvt.s32.f32 %v2180
      %v2211 = vcvt.s32.f32 %v2181
      %v2212 = vcvt.s32.f32 %v2182
      %v2213 = vcvt.s32.f32 %v2183
      %v2214 = vcvt.s32.f32 %v2184
      %v2215 = vcvt.s32.f32 %v2185
      %v2216 = vcvt.s32.f32 %v2186
      %v2248 = vunpack.c.l.s4 269488144
      %v2249 = vunpack.c.0.s8 %v2248
      %v2250 = vlaneseq
      %v2251 = vshrl.u32 %v2250, 7
      %v2252 = vsub.s32 %v2249, %v2251
      %v2253 = vrot.slane %v2187, %v2252
      %v2255 = vunpack.c.l.s4 842150450
      %v2256 = vunpack.c.0.s8 %v2255
      %v2257 = vlaneseq
      %v2258 = vshrl.u32 %v2257, 7
      %v2259 = vsub.s32 %v2256, %v2258
      %v2260 = vrot.slane %v2187, %v2259
      %v2262 = vunpack.c.l.s4 1414812756
      %v2263 = vunpack.c.0.s8 %v2262
      %v2264 = vlaneseq
      %v2265 = vshrl.u32 %v2264, 7
      %v2266 = vsub.s32 %v2263, %v2265
      %v2267 = vrot.slane %v2187, %v2266
      %v2269 = vunpack.c.l.s4 1987475062
      %v2270 = vunpack.c.0.s8 %v2269
      %v2271 = vlaneseq
      %v2272 = vshrl.u32 %v2271, 7
      %v2273 = vsub.s32 %v2270, %v2272
      %v2274 = vrot.slane %v2187, %v2273
      %v2276 = vunpack.c.l.s4 269488144
      %v2277 = vunpack.c.0.s8 %v2276
      %v2278 = vlaneseq
      %v2279 = vshrl.u32 %v2278, 7
      %v2280 = vsub.s32 %v2277, %v2279
      %v2281 = vrot.slane %v2188, %v2280
      %v2283 = vunpack.c.l.s4 842150450
      %v2284 = vunpack.c.0.s8 %v2283
      %v2285 = vlaneseq
      %v2286 = vshrl.u32 %v2285, 7
      %v2287 = vsub.s32 %v2284, %v2286
      %v2288 = vrot.slane %v2188, %v2287
      %v2290 = vunpack.c.l.s4 1414812756
      %v2291 = vunpack.c.0.s8 %v2290
      %v2292 = vlaneseq
      %v2293 = vshrl.u32 %v2292, 7
      %v2294 = vsub.s32 %v2291, %v2293
      %v2295 = vrot.slane %v2188, %v2294
      %v2297 = vunpack.c.l.s4 1987475062
      %v2298 = vunpack.c.0.s8 %v2297
      %v2299 = vlaneseq
      %v2300 = vshrl.u32 %v2299, 7
      %v2301 = vsub.s32 %v2298, %v2300
      %v2302 = vrot.slane %v2188, %v2301
      %v2304 = vunpack.c.l.s4 269488144
      %v2305 = vunpack.c.0.s8 %v2304
      %v2306 = vlaneseq
      %v2307 = vshrl.u32 %v2306, 7
      %v2308 = vsub.s32 %v2305, %v2307
      %v2309 = vrot.slane %v2189, %v2308
      %v2311 = vunpack.c.l.s4 269488144
      %v2312 = vunpack.c.0.s8 %v2311
      %v2313 = vlaneseq
      %v2314 = vshrl.u32 %v2313, 7
      %v2315 = vsub.s32 %v2312, %v2314
      %v2316 = vrot.slane %v2190, %v2315
      %v2318 = vunpack.c.l.s4 842150450
      %v2319 = vunpack.c.0.s8 %v2318
      %v2320 = vlaneseq
      %v2321 = vshrl.u32 %v2320, 7
      %v2322 = vsub.s32 %v2319, %v2321
      %v2323 = vrot.slane %v2190, %v2322
      %v2325 = vunpack.c.l.s4 1414812756
      %v2326 = vunpack.c.0.s8 %v2325
      %v2327 = vlaneseq
      %v2328 = vshrl.u32 %v2327, 7
      %v2329 = vsub.s32 %v2326, %v2328
      %v2330 = vrot.slane %v2190, %v2329
      %v2332 = vunpack.c.l.s4 1987475062
      %v2333 = vunpack.c.0.s8 %v2332
      %v2334 = vlaneseq
      %v2335 = vshrl.u32 %v2334, 7
      %v2336 = vsub.s32 %v2333, %v2335
      %v2337 = vrot.slane %v2190, %v2336
      %v2339 = vunpack.c.l.s4 269488144
      %v2340 = vunpack.c.0.s8 %v2339
      %v2341 = vlaneseq
      %v2342 = vshrl.u32 %v2341, 7
      %v2343 = vsub.s32 %v2340, %v2342
      %v2344 = vrot.slane %v2191, %v2343
      %v2346 = vunpack.c.l.s4 842150450
      %v2347 = vunpack.c.0.s8 %v2346
      %v2348 = vlaneseq
      %v2349 = vshrl.u32 %v2348, 7
      %v2350 = vsub.s32 %v2347, %v2349
      %v2351 = vrot.slane %v2191, %v2350
      %v2353 = vunpack.c.l.s4 1414812756
      %v2354 = vunpack.c.0.s8 %v2353
      %v2355 = vlaneseq
      %v2356 = vshrl.u32 %v2355, 7
      %v2357 = vsub.s32 %v2354, %v2356
      %v2358 = vrot.slane %v2191, %v2357
      %v2360 = vunpack.c.l.s4 1987475062
      %v2361 = vunpack.c.0.s8 %v2360
      %v2362 = vlaneseq
      %v2363 = vshrl.u32 %v2362, 7
      %v2364 = vsub.s32 %v2361, %v2363
      %v2365 = vrot.slane %v2191, %v2364
      %v2367 = vunpack.c.l.s4 269488144
      %v2368 = vunpack.c.0.s8 %v2367
      %v2369 = vlaneseq
      %v2370 = vshrl.u32 %v2369, 7
      %v2371 = vsub.s32 %v2368, %v2370
      %v2372 = vrot.slane %v2192, %v2371
      %v2374 = vunpack.c.l.s4 269488144
      %v2375 = vunpack.c.0.s8 %v2374
      %v2376 = vlaneseq
      %v2377 = vshrl.u32 %v2376, 7
      %v2378 = vsub.s32 %v2375, %v2377
      %v2379 = vrot.slane %v2193, %v2378
      %v2381 = vunpack.c.l.s4 842150450
      %v2382 = vunpack.c.0.s8 %v2381
      %v2383 = vlaneseq
      %v2384 = vshrl.u32 %v2383, 7
      %v2385 = vsub.s32 %v2382, %v2384
      %v2386 = vrot.slane %v2193, %v2385
      %v2388 = vunpack.c.l.s4 1414812756
      %v2389 = vunpack.c.0.s8 %v2388
      %v2390 = vlaneseq
      %v2391 = vshrl.u32 %v2390, 7
      %v2392 = vsub.s32 %v2389, %v2391
      %v2393 = vrot.slane %v2193, %v2392
      %v2395 = vunpack.c.l.s4 1987475062
      %v2396 = vunpack.c.0.s8 %v2395
      %v2397 = vlaneseq
      %v2398 = vshrl.u32 %v2397, 7
      %v2399 = vsub.s32 %v2396, %v2398
      %v2400 = vrot.slane %v2193, %v2399
      %v2402 = vunpack.c.l.s4 269488144
      %v2403 = vunpack.c.0.s8 %v2402
      %v2404 = vlaneseq
      %v2405 = vshrl.u32 %v2404, 7
      %v2406 = vsub.s32 %v2403, %v2405
      %v2407 = vrot.slane %v2194, %v2406
      %v2409 = vunpack.c.l.s4 842150450
      %v2410 = vunpack.c.0.s8 %v2409
      %v2411 = vlaneseq
      %v2412 = vshrl.u32 %v2411, 7
      %v2413 = vsub.s32 %v2410, %v2412
      %v2414 = vrot.slane %v2194, %v2413
      %v2416 = vunpack.c.l.s4 1414812756
      %v2417 = vunpack.c.0.s8 %v2416
      %v2418 = vlaneseq
      %v2419 = vshrl.u32 %v2418, 7
      %v2420 = vsub.s32 %v2417, %v2419
      %v2421 = vrot.slane %v2194, %v2420
      %v2423 = vunpack.c.l.s4 1987475062
      %v2424 = vunpack.c.0.s8 %v2423
      %v2425 = vlaneseq
      %v2426 = vshrl.u32 %v2425, 7
      %v2427 = vsub.s32 %v2424, %v2426
      %v2428 = vrot.slane %v2194, %v2427
      %v2430 = vunpack.c.l.s4 269488144
      %v2431 = vunpack.c.0.s8 %v2430
      %v2432 = vlaneseq
      %v2433 = vshrl.u32 %v2432, 7
      %v2434 = vsub.s32 %v2431, %v2433
      %v2435 = vrot.slane %v2195, %v2434
      %v2437 = vunpack.c.l.s4 269488144
      %v2438 = vunpack.c.0.s8 %v2437
      %v2439 = vlaneseq
      %v2440 = vshrl.u32 %v2439, 7
      %v2441 = vsub.s32 %v2438, %v2440
      %v2442 = vrot.slane %v2196, %v2441
      %v2444 = vunpack.c.l.s4 842150450
      %v2445 = vunpack.c.0.s8 %v2444
      %v2446 = vlaneseq
      %v2447 = vshrl.u32 %v2446, 7
      %v2448 = vsub.s32 %v2445, %v2447
      %v2449 = vrot.slane %v2196, %v2448
      %v2451 = vunpack.c.l.s4 1414812756
      %v2452 = vunpack.c.0.s8 %v2451
      %v2453 = vlaneseq
      %v2454 = vshrl.u32 %v2453, 7
      %v2455 = vsub.s32 %v2452, %v2454
      %v2456 = vrot.slane %v2196, %v2455
      %v2458 = vunpack.c.l.s4 1987475062
      %v2459 = vunpack.c.0.s8 %v2458
      %v2460 = vlaneseq
      %v2461 = vshrl.u32 %v2460, 7
      %v2462 = vsub.s32 %v2459, %v2461
      %v2463 = vrot.slane %v2196, %v2462
      %v2465 = vunpack.c.l.s4 269488144
      %v2466 = vunpack.c.0.s8 %v2465
      %v2467 = vlaneseq
      %v2468 = vshrl.u32 %v2467, 7
      %v2469 = vsub.s32 %v2466, %v2468
      %v2470 = vrot.slane %v2197, %v2469
      %v2472 = vunpack.c.l.s4 842150450
      %v2473 = vunpack.c.0.s8 %v2472
      %v2474 = vlaneseq
      %v2475 = vshrl.u32 %v2474, 7
      %v2476 = vsub.s32 %v2473, %v2475
      %v2477 = vrot.slane %v2197, %v2476
      %v2479 = vunpack.c.l.s4 1414812756
      %v2480 = vunpack.c.0.s8 %v2479
      %v2481 = vlaneseq
      %v2482 = vshrl.u32 %v2481, 7
      %v2483 = vsub.s32 %v2480, %v2482
      %v2484 = vrot.slane %v2197, %v2483
      %v2486 = vunpack.c.l.s4 1987475062
      %v2487 = vunpack.c.0.s8 %v2486
      %v2488 = vlaneseq
      %v2489 = vshrl.u32 %v2488, 7
      %v2490 = vsub.s32 %v2487, %v2489
      %v2491 = vrot.slane %v2197, %v2490
      %v2493 = vunpack.c.l.s4 269488144
      %v2494 = vunpack.c.0.s8 %v2493
      %v2495 = vlaneseq
      %v2496 = vshrl.u32 %v2495, 7
      %v2497 = vsub.s32 %v2494, %v2496
      %v2498 = vrot.slane %v2198, %v2497
      %v2500 = vunpack.c.l.s4 269488144
      %v2501 = vunpack.c.0.s8 %v2500
      %v2502 = vlaneseq
      %v2503 = vshrl.u32 %v2502, 7
      %v2504 = vsub.s32 %v2501, %v2503
      %v2505 = vrot.slane %v2199, %v2504
      %v2507 = vunpack.c.l.s4 842150450
      %v2508 = vunpack.c.0.s8 %v2507
      %v2509 = vlaneseq
      %v2510 = vshrl.u32 %v2509, 7
      %v2511 = vsub.s32 %v2508, %v2510
      %v2512 = vrot.slane %v2199, %v2511
      %v2514 = vunpack.c.l.s4 1414812756
      %v2515 = vunpack.c.0.s8 %v2514
      %v2516 = vlaneseq
      %v2517 = vshrl.u32 %v2516, 7
      %v2518 = vsub.s32 %v2515, %v2517
      %v2519 = vrot.slane %v2199, %v2518
      %v2521 = vunpack.c.l.s4 1987475062
      %v2522 = vunpack.c.0.s8 %v2521
      %v2523 = vlaneseq
      %v2524 = vshrl.u32 %v2523, 7
      %v2525 = vsub.s32 %v2522, %v2524
      %v2526 = vrot.slane %v2199, %v2525
      %v2528 = vunpack.c.l.s4 269488144
      %v2529 = vunpack.c.0.s8 %v2528
      %v2530 = vlaneseq
      %v2531 = vshrl.u32 %v2530, 7
      %v2532 = vsub.s32 %v2529, %v2531
      %v2533 = vrot.slane %v2200, %v2532
      %v2535 = vunpack.c.l.s4 842150450
      %v2536 = vunpack.c.0.s8 %v2535
      %v2537 = vlaneseq
      %v2538 = vshrl.u32 %v2537, 7
      %v2539 = vsub.s32 %v2536, %v2538
      %v2540 = vrot.slane %v2200, %v2539
      %v2542 = vunpack.c.l.s4 1414812756
      %v2543 = vunpack.c.0.s8 %v2542
      %v2544 = vlaneseq
      %v2545 = vshrl.u32 %v2544, 7
      %v2546 = vsub.s32 %v2543, %v2545
      %v2547 = vrot.slane %v2200, %v2546
      %v2549 = vunpack.c.l.s4 1987475062
      %v2550 = vunpack.c.0.s8 %v2549
      %v2551 = vlaneseq
      %v2552 = vshrl.u32 %v2551, 7
      %v2553 = vsub.s32 %v2550, %v2552
      %v2554 = vrot.slane %v2200, %v2553
      %v2556 = vunpack.c.l.s4 269488144
      %v2557 = vunpack.c.0.s8 %v2556
      %v2558 = vlaneseq
      %v2559 = vshrl.u32 %v2558, 7
      %v2560 = vsub.s32 %v2557, %v2559
      %v2561 = vrot.slane %v2201, %v2560
      %v2563 = vunpack.c.l.s4 269488144
      %v2564 = vunpack.c.0.s8 %v2563
      %v2565 = vlaneseq
      %v2566 = vshrl.u32 %v2565, 7
      %v2567 = vsub.s32 %v2564, %v2566
      %v2568 = vrot.slane %v2202, %v2567
      %v2570 = vunpack.c.l.s4 842150450
      %v2571 = vunpack.c.0.s8 %v2570
      %v2572 = vlaneseq
      %v2573 = vshrl.u32 %v2572, 7
      %v2574 = vsub.s32 %v2571, %v2573
      %v2575 = vrot.slane %v2202, %v2574
      %v2577 = vunpack.c.l.s4 1414812756
      %v2578 = vunpack.c.0.s8 %v2577
      %v2579 = vlaneseq
      %v2580 = vshrl.u32 %v2579, 7
      %v2581 = vsub.s32 %v2578, %v2580
      %v2582 = vrot.slane %v2202, %v2581
      %v2584 = vunpack.c.l.s4 1987475062
      %v2585 = vunpack.c.0.s8 %v2584
      %v2586 = vlaneseq
      %v2587 = vshrl.u32 %v2586, 7
      %v2588 = vsub.s32 %v2585, %v2587
      %v2589 = vrot.slane %v2202, %v2588
      %v2591 = vunpack.c.l.s4 269488144
      %v2592 = vunpack.c.0.s8 %v2591
      %v2593 = vlaneseq
      %v2594 = vshrl.u32 %v2593, 7
      %v2595 = vsub.s32 %v2592, %v2594
      %v2596 = vrot.slane %v2203, %v2595
      %v2598 = vunpack.c.l.s4 842150450
      %v2599 = vunpack.c.0.s8 %v2598
      %v2600 = vlaneseq
      %v2601 = vshrl.u32 %v2600, 7
      %v2602 = vsub.s32 %v2599, %v2601
      %v2603 = vrot.slane %v2203, %v2602
      %v2605 = vunpack.c.l.s4 1414812756
      %v2606 = vunpack.c.0.s8 %v2605
      %v2607 = vlaneseq
      %v2608 = vshrl.u32 %v2607, 7
      %v2609 = vsub.s32 %v2606, %v2608
      %v2610 = vrot.slane %v2203, %v2609
      %v2612 = vunpack.c.l.s4 1987475062
      %v2613 = vunpack.c.0.s8 %v2612
      %v2614 = vlaneseq
      %v2615 = vshrl.u32 %v2614, 7
      %v2616 = vsub.s32 %v2613, %v2615
      %v2617 = vrot.slane %v2203, %v2616
      %v2619 = vunpack.c.l.s4 269488144
      %v2620 = vunpack.c.0.s8 %v2619
      %v2621 = vlaneseq
      %v2622 = vshrl.u32 %v2621, 7
      %v2623 = vsub.s32 %v2620, %v2622
      %v2624 = vrot.slane %v2204, %v2623
      %v2626 = vunpack.c.l.s4 269488144
      %v2627 = vunpack.c.0.s8 %v2626
      %v2628 = vlaneseq
      %v2629 = vshrl.u32 %v2628, 7
      %v2630 = vsub.s32 %v2627, %v2629
      %v2631 = vrot.slane %v2205, %v2630
      %v2633 = vunpack.c.l.s4 842150450
      %v2634 = vunpack.c.0.s8 %v2633
      %v2635 = vlaneseq
      %v2636 = vshrl.u32 %v2635, 7
      %v2637 = vsub.s32 %v2634, %v2636
      %v2638 = vrot.slane %v2205, %v2637
      %v2640 = vunpack.c.l.s4 1414812756
      %v2641 = vunpack.c.0.s8 %v2640
      %v2642 = vlaneseq
      %v2643 = vshrl.u32 %v2642, 7
      %v2644 = vsub.s32 %v2641, %v2643
      %v2645 = vrot.slane %v2205, %v2644
      %v2647 = vunpack.c.l.s4 1987475062
      %v2648 = vunpack.c.0.s8 %v2647
      %v2649 = vlaneseq
      %v2650 = vshrl.u32 %v2649, 7
      %v2651 = vsub.s32 %v2648, %v2650
      %v2652 = vrot.slane %v2205, %v2651
      %v2654 = vunpack.c.l.s4 269488144
      %v2655 = vunpack.c.0.s8 %v2654
      %v2656 = vlaneseq
      %v2657 = vshrl.u32 %v2656, 7
      %v2658 = vsub.s32 %v2655, %v2657
      %v2659 = vrot.slane %v2206, %v2658
      %v2661 = vunpack.c.l.s4 842150450
      %v2662 = vunpack.c.0.s8 %v2661
      %v2663 = vlaneseq
      %v2664 = vshrl.u32 %v2663, 7
      %v2665 = vsub.s32 %v2662, %v2664
      %v2666 = vrot.slane %v2206, %v2665
      %v2668 = vunpack.c.l.s4 1414812756
      %v2669 = vunpack.c.0.s8 %v2668
      %v2670 = vlaneseq
      %v2671 = vshrl.u32 %v2670, 7
      %v2672 = vsub.s32 %v2669, %v2671
      %v2673 = vrot.slane %v2206, %v2672
      %v2675 = vunpack.c.l.s4 1987475062
      %v2676 = vunpack.c.0.s8 %v2675
      %v2677 = vlaneseq
      %v2678 = vshrl.u32 %v2677, 7
      %v2679 = vsub.s32 %v2676, %v2678
      %v2680 = vrot.slane %v2206, %v2679
      %v2682 = vunpack.c.l.s4 269488144
      %v2683 = vunpack.c.0.s8 %v2682
      %v2684 = vlaneseq
      %v2685 = vshrl.u32 %v2684, 7
      %v2686 = vsub.s32 %v2683, %v2685
      %v2687 = vrot.slane %v2207, %v2686
      %v2689 = vunpack.c.l.s4 269488144
      %v2690 = vunpack.c.0.s8 %v2689
      %v2691 = vlaneseq
      %v2692 = vshrl.u32 %v2691, 7
      %v2693 = vsub.s32 %v2690, %v2692
      %v2694 = vrot.slane %v2208, %v2693
      %v2696 = vunpack.c.l.s4 842150450
      %v2697 = vunpack.c.0.s8 %v2696
      %v2698 = vlaneseq
      %v2699 = vshrl.u32 %v2698, 7
      %v2700 = vsub.s32 %v2697, %v2699
      %v2701 = vrot.slane %v2208, %v2700
      %v2703 = vunpack.c.l.s4 1414812756
      %v2704 = vunpack.c.0.s8 %v2703
      %v2705 = vlaneseq
      %v2706 = vshrl.u32 %v2705, 7
      %v2707 = vsub.s32 %v2704, %v2706
      %v2708 = vrot.slane %v2208, %v2707
      %v2710 = vunpack.c.l.s4 1987475062
      %v2711 = vunpack.c.0.s8 %v2710
      %v2712 = vlaneseq
      %v2713 = vshrl.u32 %v2712, 7
      %v2714 = vsub.s32 %v2711, %v2713
      %v2715 = vrot.slane %v2208, %v2714
      %v2717 = vunpack.c.l.s4 269488144
      %v2718 = vunpack.c.0.s8 %v2717
      %v2719 = vlaneseq
      %v2720 = vshrl.u32 %v2719, 7
      %v2721 = vsub.s32 %v2718, %v2720
      %v2722 = vrot.slane %v2209, %v2721
      %v2724 = vunpack.c.l.s4 842150450
      %v2725 = vunpack.c.0.s8 %v2724
      %v2726 = vlaneseq
      %v2727 = vshrl.u32 %v2726, 7
      %v2728 = vsub.s32 %v2725, %v2727
      %v2729 = vrot.slane %v2209, %v2728
      %v2731 = vunpack.c.l.s4 1414812756
      %v2732 = vunpack.c.0.s8 %v2731
      %v2733 = vlaneseq
      %v2734 = vshrl.u32 %v2733, 7
      %v2735 = vsub.s32 %v2732, %v2734
      %v2736 = vrot.slane %v2209, %v2735
      %v2738 = vunpack.c.l.s4 1987475062
      %v2739 = vunpack.c.0.s8 %v2738
      %v2740 = vlaneseq
      %v2741 = vshrl.u32 %v2740, 7
      %v2742 = vsub.s32 %v2739, %v2741
      %v2743 = vrot.slane %v2209, %v2742
      %v2745 = vunpack.c.l.s4 269488144
      %v2746 = vunpack.c.0.s8 %v2745
      %v2747 = vlaneseq
      %v2748 = vshrl.u32 %v2747, 7
      %v2749 = vsub.s32 %v2746, %v2748
      %v2750 = vrot.slane %v2210, %v2749
      %v2752 = vunpack.c.l.s4 269488144
      %v2753 = vunpack.c.0.s8 %v2752
      %v2754 = vlaneseq
      %v2755 = vshrl.u32 %v2754, 7
      %v2756 = vsub.s32 %v2753, %v2755
      %v2757 = vrot.slane %v2211, %v2756
      %v2759 = vunpack.c.l.s4 842150450
      %v2760 = vunpack.c.0.s8 %v2759
      %v2761 = vlaneseq
      %v2762 = vshrl.u32 %v2761, 7
      %v2763 = vsub.s32 %v2760, %v2762
      %v2764 = vrot.slane %v2211, %v2763
      %v2766 = vunpack.c.l.s4 1414812756
      %v2767 = vunpack.c.0.s8 %v2766
      %v2768 = vlaneseq
      %v2769 = vshrl.u32 %v2768, 7
      %v2770 = vsub.s32 %v2767, %v2769
      %v2771 = vrot.slane %v2211, %v2770
      %v2773 = vunpack.c.l.s4 1987475062
      %v2774 = vunpack.c.0.s8 %v2773
      %v2775 = vlaneseq
      %v2776 = vshrl.u32 %v2775, 7
      %v2777 = vsub.s32 %v2774, %v2776
      %v2778 = vrot.slane %v2211, %v2777
      %v2780 = vunpack.c.l.s4 269488144
      %v2781 = vunpack.c.0.s8 %v2780
      %v2782 = vlaneseq
      %v2783 = vshrl.u32 %v2782, 7
      %v2784 = vsub.s32 %v2781, %v2783
      %v2785 = vrot.slane %v2212, %v2784
      %v2787 = vunpack.c.l.s4 842150450
      %v2788 = vunpack.c.0.s8 %v2787
      %v2789 = vlaneseq
      %v2790 = vshrl.u32 %v2789, 7
      %v2791 = vsub.s32 %v2788, %v2790
      %v2792 = vrot.slane %v2212, %v2791
      %v2794 = vunpack.c.l.s4 1414812756
      %v2795 = vunpack.c.0.s8 %v2794
      %v2796 = vlaneseq
      %v2797 = vshrl.u32 %v2796, 7
      %v2798 = vsub.s32 %v2795, %v2797
      %v2799 = vrot.slane %v2212, %v2798
      %v2801 = vunpack.c.l.s4 1987475062
      %v2802 = vunpack.c.0.s8 %v2801
      %v2803 = vlaneseq
      %v2804 = vshrl.u32 %v2803, 7
      %v2805 = vsub.s32 %v2802, %v2804
      %v2806 = vrot.slane %v2212, %v2805
      %v2808 = vunpack.c.l.s4 269488144
      %v2809 = vunpack.c.0.s8 %v2808
      %v2810 = vlaneseq
      %v2811 = vshrl.u32 %v2810, 7
      %v2812 = vsub.s32 %v2809, %v2811
      %v2813 = vrot.slane %v2213, %v2812
      %v2815 = vunpack.c.l.s4 269488144
      %v2816 = vunpack.c.0.s8 %v2815
      %v2817 = vlaneseq
      %v2818 = vshrl.u32 %v2817, 7
      %v2819 = vsub.s32 %v2816, %v2818
      %v2820 = vrot.slane %v2214, %v2819
      %v2822 = vunpack.c.l.s4 842150450
      %v2823 = vunpack.c.0.s8 %v2822
      %v2824 = vlaneseq
      %v2825 = vshrl.u32 %v2824, 7
      %v2826 = vsub.s32 %v2823, %v2825
      %v2827 = vrot.slane %v2214, %v2826
      %v2829 = vunpack.c.l.s4 1414812756
      %v2830 = vunpack.c.0.s8 %v2829
      %v2831 = vlaneseq
      %v2832 = vshrl.u32 %v2831, 7
      %v2833 = vsub.s32 %v2830, %v2832
      %v2834 = vrot.slane %v2214, %v2833
      %v2836 = vunpack.c.l.s4 1987475062
      %v2837 = vunpack.c.0.s8 %v2836
      %v2838 = vlaneseq
      %v2839 = vshrl.u32 %v2838, 7
      %v2840 = vsub.s32 %v2837, %v2839
      %v2841 = vrot.slane %v2214, %v2840
      %v2843 = vunpack.c.l.s4 269488144
      %v2844 = vunpack.c.0.s8 %v2843
      %v2845 = vlaneseq
      %v2846 = vshrl.u32 %v2845, 7
      %v2847 = vsub.s32 %v2844, %v2846
      %v2848 = vrot.slane %v2215, %v2847
      %v2850 = vunpack.c.l.s4 842150450
      %v2851 = vunpack.c.0.s8 %v2850
      %v2852 = vlaneseq
      %v2853 = vshrl.u32 %v2852, 7
      %v2854 = vsub.s32 %v2851, %v2853
      %v2855 = vrot.slane %v2215, %v2854
      %v2857 = vunpack.c.l.s4 1414812756
      %v2858 = vunpack.c.0.s8 %v2857
      %v2859 = vlaneseq
      %v2860 = vshrl.u32 %v2859, 7
      %v2861 = vsub.s32 %v2858, %v2860
      %v2862 = vrot.slane %v2215, %v2861
      %v2864 = vunpack.c.l.s4 1987475062
      %v2865 = vunpack.c.0.s8 %v2864
      %v2866 = vlaneseq
      %v2867 = vshrl.u32 %v2866, 7
      %v2868 = vsub.s32 %v2865, %v2867
      %v2869 = vrot.slane %v2215, %v2868
      %v2871 = vunpack.c.l.s4 269488144
      %v2872 = vunpack.c.0.s8 %v2871
      %v2873 = vlaneseq
      %v2874 = vshrl.u32 %v2873, 7
      %v2875 = vsub.s32 %v2872, %v2874
      %v2876 = vrot.slane %v2216, %v2875
      %v2967 = vmul.f32 %v1692, %v2253
      %v2968 = vmul.f32 %v1700, %v2260
      %v2969 = vmul.f32 %v1699, %v2267
      %v2970 = vmul.f32 %v1701, %v2274
      %v2971 = vmul.f32 %v1709, %v2281
      %v2972 = vmul.f32 %v1717, %v2288
      %v2973 = vmul.f32 %v1716, %v2295
      %v2974 = vmul.f32 %v1718, %v2302
      %v2975 = vmul.f32 %v1726, %v2309
      %v2976 = vmul.f32 %v1734, %v2316
      %v2977 = vmul.f32 %v1733, %v2323
      %v2978 = vmul.f32 %v1735, %v2330
      %v2979 = vmul.f32 %v1743, %v2337
      %v2980 = vmul.f32 %v1751, %v2344
      %v2981 = vmul.f32 %v1750, %v2351
      %v2982 = vmul.f32 %v1752, %v2358
      %v2983 = vmul.f32 %v1760, %v2365
      %v2984 = vmul.f32 %v1768, %v2372
      %v2985 = vmul.f32 %v1767, %v2379
      %v2986 = vmul.f32 %v1769, %v2386
      %v2987 = vmul.f32 %v1777, %v2393
      %v2988 = vmul.f32 %v1785, %v2400
      %v2989 = vmul.f32 %v1784, %v2407
      %v2990 = vmul.f32 %v1786, %v2414
      %v2991 = vmul.f32 %v1794, %v2421
      %v2992 = vmul.f32 %v1802, %v2428
      %v2993 = vmul.f32 %v1801, %v2435
      %v2994 = vmul.f32 %v1803, %v2442
      %v2995 = vmul.f32 %v1811, %v2449
      %v2996 = vmul.f32 %v1819, %v2456
      %v2997 = vmul.f32 %v1818, %v2463
      %v2998 = vmul.f32 %v1820, %v2470
      %v2999 = vmul.f32 %v1828, %v2477
      %v3000 = vmul.f32 %v1836, %v2484
      %v3001 = vmul.f32 %v1835, %v2491
      %v3002 = vmul.f32 %v1837, %v2498
      %v3003 = vmul.f32 %v1845, %v2505
      %v3004 = vmul.f32 %v1853, %v2512
      %v3005 = vmul.f32 %v1852, %v2519
      %v3006 = vmul.f32 %v1854, %v2526
      %v3007 = vmul.f32 %v1862, %v2533
      %v3008 = vmul.f32 %v1870, %v2540
      %v3009 = vmul.f32 %v1869, %v2547
      %v3010 = vmul.f32 %v1871, %v2554
      %v3011 = vmul.f32 %v1879, %v2561
      %v3012 = vmul.f32 %v1887, %v2568
      %v3013 = vmul.f32 %v1886, %v2575
      %v3014 = vmul.f32 %v1888, %v2582
      %v3015 = vmul.f32 %v1896, %v2589
      %v3016 = vmul.f32 %v1904, %v2596
      %v3017 = vmul.f32 %v1903, %v2603
      %v3018 = vmul.f32 %v1905, %v2610
      %v3019 = vmul.f32 %v1913, %v2617
      %v3020 = vmul.f32 %v1921, %v2624
      %v3021 = vmul.f32 %v1920, %v2631
      %v3022 = vmul.f32 %v1922, %v2638
      %v3023 = vmul.f32 %v1930, %v2645
      %v3024 = vmul.f32 %v1938, %v2652
      %v3025 = vmul.f32 %v1937, %v2659
      %v3026 = vmul.f32 %v1939, %v2666
      %v3027 = vmul.f32 %v1947, %v2673
      %v3028 = vmul.f32 %v1955, %v2680
      %v3029 = vmul.f32 %v1954, %v2687
      %v3030 = vmul.f32 %v1956, %v2694
      %v3031 = vmul.f32 %v1964, %v2701
      %v3032 = vmul.f32 %v1972, %v2708
      %v3033 = vmul.f32 %v1971, %v2715
      %v3034 = vmul.f32 %v1973, %v2722
      %v3035 = vmul.f32 %v1981, %v2729
      %v3036 = vmul.f32 %v1989, %v2736
      %v3037 = vmul.f32 %v1988, %v2743
      %v3038 = vmul.f32 %v1990, %v2750
      %v3039 = vmul.f32 %v1998, %v2757
      %v3040 = vmul.f32 %v2006, %v2764
      %v3041 = vmul.f32 %v2005, %v2771
      %v3042 = vmul.f32 %v2007, %v2778
      %v3043 = vmul.f32 %v2015, %v2785
      %v3044 = vmul.f32 %v2023, %v2792
      %v3045 = vmul.f32 %v2022, %v2799
      %v3046 = vmul.f32 %v2024, %v2806
      %v3047 = vmul.f32 %v2032, %v2813
      %v3048 = vmul.f32 %v2040, %v2820
      %v3049 = vmul.f32 %v2039, %v2827
      %v3050 = vmul.f32 %v2041, %v2834
      %v3051 = vmul.f32 %v2049, %v2841
      %v3052 = vmul.f32 %v2057, %v2848
      %v3053 = vmul.f32 %v2056, %v2855
      %v3054 = vmul.f32 %v2058, %v2862
      %v3055 = vmul.f32 %v2065, %v2869
      %v3056 = vmul.f32 %v2066, %v2876
      %v3147 = vcombine.low %v2967, %v2968
      %v3148 = vcombine.low %v2969, %v2970
      %v3150 = vunpack.c.l.s4 1983009808
      %v3151 = vunpack.c.0.s8 %v3150
      %v3152 = vlaneseq
      %v3153 = vshrl.u32 %v3152, 7
      %v3154 = vsub.s32 %v3151, %v3153
      %v3155 = vrot.slane %v3147, %v3154
      %v3157 = vunpack.c.l.s4 1983009808
      %v3158 = vunpack.c.0.s8 %v3157
      %v3159 = vlaneseq
      %v3160 = vshrl.u32 %v3159, 7
      %v3161 = vsub.s32 %v3158, %v3160
      %v3162 = vrot.slane %v3148, %v3161
      %v3163 = vcombine.low %v3155, %v3162
      %v3164 = vcombine.low %v2971, %v2972
      %v3165 = vcombine.low %v2973, %v2974
      %v3167 = vunpack.c.l.s4 1983009808
      %v3168 = vunpack.c.0.s8 %v3167
      %v3169 = vlaneseq
      %v3170 = vshrl.u32 %v3169, 7
      %v3171 = vsub.s32 %v3168, %v3170
      %v3172 = vrot.slane %v3164, %v3171
      %v3174 = vunpack.c.l.s4 1983009808
      %v3175 = vunpack.c.0.s8 %v3174
      %v3176 = vlaneseq
      %v3177 = vshrl.u32 %v3176, 7
      %v3178 = vsub.s32 %v3175, %v3177
      %v3179 = vrot.slane %v3165, %v3178
      %v3180 = vcombine.low %v3172, %v3179
      %v3182 = vunpack.c.l.s4 1983009808
      %v3183 = vunpack.c.0.s8 %v3182
      %v3184 = vlaneseq
      %v3185 = vshrl.u32 %v3184, 7
      %v3186 = vsub.s32 %v3183, %v3185
      %v3187 = vrot.slane %v2975, %v3186
      %v3188 = vcombine.low %v2976, %v2977
      %v3189 = vcombine.low %v2978, %v2979
      %v3191 = vunpack.c.l.s4 1983009808
      %v3192 = vunpack.c.0.s8 %v3191
      %v3193 = vlaneseq
      %v3194 = vshrl.u32 %v3193, 7
      %v3195 = vsub.s32 %v3192, %v3194
      %v3196 = vrot.slane %v3188, %v3195
      %v3198 = vunpack.c.l.s4 1983009808
      %v3199 = vunpack.c.0.s8 %v3198
      %v3200 = vlaneseq
      %v3201 = vshrl.u32 %v3200, 7
      %v3202 = vsub.s32 %v3199, %v3201
      %v3203 = vrot.slane %v3189, %v3202
      %v3204 = vcombine.low %v3196, %v3203
      %v3205 = vcombine.low %v2980, %v2981
      %v3206 = vcombine.low %v2982, %v2983
      %v3208 = vunpack.c.l.s4 1983009808
      %v3209 = vunpack.c.0.s8 %v3208
      %v3210 = vlaneseq
      %v3211 = vshrl.u32 %v3210, 7
      %v3212 = vsub.s32 %v3209, %v3211
      %v3213 = vrot.slane %v3205, %v3212
      %v3215 = vunpack.c.l.s4 1983009808
      %v3216 = vunpack.c.0.s8 %v3215
      %v3217 = vlaneseq
      %v3218 = vshrl.u32 %v3217, 7
      %v3219 = vsub.s32 %v3216, %v3218
      %v3220 = vrot.slane %v3206, %v3219
      %v3221 = vcombine.low %v3213, %v3220
      %v3223 = vunpack.c.l.s4 1983009808
      %v3224 = vunpack.c.0.s8 %v3223
      %v3225 = vlaneseq
      %v3226 = vshrl.u32 %v3225, 7
      %v3227 = vsub.s32 %v3224, %v3226
      %v3228 = vrot.slane %v2984, %v3227
      %v3229 = vcombine.low %v2985, %v2986
      %v3230 = vcombine.low %v2987, %v2988
      %v3232 = vunpack.c.l.s4 1983009808
      %v3233 = vunpack.c.0.s8 %v3232
      %v3234 = vlaneseq
      %v3235 = vshrl.u32 %v3234, 7
      %v3236 = vsub.s32 %v3233, %v3235
      %v3237 = vrot.slane %v3229, %v3236
      %v3239 = vunpack.c.l.s4 1983009808
      %v3240 = vunpack.c.0.s8 %v3239
      %v3241 = vlaneseq
      %v3242 = vshrl.u32 %v3241, 7
      %v3243 = vsub.s32 %v3240, %v3242
      %v3244 = vrot.slane %v3230, %v3243
      %v3245 = vcombine.low %v3237, %v3244
      %v3246 = vcombine.low %v2989, %v2990
      %v3247 = vcombine.low %v2991, %v2992
      %v3249 = vunpack.c.l.s4 1983009808
      %v3250 = vunpack.c.0.s8 %v3249
      %v3251 = vlaneseq
      %v3252 = vshrl.u32 %v3251, 7
      %v3253 = vsub.s32 %v3250, %v3252
      %v3254 = vrot.slane %v3246, %v3253
      %v3256 = vunpack.c.l.s4 1983009808
      %v3257 = vunpack.c.0.s8 %v3256
      %v3258 = vlaneseq
      %v3259 = vshrl.u32 %v3258, 7
      %v3260 = vsub.s32 %v3257, %v3259
      %v3261 = vrot.slane %v3247, %v3260
      %v3262 = vcombine.low %v3254, %v3261
      %v3264 = vunpack.c.l.s4 1983009808
      %v3265 = vunpack.c.0.s8 %v3264
      %v3266 = vlaneseq
      %v3267 = vshrl.u32 %v3266, 7
      %v3268 = vsub.s32 %v3265, %v3267
      %v3269 = vrot.slane %v2993, %v3268
      %v3270 = vcombine.low %v2994, %v2995
      %v3271 = vcombine.low %v2996, %v2997
      %v3273 = vunpack.c.l.s4 1983009808
      %v3274 = vunpack.c.0.s8 %v3273
      %v3275 = vlaneseq
      %v3276 = vshrl.u32 %v3275, 7
      %v3277 = vsub.s32 %v3274, %v3276
      %v3278 = vrot.slane %v3270, %v3277
      %v3280 = vunpack.c.l.s4 1983009808
      %v3281 = vunpack.c.0.s8 %v3280
      %v3282 = vlaneseq
      %v3283 = vshrl.u32 %v3282, 7
      %v3284 = vsub.s32 %v3281, %v3283
      %v3285 = vrot.slane %v3271, %v3284
      %v3286 = vcombine.low %v3278, %v3285
      %v3287 = vcombine.low %v2998, %v2999
      %v3288 = vcombine.low %v3000, %v3001
      %v3290 = vunpack.c.l.s4 1983009808
      %v3291 = vunpack.c.0.s8 %v3290
      %v3292 = vlaneseq
      %v3293 = vshrl.u32 %v3292, 7
      %v3294 = vsub.s32 %v3291, %v3293
      %v3295 = vrot.slane %v3287, %v3294
      %v3297 = vunpack.c.l.s4 1983009808
      %v3298 = vunpack.c.0.s8 %v3297
      %v3299 = vlaneseq
      %v3300 = vshrl.u32 %v3299, 7
      %v3301 = vsub.s32 %v3298, %v3300
      %v3302 = vrot.slane %v3288, %v3301
      %v3303 = vcombine.low %v3295, %v3302
      %v3305 = vunpack.c.l.s4 1983009808
      %v3306 = vunpack.c.0.s8 %v3305
      %v3307 = vlaneseq
      %v3308 = vshrl.u32 %v3307, 7
      %v3309 = vsub.s32 %v3306, %v3308
      %v3310 = vrot.slane %v3002, %v3309
      %v3311 = vcombine.low %v3003, %v3004
      %v3312 = vcombine.low %v3005, %v3006
      %v3314 = vunpack.c.l.s4 1983009808
      %v3315 = vunpack.c.0.s8 %v3314
      %v3316 = vlaneseq
      %v3317 = vshrl.u32 %v3316, 7
      %v3318 = vsub.s32 %v3315, %v3317
      %v3319 = vrot.slane %v3311, %v3318
      %v3321 = vunpack.c.l.s4 1983009808
      %v3322 = vunpack.c.0.s8 %v3321
      %v3323 = vlaneseq
      %v3324 = vshrl.u32 %v3323, 7
      %v3325 = vsub.s32 %v3322, %v3324
      %v3326 = vrot.slane %v3312, %v3325
      %v3327 = vcombine.low %v3319, %v3326
      %v3328 = vcombine.low %v3007, %v3008
      %v3329 = vcombine.low %v3009, %v3010
      %v3331 = vunpack.c.l.s4 1983009808
      %v3332 = vunpack.c.0.s8 %v3331
      %v3333 = vlaneseq
      %v3334 = vshrl.u32 %v3333, 7
      %v3335 = vsub.s32 %v3332, %v3334
      %v3336 = vrot.slane %v3328, %v3335
      %v3338 = vunpack.c.l.s4 1983009808
      %v3339 = vunpack.c.0.s8 %v3338
      %v3340 = vlaneseq
      %v3341 = vshrl.u32 %v3340, 7
      %v3342 = vsub.s32 %v3339, %v3341
      %v3343 = vrot.slane %v3329, %v3342
      %v3344 = vcombine.low %v3336, %v3343
      %v3346 = vunpack.c.l.s4 1983009808
      %v3347 = vunpack.c.0.s8 %v3346
      %v3348 = vlaneseq
      %v3349 = vshrl.u32 %v3348, 7
      %v3350 = vsub.s32 %v3347, %v3349
      %v3351 = vrot.slane %v3011, %v3350
      %v3352 = vcombine.low %v3012, %v3013
      %v3353 = vcombine.low %v3014, %v3015
      %v3355 = vunpack.c.l.s4 1983009808
      %v3356 = vunpack.c.0.s8 %v3355
      %v3357 = vlaneseq
      %v3358 = vshrl.u32 %v3357, 7
      %v3359 = vsub.s32 %v3356, %v3358
      %v3360 = vrot.slane %v3352, %v3359
      %v3362 = vunpack.c.l.s4 1983009808
      %v3363 = vunpack.c.0.s8 %v3362
      %v3364 = vlaneseq
      %v3365 = vshrl.u32 %v3364, 7
      %v3366 = vsub.s32 %v3363, %v3365
      %v3367 = vrot.slane %v3353, %v3366
      %v3368 = vcombine.low %v3360, %v3367
      %v3369 = vcombine.low %v3016, %v3017
      %v3370 = vcombine.low %v3018, %v3019
      %v3372 = vunpack.c.l.s4 1983009808
      %v3373 = vunpack.c.0.s8 %v3372
      %v3374 = vlaneseq
      %v3375 = vshrl.u32 %v3374, 7
      %v3376 = vsub.s32 %v3373, %v3375
      %v3377 = vrot.slane %v3369, %v3376
      %v3379 = vunpack.c.l.s4 1983009808
      %v3380 = vunpack.c.0.s8 %v3379
      %v3381 = vlaneseq
      %v3382 = vshrl.u32 %v3381, 7
      %v3383 = vsub.s32 %v3380, %v3382
      %v3384 = vrot.slane %v3370, %v3383
      %v3385 = vcombine.low %v3377, %v3384
      %v3387 = vunpack.c.l.s4 1983009808
      %v3388 = vunpack.c.0.s8 %v3387
      %v3389 = vlaneseq
      %v3390 = vshrl.u32 %v3389, 7
      %v3391 = vsub.s32 %v3388, %v3390
      %v3392 = vrot.slane %v3020, %v3391
      %v3393 = vcombine.low %v3021, %v3022
      %v3394 = vcombine.low %v3023, %v3024
      %v3396 = vunpack.c.l.s4 1983009808
      %v3397 = vunpack.c.0.s8 %v3396
      %v3398 = vlaneseq
      %v3399 = vshrl.u32 %v3398, 7
      %v3400 = vsub.s32 %v3397, %v3399
      %v3401 = vrot.slane %v3393, %v3400
      %v3403 = vunpack.c.l.s4 1983009808
      %v3404 = vunpack.c.0.s8 %v3403
      %v3405 = vlaneseq
      %v3406 = vshrl.u32 %v3405, 7
      %v3407 = vsub.s32 %v3404, %v3406
      %v3408 = vrot.slane %v3394, %v3407
      %v3409 = vcombine.low %v3401, %v3408
      %v3410 = vcombine.low %v3025, %v3026
      %v3411 = vcombine.low %v3027, %v3028
      %v3413 = vunpack.c.l.s4 1983009808
      %v3414 = vunpack.c.0.s8 %v3413
      %v3415 = vlaneseq
      %v3416 = vshrl.u32 %v3415, 7
      %v3417 = vsub.s32 %v3414, %v3416
      %v3418 = vrot.slane %v3410, %v3417
      %v3420 = vunpack.c.l.s4 1983009808
      %v3421 = vunpack.c.0.s8 %v3420
      %v3422 = vlaneseq
      %v3423 = vshrl.u32 %v3422, 7
      %v3424 = vsub.s32 %v3421, %v3423
      %v3425 = vrot.slane %v3411, %v3424
      %v3426 = vcombine.low %v3418, %v3425
      %v3428 = vunpack.c.l.s4 1983009808
      %v3429 = vunpack.c.0.s8 %v3428
      %v3430 = vlaneseq
      %v3431 = vshrl.u32 %v3430, 7
      %v3432 = vsub.s32 %v3429, %v3431
      %v3433 = vrot.slane %v3029, %v3432
      %v3434 = vcombine.low %v3030, %v3031
      %v3435 = vcombine.low %v3032, %v3033
      %v3437 = vunpack.c.l.s4 1983009808
      %v3438 = vunpack.c.0.s8 %v3437
      %v3439 = vlaneseq
      %v3440 = vshrl.u32 %v3439, 7
      %v3441 = vsub.s32 %v3438, %v3440
      %v3442 = vrot.slane %v3434, %v3441
      %v3444 = vunpack.c.l.s4 1983009808
      %v3445 = vunpack.c.0.s8 %v3444
      %v3446 = vlaneseq
      %v3447 = vshrl.u32 %v3446, 7
      %v3448 = vsub.s32 %v3445, %v3447
      %v3449 = vrot.slane %v3435, %v3448
      %v3450 = vcombine.low %v3442, %v3449
      %v3451 = vcombine.low %v3034, %v3035
      %v3452 = vcombine.low %v3036, %v3037
      %v3454 = vunpack.c.l.s4 1983009808
      %v3455 = vunpack.c.0.s8 %v3454
      %v3456 = vlaneseq
      %v3457 = vshrl.u32 %v3456, 7
      %v3458 = vsub.s32 %v3455, %v3457
      %v3459 = vrot.slane %v3451, %v3458
      %v3461 = vunpack.c.l.s4 1983009808
      %v3462 = vunpack.c.0.s8 %v3461
      %v3463 = vlaneseq
      %v3464 = vshrl.u32 %v3463, 7
      %v3465 = vsub.s32 %v3462, %v3464
      %v3466 = vrot.slane %v3452, %v3465
      %v3467 = vcombine.low %v3459, %v3466
      %v3469 = vunpack.c.l.s4 1983009808
      %v3470 = vunpack.c.0.s8 %v3469
      %v3471 = vlaneseq
      %v3472 = vshrl.u32 %v3471, 7
      %v3473 = vsub.s32 %v3470, %v3472
      %v3474 = vrot.slane %v3038, %v3473
      %v3475 = vcombine.low %v3039, %v3040
      %v3476 = vcombine.low %v3041, %v3042
      %v3478 = vunpack.c.l.s4 1983009808
      %v3479 = vunpack.c.0.s8 %v3478
      %v3480 = vlaneseq
      %v3481 = vshrl.u32 %v3480, 7
      %v3482 = vsub.s32 %v3479, %v3481
      %v3483 = vrot.slane %v3475, %v3482
      %v3485 = vunpack.c.l.s4 1983009808
      %v3486 = vunpack.c.0.s8 %v3485
      %v3487 = vlaneseq
      %v3488 = vshrl.u32 %v3487, 7
      %v3489 = vsub.s32 %v3486, %v3488
      %v3490 = vrot.slane %v3476, %v3489
      %v3491 = vcombine.low %v3483, %v3490
      %v3492 = vcombine.low %v3043, %v3044
      %v3493 = vcombine.low %v3045, %v3046
      %v3495 = vunpack.c.l.s4 1983009808
      %v3496 = vunpack.c.0.s8 %v3495
      %v3497 = vlaneseq
      %v3498 = vshrl.u32 %v3497, 7
      %v3499 = vsub.s32 %v3496, %v3498
      %v3500 = vrot.slane %v3492, %v3499
      %v3502 = vunpack.c.l.s4 1983009808
      %v3503 = vunpack.c.0.s8 %v3502
      %v3504 = vlaneseq
      %v3505 = vshrl.u32 %v3504, 7
      %v3506 = vsub.s32 %v3503, %v3505
      %v3507 = vrot.slane %v3493, %v3506
      %v3508 = vcombine.low %v3500, %v3507
      %v3510 = vunpack.c.l.s4 1983009808
      %v3511 = vunpack.c.0.s8 %v3510
      %v3512 = vlaneseq
      %v3513 = vshrl.u32 %v3512, 7
      %v3514 = vsub.s32 %v3511, %v3513
      %v3515 = vrot.slane %v3047, %v3514
      %v3516 = vcombine.low %v3048, %v3049
      %v3517 = vcombine.low %v3050, %v3051
      %v3519 = vunpack.c.l.s4 1983009808
      %v3520 = vunpack.c.0.s8 %v3519
      %v3521 = vlaneseq
      %v3522 = vshrl.u32 %v3521, 7
      %v3523 = vsub.s32 %v3520, %v3522
      %v3524 = vrot.slane %v3516, %v3523
      %v3526 = vunpack.c.l.s4 1983009808
      %v3527 = vunpack.c.0.s8 %v3526
      %v3528 = vlaneseq
      %v3529 = vshrl.u32 %v3528, 7
      %v3530 = vsub.s32 %v3527, %v3529
      %v3531 = vrot.slane %v3517, %v3530
      %v3532 = vcombine.low %v3524, %v3531
      %v3533 = vcombine.low %v3052, %v3053
      %v3534 = vcombine.low %v3054, %v3055
      %v3536 = vunpack.c.l.s4 1983009808
      %v3537 = vunpack.c.0.s8 %v3536
      %v3538 = vlaneseq
      %v3539 = vshrl.u32 %v3538, 7
      %v3540 = vsub.s32 %v3537, %v3539
      %v3541 = vrot.slane %v3533, %v3540
      %v3543 = vunpack.c.l.s4 1983009808
      %v3544 = vunpack.c.0.s8 %v3543
      %v3545 = vlaneseq
      %v3546 = vshrl.u32 %v3545, 7
      %v3547 = vsub.s32 %v3544, %v3546
      %v3548 = vrot.slane %v3534, %v3547
      %v3549 = vcombine.low %v3541, %v3548
      %v3551 = vunpack.c.l.s4 1983009808
      %v3552 = vunpack.c.0.s8 %v3551
      %v3553 = vlaneseq
      %v3554 = vshrl.u32 %v3553, 7
      %v3555 = vsub.s32 %v3552, %v3554
      %v3556 = vrot.slane %v3056, %v3555
      %vm3587 = vcmask 130048
      %3588 = vst.msk [vmem:[#allocation2] sm:$0xff] %vm3587, %v3163
      %3589 = vst.msk [vmem:[#allocation2 + $0x8] sm:$0xff] %vm3587, %v3180
      %vm3590 = vcmask 123904
      %3591 = vst.msk [vmem:[#allocation2 + $0x10] sm:$0x3] %vm3590, %v3187
      %3592 = vst.msk [vmem:[#allocation2 + $0x18] sm:$0xff] %vm3587, %v3204
      %3593 = vst.msk [vmem:[#allocation2 + $0x20] sm:$0xff] %vm3587, %v3221
      %3594 = vst.msk [vmem:[#allocation2 + $0x28] sm:$0x3] %vm3590, %v3228
      %3595 = vst.msk [vmem:[#allocation2 + $0x30] sm:$0xff] %vm3587, %v3245
      %3596 = vst.msk [vmem:[#allocation2 + $0x38] sm:$0xff] %vm3587, %v3262
      %3597 = vst.msk [vmem:[#allocation2 + $0x40] sm:$0x3] %vm3590, %v3269
      %3598 = vst.msk [vmem:[#allocation2 + $0x48] sm:$0xff] %vm3587, %v3286
      %3599 = vst.msk [vmem:[#allocation2 + $0x50] sm:$0xff] %vm3587, %v3303
      %3600 = vst.msk [vmem:[#allocation2 + $0x58] sm:$0x3] %vm3590, %v3310
      %3601 = vst.msk [vmem:[#allocation2 + $0x60] sm:$0xff] %vm3587, %v3327
      %3602 = vst.msk [vmem:[#allocation2 + $0x68] sm:$0xff] %vm3587, %v3344
      %3603 = vst.msk [vmem:[#allocation2 + $0x70] sm:$0x3] %vm3590, %v3351
      %3604 = vst.msk [vmem:[#allocation2 + $0x78] sm:$0xff] %vm3587, %v3368
      %3605 = vst.msk [vmem:[#allocation2 + $0x80] sm:$0xff] %vm3587, %v3385
      %3606 = vst.msk [vmem:[#allocation2 + $0x88] sm:$0x3] %vm3590, %v3392
      %3607 = vst.msk [vmem:[#allocation2 + $0x90] sm:$0xff] %vm3587, %v3409
      %3608 = vst.msk [vmem:[#allocation2 + $0x98] sm:$0xff] %vm3587, %v3426
      %3609 = vst.msk [vmem:[#allocation2 + $0xa0] sm:$0x3] %vm3590, %v3433
      %3610 = vst.msk [vmem:[#allocation2 + $0xa8] sm:$0xff] %vm3587, %v3450
      %3611 = vst.msk [vmem:[#allocation2 + $0xb0] sm:$0xff] %vm3587, %v3467
      %3612 = vst.msk [vmem:[#allocation2 + $0xb8] sm:$0x3] %vm3590, %v3474
      %3613 = vst.msk [vmem:[#allocation2 + $0xc0] sm:$0xff] %vm3587, %v3491
      %3614 = vst.msk [vmem:[#allocation2 + $0xc8] sm:$0xff] %vm3587, %v3508
      %3615 = vst.msk [vmem:[#allocation2 + $0xd0] sm:$0x3] %vm3590, %v3515
      %3616 = vst.msk [vmem:[#allocation2 + $0xd8] sm:$0xff] %vm3587, %v3532
      %3617 = vst.msk [vmem:[#allocation2 + $0xe0] sm:$0xff] %vm3587, %v3549
      %3618 = vst.msk [vmem:[#allocation2 + $0xe8] sm:$0x3] %vm3590, %v3556
      %v3619 = vld [vmem:[%s4] sm:$0x7]
      %v3620 = vld [vmem:[%s4 + $0x4] sm:$0x7]
      %v3621 = vld [vmem:[%s4 + $0x8] sm:$0x7]
      %v3622 = vld [vmem:[%s5] sm:$0x1]
      %v3623 = vld [vmem:[%s6] sm:$0x1]
      %v3624 = vld [vmem:[#allocation2] sm:$0xff]
      %v3625 = vld [vmem:[#allocation2 + $0x8] sm:$0xff]
      %v3626 = vld [vmem:[#allocation2 + $0x18] sm:$0xff]
      %v3627 = vld [vmem:[#allocation2 + $0x20] sm:$0xff]
      %v3628 = vld [vmem:[#allocation2 + $0x30] sm:$0xff]
      %v3629 = vld [vmem:[#allocation2 + $0x38] sm:$0xff]
      %v3630 = vld [vmem:[#allocation2 + $0x48] sm:$0xff]
      %v3631 = vld [vmem:[#allocation2 + $0x50] sm:$0xff]
      %v3632 = vld [vmem:[#allocation2 + $0x60] sm:$0xff]
      %v3633 = vld [vmem:[#allocation2 + $0x68] sm:$0xff]
      %v3634 = vld [vmem:[#allocation2 + $0x78] sm:$0xff]
      %v3635 = vld [vmem:[#allocation2 + $0x80] sm:$0xff]
      %v3636 = vld [vmem:[#allocation2 + $0x90] sm:$0xff]
      %v3637 = vld [vmem:[#allocation2 + $0x98] sm:$0xff]
      %v3638 = vld [vmem:[#allocation2 + $0xa8] sm:$0xff]
      %v3639 = vld [vmem:[#allocation2 + $0xb0] sm:$0xff]
      %v3640 = vlaneseq
      %v3641 = vshrl.u32 %v3640, 7
      %v3642 = vsub.s32 0, %v3641
      %v3643 = vrot.slane %v3619, %v3642
      %v3644 = vmul.f32 %v3624, %v3643
      %v3645 = vmul.f32 %v3625, %v3643
      %v3646 = vmul.f32 %v3626, %v3643
      %v3647 = vmul.f32 %v3627, %v3643
      %v3648 = vmul.f32 %v3628, %v3643
      %v3649 = vmul.f32 %v3629, %v3643
      %v3650 = vmul.f32 %v3630, %v3643
      %v3651 = vmul.f32 %v3631, %v3643
      %v3652 = vmul.f32 %v3632, %v3643
      %v3653 = vmul.f32 %v3633, %v3643
      %v3654 = vmul.f32 %v3634, %v3643
      %v3655 = vmul.f32 %v3635, %v3643
      %v3656 = vmul.f32 %v3636, %v3643
      %v3657 = vmul.f32 %v3637, %v3643
      %v3658 = vmul.f32 %v3638, %v3643
      %v3659 = vmul.f32 %v3639, %v3643
      %v3660 = vadd.f32 %v3644, 0.0
      %v3661 = vadd.f32 %v3645, 0.0
      %v3662 = vadd.f32 %v3646, 0.0
      %v3663 = vadd.f32 %v3647, 0.0
      %v3664 = vadd.f32 %v3648, 0.0
      %v3665 = vadd.f32 %v3649, 0.0
      %v3666 = vadd.f32 %v3650, 0.0
      %v3667 = vadd.f32 %v3651, 0.0
      %v3668 = vadd.f32 %v3652, 0.0
      %v3669 = vadd.f32 %v3653, 0.0
      %v3670 = vadd.f32 %v3654, 0.0
      %v3671 = vadd.f32 %v3655, 0.0
      %v3672 = vadd.f32 %v3656, 0.0
      %v3673 = vadd.f32 %v3657, 0.0
      %v3674 = vadd.f32 %v3658, 0.0
      %v3675 = vadd.f32 %v3659, 0.0
      %v3676 = vld [vmem:[#allocation2 + $0x1] sm:$0xff]
      %v3677 = vld [vmem:[#allocation2 + $0x9] sm:$0xff]
      %v3678 = vld [vmem:[#allocation2 + $0x19] sm:$0xff]
      %v3679 = vld [vmem:[#allocation2 + $0x21] sm:$0xff]
      %v3680 = vld [vmem:[#allocation2 + $0x31] sm:$0xff]
      %v3681 = vld [vmem:[#allocation2 + $0x39] sm:$0xff]
      %v3682 = vld [vmem:[#allocation2 + $0x49] sm:$0xff]
      %v3683 = vld [vmem:[#allocation2 + $0x51] sm:$0xff]
      %v3684 = vld [vmem:[#allocation2 + $0x61] sm:$0xff]
      %v3685 = vld [vmem:[#allocation2 + $0x69] sm:$0xff]
      %v3686 = vld [vmem:[#allocation2 + $0x79] sm:$0xff]
      %v3687 = vld [vmem:[#allocation2 + $0x81] sm:$0xff]
      %v3688 = vld [vmem:[#allocation2 + $0x91] sm:$0xff]
      %v3689 = vld [vmem:[#allocation2 + $0x99] sm:$0xff]
      %v3690 = vld [vmem:[#allocation2 + $0xa9] sm:$0xff]
      %v3691 = vld [vmem:[#allocation2 + $0xb1] sm:$0xff]
      %v3692 = vlaneseq
      %v3693 = vshrl.u32 %v3692, 7
      %v3694 = vsub.s32 1, %v3693
      %v3695 = vrot.slane %v3619, %v3694
      %v3696 = vmul.f32 %v3676, %v3695
      %v3697 = vmul.f32 %v3677, %v3695
      %v3698 = vmul.f32 %v3678, %v3695
      %v3699 = vmul.f32 %v3679, %v3695
      %v3700 = vmul.f32 %v3680, %v3695
      %v3701 = vmul.f32 %v3681, %v3695
      %v3702 = vmul.f32 %v3682, %v3695
      %v3703 = vmul.f32 %v3683, %v3695
      %v3704 = vmul.f32 %v3684, %v3695
      %v3705 = vmul.f32 %v3685, %v3695
      %v3706 = vmul.f32 %v3686, %v3695
      %v3707 = vmul.f32 %v3687, %v3695
      %v3708 = vmul.f32 %v3688, %v3695
      %v3709 = vmul.f32 %v3689, %v3695
      %v3710 = vmul.f32 %v3690, %v3695
      %v3711 = vmul.f32 %v3691, %v3695
      %v3712 = vadd.f32 %v3660, %v3696
      %v3713 = vadd.f32 %v3661, %v3697
      %v3714 = vadd.f32 %v3662, %v3698
      %v3715 = vadd.f32 %v3663, %v3699
      %v3716 = vadd.f32 %v3664, %v3700
      %v3717 = vadd.f32 %v3665, %v3701
      %v3718 = vadd.f32 %v3666, %v3702
      %v3719 = vadd.f32 %v3667, %v3703
      %v3720 = vadd.f32 %v3668, %v3704
      %v3721 = vadd.f32 %v3669, %v3705
      %v3722 = vadd.f32 %v3670, %v3706
      %v3723 = vadd.f32 %v3671, %v3707
      %v3724 = vadd.f32 %v3672, %v3708
      %v3725 = vadd.f32 %v3673, %v3709
      %v3726 = vadd.f32 %v3674, %v3710
      %v3727 = vadd.f32 %v3675, %v3711
      %v3728 = vld [vmem:[#allocation2 + $0x2] sm:$0xff]
      %v3729 = vld [vmem:[#allocation2 + $0xa] sm:$0xff]
      %v3730 = vld [vmem:[#allocation2 + $0x1a] sm:$0xff]
      %v3731 = vld [vmem:[#allocation2 + $0x22] sm:$0xff]
      %v3732 = vld [vmem:[#allocation2 + $0x32] sm:$0xff]
      %v3733 = vld [vmem:[#allocation2 + $0x3a] sm:$0xff]
      %v3734 = vld [vmem:[#allocation2 + $0x4a] sm:$0xff]
      %v3735 = vld [vmem:[#allocation2 + $0x52] sm:$0xff]
      %v3736 = vld [vmem:[#allocation2 + $0x62] sm:$0xff]
      %v3737 = vld [vmem:[#allocation2 + $0x6a] sm:$0xff]
      %v3738 = vld [vmem:[#allocation2 + $0x7a] sm:$0xff]
      %v3739 = vld [vmem:[#allocation2 + $0x82] sm:$0xff]
      %v3740 = vld [vmem:[#allocation2 + $0x92] sm:$0xff]
      %v3741 = vld [vmem:[#allocation2 + $0x9a] sm:$0xff]
      %v3742 = vld [vmem:[#allocation2 + $0xaa] sm:$0xff]
      %v3743 = vld [vmem:[#allocation2 + $0xb2] sm:$0xff]
      %v3744 = vlaneseq
      %v3745 = vshrl.u32 %v3744, 7
      %v3746 = vsub.s32 2, %v3745
      %v3747 = vrot.slane %v3619, %v3746
      %v3748 = vmul.f32 %v3728, %v3747
      %v3749 = vmul.f32 %v3729, %v3747
      %v3750 = vmul.f32 %v3730, %v3747
      %v3751 = vmul.f32 %v3731, %v3747
      %v3752 = vmul.f32 %v3732, %v3747
      %v3753 = vmul.f32 %v3733, %v3747
      %v3754 = vmul.f32 %v3734, %v3747
      %v3755 = vmul.f32 %v3735, %v3747
      %v3756 = vmul.f32 %v3736, %v3747
      %v3757 = vmul.f32 %v3737, %v3747
      %v3758 = vmul.f32 %v3738, %v3747
      %v3759 = vmul.f32 %v3739, %v3747
      %v3760 = vmul.f32 %v3740, %v3747
      %v3761 = vmul.f32 %v3741, %v3747
      %v3762 = vmul.f32 %v3742, %v3747
      %v3763 = vmul.f32 %v3743, %v3747
      %v3764 = vadd.f32 %v3712, %v3748
      %v3765 = vadd.f32 %v3713, %v3749
      %v3766 = vadd.f32 %v3714, %v3750
      %v3767 = vadd.f32 %v3715, %v3751
      %v3768 = vadd.f32 %v3716, %v3752
      %v3769 = vadd.f32 %v3717, %v3753
      %v3770 = vadd.f32 %v3718, %v3754
      %v3771 = vadd.f32 %v3719, %v3755
      %v3772 = vadd.f32 %v3720, %v3756
      %v3773 = vadd.f32 %v3721, %v3757
      %v3774 = vadd.f32 %v3722, %v3758
      %v3775 = vadd.f32 %v3723, %v3759
      %v3776 = vadd.f32 %v3724, %v3760
      %v3777 = vadd.f32 %v3725, %v3761
      %v3778 = vadd.f32 %v3726, %v3762
      %v3779 = vadd.f32 %v3727, %v3763
      %s3780 = scalar_lea.vmem [#allocation2], 24
      %v3781 = vld [vmem:[%s3780] sm:$0xff]
      %v3782 = vld [vmem:[%s3780 + $0x8] sm:$0xff]
      %v3783 = vld [vmem:[%s3780 + $0x18] sm:$0xff]
      %v3784 = vld [vmem:[%s3780 + $0x20] sm:$0xff]
      %v3785 = vld [vmem:[%s3780 + $0x30] sm:$0xff]
      %v3786 = vld [vmem:[%s3780 + $0x38] sm:$0xff]
      %v3787 = vld [vmem:[%s3780 + $0x48] sm:$0xff]
      %v3788 = vld [vmem:[%s3780 + $0x50] sm:$0xff]
      %v3789 = vld [vmem:[%s3780 + $0x60] sm:$0xff]
      %v3790 = vld [vmem:[%s3780 + $0x68] sm:$0xff]
      %v3791 = vld [vmem:[%s3780 + $0x78] sm:$0xff]
      %v3792 = vld [vmem:[%s3780 + $0x80] sm:$0xff]
      %v3793 = vld [vmem:[%s3780 + $0x90] sm:$0xff]
      %v3794 = vld [vmem:[%s3780 + $0x98] sm:$0xff]
      %v3795 = vld [vmem:[%s3780 + $0xa8] sm:$0xff]
      %v3796 = vld [vmem:[%s3780 + $0xb0] sm:$0xff]
      %v3797 = vlaneseq
      %v3798 = vshrl.u32 %v3797, 7
      %v3799 = vsub.s32 0, %v3798
      %v3800 = vrot.slane %v3620, %v3799
      %v3801 = vmul.f32 %v3781, %v3800
      %v3802 = vmul.f32 %v3782, %v3800
      %v3803 = vmul.f32 %v3783, %v3800
      %v3804 = vmul.f32 %v3784, %v3800
      %v3805 = vmul.f32 %v3785, %v3800
      %v3806 = vmul.f32 %v3786, %v3800
      %v3807 = vmul.f32 %v3787, %v3800
      %v3808 = vmul.f32 %v3788, %v3800
      %v3809 = vmul.f32 %v3789, %v3800
      %v3810 = vmul.f32 %v3790, %v3800
      %v3811 = vmul.f32 %v3791, %v3800
      %v3812 = vmul.f32 %v3792, %v3800
      %v3813 = vmul.f32 %v3793, %v3800
      %v3814 = vmul.f32 %v3794, %v3800
      %v3815 = vmul.f32 %v3795, %v3800
      %v3816 = vmul.f32 %v3796, %v3800
      %v3817 = vadd.f32 %v3764, %v3801
      %v3818 = vadd.f32 %v3765, %v3802
      %v3819 = vadd.f32 %v3766, %v3803
      %v3820 = vadd.f32 %v3767, %v3804
      %v3821 = vadd.f32 %v3768, %v3805
      %v3822 = vadd.f32 %v3769, %v3806
      %v3823 = vadd.f32 %v3770, %v3807
      %v3824 = vadd.f32 %v3771, %v3808
      %v3825 = vadd.f32 %v3772, %v3809
      %v3826 = vadd.f32 %v3773, %v3810
      %v3827 = vadd.f32 %v3774, %v3811
      %v3828 = vadd.f32 %v3775, %v3812
      %v3829 = vadd.f32 %v3776, %v3813
      %v3830 = vadd.f32 %v3777, %v3814
      %v3831 = vadd.f32 %v3778, %v3815
      %v3832 = vadd.f32 %v3779, %v3816
      %v3833 = vld [vmem:[%s3780 + $0x1] sm:$0xff]
      %v3834 = vld [vmem:[%s3780 + $0x9] sm:$0xff]
      %v3835 = vld [vmem:[%s3780 + $0x19] sm:$0xff]
      %v3836 = vld [vmem:[%s3780 + $0x21] sm:$0xff]
      %v3837 = vld [vmem:[%s3780 + $0x31] sm:$0xff]
      %v3838 = vld [vmem:[%s3780 + $0x39] sm:$0xff]
      %v3839 = vld [vmem:[%s3780 + $0x49] sm:$0xff]
      %v3840 = vld [vmem:[%s3780 + $0x51] sm:$0xff]
      %v3841 = vld [vmem:[%s3780 + $0x61] sm:$0xff]
      %v3842 = vld [vmem:[%s3780 + $0x69] sm:$0xff]
      %v3843 = vld [vmem:[%s3780 + $0x79] sm:$0xff]
      %v3844 = vld [vmem:[%s3780 + $0x81] sm:$0xff]
      %v3845 = vld [vmem:[%s3780 + $0x91] sm:$0xff]
      %v3846 = vld [vmem:[%s3780 + $0x99] sm:$0xff]
      %v3847 = vld [vmem:[%s3780 + $0xa9] sm:$0xff]
      %v3848 = vld [vmem:[%s3780 + $0xb1] sm:$0xff]
      %v3849 = vlaneseq
      %v3850 = vshrl.u32 %v3849, 7
      %v3851 = vsub.s32 1, %v3850
      %v3852 = vrot.slane %v3620, %v3851
      %v3853 = vmul.f32 %v3833, %v3852
      %v3854 = vmul.f32 %v3834, %v3852
      %v3855 = vmul.f32 %v3835, %v3852
      %v3856 = vmul.f32 %v3836, %v3852
      %v3857 = vmul.f32 %v3837, %v3852
      %v3858 = vmul.f32 %v3838, %v3852
      %v3859 = vmul.f32 %v3839, %v3852
      %v3860 = vmul.f32 %v3840, %v3852
      %v3861 = vmul.f32 %v3841, %v3852
      %v3862 = vmul.f32 %v3842, %v3852
      %v3863 = vmul.f32 %v3843, %v3852
      %v3864 = vmul.f32 %v3844, %v3852
      %v3865 = vmul.f32 %v3845, %v3852
      %v3866 = vmul.f32 %v3846, %v3852
      %v3867 = vmul.f32 %v3847, %v3852
      %v3868 = vmul.f32 %v3848, %v3852
      %v3869 = vadd.f32 %v3817, %v3853
      %v3870 = vadd.f32 %v3818, %v3854
      %v3871 = vadd.f32 %v3819, %v3855
      %v3872 = vadd.f32 %v3820, %v3856
      %v3873 = vadd.f32 %v3821, %v3857
      %v3874 = vadd.f32 %v3822, %v3858
      %v3875 = vadd.f32 %v3823, %v3859
      %v3876 = vadd.f32 %v3824, %v3860
      %v3877 = vadd.f32 %v3825, %v3861
      %v3878 = vadd.f32 %v3826, %v3862
      %v3879 = vadd.f32 %v3827, %v3863
      %v3880 = vadd.f32 %v3828, %v3864
      %v3881 = vadd.f32 %v3829, %v3865
      %v3882 = vadd.f32 %v3830, %v3866
      %v3883 = vadd.f32 %v3831, %v3867
      %v3884 = vadd.f32 %v3832, %v3868
      %v3885 = vld [vmem:[%s3780 + $0x2] sm:$0xff]
      %v3886 = vld [vmem:[%s3780 + $0xa] sm:$0xff]
      %v3887 = vld [vmem:[%s3780 + $0x1a] sm:$0xff]
      %v3888 = vld [vmem:[%s3780 + $0x22] sm:$0xff]
      %v3889 = vld [vmem:[%s3780 + $0x32] sm:$0xff]
      %v3890 = vld [vmem:[%s3780 + $0x3a] sm:$0xff]
      %v3891 = vld [vmem:[%s3780 + $0x4a] sm:$0xff]
      %v3892 = vld [vmem:[%s3780 + $0x52] sm:$0xff]
      %v3893 = vld [vmem:[%s3780 + $0x62] sm:$0xff]
      %v3894 = vld [vmem:[%s3780 + $0x6a] sm:$0xff]
      %v3895 = vld [vmem:[%s3780 + $0x7a] sm:$0xff]
      %v3896 = vld [vmem:[%s3780 + $0x82] sm:$0xff]
      %v3897 = vld [vmem:[%s3780 + $0x92] sm:$0xff]
      %v3898 = vld [vmem:[%s3780 + $0x9a] sm:$0xff]
      %v3899 = vld [vmem:[%s3780 + $0xaa] sm:$0xff]
      %v3900 = vld [vmem:[%s3780 + $0xb2] sm:$0xff]
      %v3901 = vlaneseq
      %v3902 = vshrl.u32 %v3901, 7
      %v3903 = vsub.s32 2, %v3902
      %v3904 = vrot.slane %v3620, %v3903
      %v3905 = vmul.f32 %v3885, %v3904
      %v3906 = vmul.f32 %v3886, %v3904
      %v3907 = vmul.f32 %v3887, %v3904
      %v3908 = vmul.f32 %v3888, %v3904
      %v3909 = vmul.f32 %v3889, %v3904
      %v3910 = vmul.f32 %v3890, %v3904
      %v3911 = vmul.f32 %v3891, %v3904
      %v3912 = vmul.f32 %v3892, %v3904
      %v3913 = vmul.f32 %v3893, %v3904
      %v3914 = vmul.f32 %v3894, %v3904
      %v3915 = vmul.f32 %v3895, %v3904
      %v3916 = vmul.f32 %v3896, %v3904
      %v3917 = vmul.f32 %v3897, %v3904
      %v3918 = vmul.f32 %v3898, %v3904
      %v3919 = vmul.f32 %v3899, %v3904
      %v3920 = vmul.f32 %v3900, %v3904
      %v3921 = vadd.f32 %v3869, %v3905
      %v3922 = vadd.f32 %v3870, %v3906
      %v3923 = vadd.f32 %v3871, %v3907
      %v3924 = vadd.f32 %v3872, %v3908
      %v3925 = vadd.f32 %v3873, %v3909
      %v3926 = vadd.f32 %v3874, %v3910
      %v3927 = vadd.f32 %v3875, %v3911
      %v3928 = vadd.f32 %v3876, %v3912
      %v3929 = vadd.f32 %v3877, %v3913
      %v3930 = vadd.f32 %v3878, %v3914
      %v3931 = vadd.f32 %v3879, %v3915
      %v3932 = vadd.f32 %v3880, %v3916
      %v3933 = vadd.f32 %v3881, %v3917
      %v3934 = vadd.f32 %v3882, %v3918
      %v3935 = vadd.f32 %v3883, %v3919
      %v3936 = vadd.f32 %v3884, %v3920
      %s3937 = scalar_lea.vmem [#allocation2], 48
      %v3938 = vld [vmem:[%s3937] sm:$0xff]
      %v3939 = vld [vmem:[%s3937 + $0x8] sm:$0xff]
      %v3940 = vld [vmem:[%s3937 + $0x18] sm:$0xff]
      %v3941 = vld [vmem:[%s3937 + $0x20] sm:$0xff]
      %v3942 = vld [vmem:[%s3937 + $0x30] sm:$0xff]
      %v3943 = vld [vmem:[%s3937 + $0x38] sm:$0xff]
      %v3944 = vld [vmem:[%s3937 + $0x48] sm:$0xff]
      %v3945 = vld [vmem:[%s3937 + $0x50] sm:$0xff]
      %v3946 = vld [vmem:[%s3937 + $0x60] sm:$0xff]
      %v3947 = vld [vmem:[%s3937 + $0x68] sm:$0xff]
      %v3948 = vld [vmem:[%s3937 + $0x78] sm:$0xff]
      %v3949 = vld [vmem:[%s3937 + $0x80] sm:$0xff]
      %v3950 = vld [vmem:[%s3937 + $0x90] sm:$0xff]
      %v3951 = vld [vmem:[%s3937 + $0x98] sm:$0xff]
      %v3952 = vld [vmem:[%s3937 + $0xa8] sm:$0xff]
      %v3953 = vld [vmem:[%s3937 + $0xb0] sm:$0xff]
      %v3954 = vlaneseq
      %v3955 = vshrl.u32 %v3954, 7
      %v3956 = vsub.s32 0, %v3955
      %v3957 = vrot.slane %v3621, %v3956
      %v3958 = vmul.f32 %v3938, %v3957
      %v3959 = vmul.f32 %v3939, %v3957
      %v3960 = vmul.f32 %v3940, %v3957
      %v3961 = vmul.f32 %v3941, %v3957
      %v3962 = vmul.f32 %v3942, %v3957
      %v3963 = vmul.f32 %v3943, %v3957
      %v3964 = vmul.f32 %v3944, %v3957
      %v3965 = vmul.f32 %v3945, %v3957
      %v3966 = vmul.f32 %v3946, %v3957
      %v3967 = vmul.f32 %v3947, %v3957
      %v3968 = vmul.f32 %v3948, %v3957
      %v3969 = vmul.f32 %v3949, %v3957
      %v3970 = vmul.f32 %v3950, %v3957
      %v3971 = vmul.f32 %v3951, %v3957
      %v3972 = vmul.f32 %v3952, %v3957
      %v3973 = vmul.f32 %v3953, %v3957
      %v3974 = vadd.f32 %v3921, %v3958
      %v3975 = vadd.f32 %v3922, %v3959
      %v3976 = vadd.f32 %v3923, %v3960
      %v3977 = vadd.f32 %v3924, %v3961
      %v3978 = vadd.f32 %v3925, %v3962
      %v3979 = vadd.f32 %v3926, %v3963
      %v3980 = vadd.f32 %v3927, %v3964
      %v3981 = vadd.f32 %v3928, %v3965
      %v3982 = vadd.f32 %v3929, %v3966
      %v3983 = vadd.f32 %v3930, %v3967
      %v3984 = vadd.f32 %v3931, %v3968
      %v3985 = vadd.f32 %v3932, %v3969
      %v3986 = vadd.f32 %v3933, %v3970
      %v3987 = vadd.f32 %v3934, %v3971
      %v3988 = vadd.f32 %v3935, %v3972
      %v3989 = vadd.f32 %v3936, %v3973
      %v3990 = vld [vmem:[%s3937 + $0x1] sm:$0xff]
      %v3991 = vld [vmem:[%s3937 + $0x9] sm:$0xff]
      %v3992 = vld [vmem:[%s3937 + $0x19] sm:$0xff]
      %v3993 = vld [vmem:[%s3937 + $0x21] sm:$0xff]
      %v3994 = vld [vmem:[%s3937 + $0x31] sm:$0xff]
      %v3995 = vld [vmem:[%s3937 + $0x39] sm:$0xff]
      %v3996 = vld [vmem:[%s3937 + $0x49] sm:$0xff]
      %v3997 = vld [vmem:[%s3937 + $0x51] sm:$0xff]
      %v3998 = vld [vmem:[%s3937 + $0x61] sm:$0xff]
      %v3999 = vld [vmem:[%s3937 + $0x69] sm:$0xff]
      %v4000 = vld [vmem:[%s3937 + $0x79] sm:$0xff]
      %v4001 = vld [vmem:[%s3937 + $0x81] sm:$0xff]
      %v4002 = vld [vmem:[%s3937 + $0x91] sm:$0xff]
      %v4003 = vld [vmem:[%s3937 + $0x99] sm:$0xff]
      %v4004 = vld [vmem:[%s3937 + $0xa9] sm:$0xff]
      %v4005 = vld [vmem:[%s3937 + $0xb1] sm:$0xff]
      %v4006 = vlaneseq
      %v4007 = vshrl.u32 %v4006, 7
      %v4008 = vsub.s32 1, %v4007
      %v4009 = vrot.slane %v3621, %v4008
      %v4010 = vmul.f32 %v3990, %v4009
      %v4011 = vmul.f32 %v3991, %v4009
      %v4012 = vmul.f32 %v3992, %v4009
      %v4013 = vmul.f32 %v3993, %v4009
      %v4014 = vmul.f32 %v3994, %v4009
      %v4015 = vmul.f32 %v3995, %v4009
      %v4016 = vmul.f32 %v3996, %v4009
      %v4017 = vmul.f32 %v3997, %v4009
      %v4018 = vmul.f32 %v3998, %v4009
      %v4019 = vmul.f32 %v3999, %v4009
      %v4020 = vmul.f32 %v4000, %v4009
      %v4021 = vmul.f32 %v4001, %v4009
      %v4022 = vmul.f32 %v4002, %v4009
      %v4023 = vmul.f32 %v4003, %v4009
      %v4024 = vmul.f32 %v4004, %v4009
      %v4025 = vmul.f32 %v4005, %v4009
      %v4026 = vadd.f32 %v3974, %v4010
      %v4027 = vadd.f32 %v3975, %v4011
      %v4028 = vadd.f32 %v3976, %v4012
      %v4029 = vadd.f32 %v3977, %v4013
      %v4030 = vadd.f32 %v3978, %v4014
      %v4031 = vadd.f32 %v3979, %v4015
      %v4032 = vadd.f32 %v3980, %v4016
      %v4033 = vadd.f32 %v3981, %v4017
      %v4034 = vadd.f32 %v3982, %v4018
      %v4035 = vadd.f32 %v3983, %v4019
      %v4036 = vadd.f32 %v3984, %v4020
      %v4037 = vadd.f32 %v3985, %v4021
      %v4038 = vadd.f32 %v3986, %v4022
      %v4039 = vadd.f32 %v3987, %v4023
      %v4040 = vadd.f32 %v3988, %v4024
      %v4041 = vadd.f32 %v3989, %v4025
      %v4042 = vld [vmem:[%s3937 + $0x2] sm:$0xff]
      %v4043 = vld [vmem:[%s3937 + $0xa] sm:$0xff]
      %v4044 = vld [vmem:[%s3937 + $0x1a] sm:$0xff]
      %v4045 = vld [vmem:[%s3937 + $0x22] sm:$0xff]
      %v4046 = vld [vmem:[%s3937 + $0x32] sm:$0xff]
      %v4047 = vld [vmem:[%s3937 + $0x3a] sm:$0xff]
      %v4048 = vld [vmem:[%s3937 + $0x4a] sm:$0xff]
      %v4049 = vld [vmem:[%s3937 + $0x52] sm:$0xff]
      %v4050 = vld [vmem:[%s3937 + $0x62] sm:$0xff]
      %v4051 = vld [vmem:[%s3937 + $0x6a] sm:$0xff]
      %v4052 = vld [vmem:[%s3937 + $0x7a] sm:$0xff]
      %v4053 = vld [vmem:[%s3937 + $0x82] sm:$0xff]
      %v4054 = vld [vmem:[%s3937 + $0x92] sm:$0xff]
      %v4055 = vld [vmem:[%s3937 + $0x9a] sm:$0xff]
      %v4056 = vld [vmem:[%s3937 + $0xaa] sm:$0xff]
      %v4057 = vld [vmem:[%s3937 + $0xb2] sm:$0xff]
      %v4058 = vlaneseq
      %v4059 = vshrl.u32 %v4058, 7
      %v4060 = vsub.s32 2, %v4059
      %v4061 = vrot.slane %v3621, %v4060
      %v4062 = vmul.f32 %v4042, %v4061
      %v4063 = vmul.f32 %v4043, %v4061
      %v4064 = vmul.f32 %v4044, %v4061
      %v4065 = vmul.f32 %v4045, %v4061
      %v4066 = vmul.f32 %v4046, %v4061
      %v4067 = vmul.f32 %v4047, %v4061
      %v4068 = vmul.f32 %v4048, %v4061
      %v4069 = vmul.f32 %v4049, %v4061
      %v4070 = vmul.f32 %v4050, %v4061
      %v4071 = vmul.f32 %v4051, %v4061
      %v4072 = vmul.f32 %v4052, %v4061
      %v4073 = vmul.f32 %v4053, %v4061
      %v4074 = vmul.f32 %v4054, %v4061
      %v4075 = vmul.f32 %v4055, %v4061
      %v4076 = vmul.f32 %v4056, %v4061
      %v4077 = vmul.f32 %v4057, %v4061
      %v4078 = vadd.f32 %v4026, %v4062
      %v4079 = vadd.f32 %v4027, %v4063
      %v4080 = vadd.f32 %v4028, %v4064
      %v4081 = vadd.f32 %v4029, %v4065
      %v4082 = vadd.f32 %v4030, %v4066
      %v4083 = vadd.f32 %v4031, %v4067
      %v4084 = vadd.f32 %v4032, %v4068
      %v4085 = vadd.f32 %v4033, %v4069
      %v4086 = vadd.f32 %v4034, %v4070
      %v4087 = vadd.f32 %v4035, %v4071
      %v4088 = vadd.f32 %v4036, %v4072
      %v4089 = vadd.f32 %v4037, %v4073
      %v4090 = vadd.f32 %v4038, %v4074
      %v4091 = vadd.f32 %v4039, %v4075
      %v4092 = vadd.f32 %v4040, %v4076
      %v4093 = vadd.f32 %v4041, %v4077
      %v4095 = vlaneseq
      %v4096 = vshrl.u32 %v4095, 7
      %v4097 = vsub.s32 0, %v4096
      %v4098 = vrot.slane %v3622, %v4097
      %v4100 = vmul.f32 %v4078, %v4098
      %v4101 = vmul.f32 %v4079, %v4098
      %v4102 = vmul.f32 %v4080, %v4098
      %v4103 = vmul.f32 %v4081, %v4098
      %v4104 = vmul.f32 %v4082, %v4098
      %v4105 = vmul.f32 %v4083, %v4098
      %v4106 = vmul.f32 %v4084, %v4098
      %v4107 = vmul.f32 %v4085, %v4098
      %v4108 = vmul.f32 %v4086, %v4098
      %v4109 = vmul.f32 %v4087, %v4098
      %v4110 = vmul.f32 %v4088, %v4098
      %v4111 = vmul.f32 %v4089, %v4098
      %v4112 = vmul.f32 %v4090, %v4098
      %v4113 = vmul.f32 %v4091, %v4098
      %v4114 = vmul.f32 %v4092, %v4098
      %v4115 = vmul.f32 %v4093, %v4098
      %v4117 = vlaneseq
      %v4118 = vshrl.u32 %v4117, 7
      %v4119 = vsub.s32 0, %v4118
      %v4120 = vrot.slane %v3623, %v4119
      %v4122 = vadd.f32 %v4100, %v4120
      %v4123 = vadd.f32 %v4101, %v4120
      %v4124 = vadd.f32 %v4102, %v4120
      %v4125 = vadd.f32 %v4103, %v4120
      %v4126 = vadd.f32 %v4104, %v4120
      %v4127 = vadd.f32 %v4105, %v4120
      %v4128 = vadd.f32 %v4106, %v4120
      %v4129 = vadd.f32 %v4107, %v4120
      %v4130 = vadd.f32 %v4108, %v4120
      %v4131 = vadd.f32 %v4109, %v4120
      %v4132 = vadd.f32 %v4110, %v4120
      %v4133 = vadd.f32 %v4111, %v4120
      %v4134 = vadd.f32 %v4112, %v4120
      %v4135 = vadd.f32 %v4113, %v4120
      %v4136 = vadd.f32 %v4114, %v4120
      %v4137 = vadd.f32 %v4115, %v4120
      %v4138 = vmax.f32 %v4122, 0.0
      %v4139 = vmax.f32 %v4123, 0.0
      %v4140 = vmax.f32 %v4124, 0.0
      %v4141 = vmax.f32 %v4125, 0.0
      %v4142 = vmax.f32 %v4126, 0.0
      %v4143 = vmax.f32 %v4127, 0.0
      %v4144 = vmax.f32 %v4128, 0.0
      %v4145 = vmax.f32 %v4129, 0.0
      %v4146 = vmax.f32 %v4130, 0.0
      %v4147 = vmax.f32 %v4131, 0.0
      %v4148 = vmax.f32 %v4132, 0.0
      %v4149 = vmax.f32 %v4133, 0.0
      %v4150 = vmax.f32 %v4134, 0.0
      %v4151 = vmax.f32 %v4135, 0.0
      %v4152 = vmax.f32 %v4136, 0.0
      %v4153 = vmax.f32 %v4137, 0.0
      %v4154 = vmin.f32 %v4138, 6.0
      %v4155 = vmin.f32 %v4139, 6.0
      %v4156 = vmin.f32 %v4140, 6.0
      %v4157 = vmin.f32 %v4141, 6.0
      %v4158 = vmin.f32 %v4142, 6.0
      %v4159 = vmin.f32 %v4143, 6.0
      %v4160 = vmin.f32 %v4144, 6.0
      %v4161 = vmin.f32 %v4145, 6.0
      %v4162 = vmin.f32 %v4146, 6.0
      %v4163 = vmin.f32 %v4147, 6.0
      %v4164 = vmin.f32 %v4148, 6.0
      %v4165 = vmin.f32 %v4149, 6.0
      %v4166 = vmin.f32 %v4150, 6.0
      %v4167 = vmin.f32 %v4151, 6.0
      %v4168 = vmin.f32 %v4152, 6.0
      %v4169 = vmin.f32 %v4153, 6.0
      %v4170 = vpack.c.bf16 %v4155, %v4154
      %v4171 = vpack.c.bf16 %v4157, %v4156
      %v4172 = vpack.c.bf16 %v4159, %v4158
      %v4173 = vpack.c.bf16 %v4161, %v4160
      %v4174 = vpack.c.bf16 %v4163, %v4162
      %v4175 = vpack.c.bf16 %v4165, %v4164
      %v4176 = vpack.c.bf16 %v4167, %v4166
      %v4177 = vpack.c.bf16 %v4169, %v4168
      %v4178 = vld [vmem:[%s7] sm:$0xf]
      %v4179 = vld [vmem:[%s7 + $0x4] sm:$0xf]
      %v4182 = vunpack.c.l.b16 %v4178
      %v4183 = vunpack.c.l.b16 %v4179
      %v4184 = vpack.c.b16 %v4183, %v4182
      %v4187 = vsel %vm3587, %v4170, 0
      %v4190 = vsel %vm3587, %v4171, 0
      %v4193 = vsel %vm3587, %v4172, 0
      %v4196 = vsel %vm3587, %v4173, 0
      %v4199 = vsel %vm3587, %v4174, 0
      %v4202 = vsel %vm3587, %v4175, 0
      %v4205 = vsel %vm3587, %v4176, 0
      %v4208 = vsel %vm3587, %v4177, 0
      %4210 = vmatprep.subr.bf16.mxu0 0
      %4211 = vmatpush1.bf16.msra.mxu0 %v4184
      %4212 = vmatprep.subr.bf16.mxu0 0
      %4213 = vmatpush1.bf16.msra.mxu0 0
      %4214 = vmatprep.subr.bf16.mxu0 0
      %4215 = vmatpush1.bf16.msra.mxu0 0
      %4216 = vmatprep.subr.bf16.mxu0 0
      %4217 = vmatpush1.bf16.msra.mxu0 0
      %4218 = vmatprep.subr.bf16.mxu0 0
      %4219 = vmatpush1.bf16.msra.mxu0 0
      %4220 = vmatprep.subr.bf16.mxu0 0
      %4221 = vmatpush1.bf16.msra.mxu0 0
      %4222 = vmatprep.subr.bf16.mxu0 0
      %4223 = vmatpush1.bf16.msra.mxu0 0
      %4224 = vmatprep.subr.bf16.mxu0 0
      %4225 = vmatpush1.bf16.msra.mxu0 0
      %4226 = vmatprep.subr.bf16.mxu0 0
      %4227 = vmatpush1.bf16.msra.mxu0 0
      %4228 = vmatprep.subr.bf16.mxu0 0
      %4229 = vmatpush1.bf16.msra.mxu0 0
      %4230 = vmatprep.subr.bf16.mxu0 0
      %4231 = vmatpush1.bf16.msra.mxu0 0
      %4232 = vmatprep.subr.bf16.mxu0 0
      %4233 = vmatpush1.bf16.msra.mxu0 0
      %4234 = vmatprep.subr.bf16.mxu0 0
      %4235 = vmatpush1.bf16.msra.mxu0 0
      %4236 = vmatprep.subr.bf16.mxu0 0
      %4237 = vmatpush1.bf16.msra.mxu0 0
      %4238 = vmatprep.subr.bf16.mxu0 0
      %4239 = vmatpush1.bf16.msra.mxu0 0
      %4240 = vmatprep.subr.bf16.mxu0 0
      %4241 = vmatpush1.bf16.msra.mxu0 0
      %4242 = vmatprep.mubr.bf16.mxu0 0
      %4243 = vmatmul.mubr.bf16.gmra.mrb[0].mxu0 %v4187
      %v4244 = vpop.f32.mrb[0].mxu0
      %v4245 = vadd.f32 0.0, %v4244
      %v4246 = vpop.f32.mrb[0].mxu0
      %v4247 = vpop.f32.mrb[0].mxu0
      %v4248 = vadd.f32 0.0, %v4247
      %v4249 = vpop.f32.mrb[0].mxu0
      %4250 = vmatprep.mubr.bf16.mxu0 0
      %4251 = vmatmul.mubr.bf16.gmra.mrb[0].mxu0 %v4190
      %v4252 = vpop.f32.mrb[0].mxu0
      %v4253 = vadd.f32 0.0, %v4252
      %v4254 = vpop.f32.mrb[0].mxu0
      %v4255 = vpop.f32.mrb[0].mxu0
      %v4256 = vadd.f32 0.0, %v4255
      %v4257 = vpop.f32.mrb[0].mxu0
      %4258 = vmatprep.mubr.bf16.mxu0 0
      %4259 = vmatmul.mubr.bf16.gmra.mrb[0].mxu0 %v4193
      %v4260 = vpop.f32.mrb[0].mxu0
      %v4261 = vadd.f32 0.0, %v4260
      %v4262 = vpop.f32.mrb[0].mxu0
      %v4263 = vpop.f32.mrb[0].mxu0
      %v4264 = vadd.f32 0.0, %v4263
      %v4265 = vpop.f32.mrb[0].mxu0
      %4266 = vmatprep.mubr.bf16.mxu0 0
      %4267 = vmatmul.mubr.bf16.gmra.mrb[0].mxu0 %v4196
      %v4268 = vpop.f32.mrb[0].mxu0
      %v4269 = vadd.f32 0.0, %v4268
      %v4270 = vpop.f32.mrb[0].mxu0
      %v4271 = vpop.f32.mrb[0].mxu0
      %v4272 = vadd.f32 0.0, %v4271
      %v4273 = vpop.f32.mrb[0].mxu0
      %4274 = vmatprep.mubr.bf16.mxu0 0
      %4275 = vmatmul.mubr.bf16.gmra.mrb[0].mxu0 %v4199
      %v4276 = vpop.f32.mrb[0].mxu0
      %v4277 = vadd.f32 0.0, %v4276
      %v4278 = vpop.f32.mrb[0].mxu0
      %v4279 = vpop.f32.mrb[0].mxu0
      %v4280 = vadd.f32 0.0, %v4279
      %v4281 = vpop.f32.mrb[0].mxu0
      %4282 = vmatprep.mubr.bf16.mxu0 0
      %4283 = vmatmul.mubr.bf16.gmra.mrb[0].mxu0 %v4202
      %v4284 = vpop.f32.mrb[0].mxu0
      %v4285 = vadd.f32 0.0, %v4284
      %v4286 = vpop.f32.mrb[0].mxu0
      %v4287 = vpop.f32.mrb[0].mxu0
      %v4288 = vadd.f32 0.0, %v4287
      %v4289 = vpop.f32.mrb[0].mxu0
      %4290 = vmatprep.mubr.bf16.mxu0 0
      %4291 = vmatmul.mubr.bf16.gmra.mrb[0].mxu0 %v4205
      %v4292 = vpop.f32.mrb[0].mxu0
      %v4293 = vadd.f32 0.0, %v4292
      %v4294 = vpop.f32.mrb[0].mxu0
      %v4295 = vpop.f32.mrb[0].mxu0
      %v4296 = vadd.f32 0.0, %v4295
      %v4297 = vpop.f32.mrb[0].mxu0
      %4298 = vmatprep.mubr.bf16.mxu0 0
      %4299 = vmatmul.mubr.bf16.gmra.mrb[0].mxu0 %v4208
      %v4300 = vpop.f32.mrb[0].mxu0
      %v4301 = vadd.f32 0.0, %v4300
      %v4302 = vpop.f32.mrb[0].mxu0
      %v4303 = vpop.f32.mrb[0].mxu0
      %v4304 = vadd.f32 0.0, %v4303
      %v4305 = vpop.f32.mrb[0].mxu0
      %4306 = vdwg.mxu0
      %v4307 = vld [vmem:[%s8] sm:$0x1]
      %v4309 = vlaneseq
      %v4310 = vshrl.u32 %v4309, 7
      %v4311 = vsub.s32 0, %v4310
      %v4312 = vrot.slane %v4307, %v4311
      %v4314 = vmul.f32 %v4245, %v4312
      %v4315 = vmul.f32 %v4248, %v4312
      %v4316 = vmul.f32 %v4253, %v4312
      %v4317 = vmul.f32 %v4256, %v4312
      %v4318 = vmul.f32 %v4261, %v4312
      %v4319 = vmul.f32 %v4264, %v4312
      %v4320 = vmul.f32 %v4269, %v4312
      %v4321 = vmul.f32 %v4272, %v4312
      %v4322 = vmul.f32 %v4277, %v4312
      %v4323 = vmul.f32 %v4280, %v4312
      %v4324 = vmul.f32 %v4285, %v4312
      %v4325 = vmul.f32 %v4288, %v4312
      %v4326 = vmul.f32 %v4293, %v4312
      %v4327 = vmul.f32 %v4296, %v4312
      %v4328 = vmul.f32 %v4301, %v4312
      %v4329 = vmul.f32 %v4304, %v4312
      %v4330 = vld [vmem:[%s9] sm:$0x1]
      %v4332 = vlaneseq
      %v4333 = vshrl.u32 %v4332, 7
      %v4334 = vsub.s32 0, %v4333
      %v4335 = vrot.slane %v4330, %v4334
      %v4337 = vadd.f32 %v4314, %v4335
      %v4338 = vadd.f32 %v4315, %v4335
      %v4339 = vadd.f32 %v4316, %v4335
      %v4340 = vadd.f32 %v4317, %v4335
      %v4341 = vadd.f32 %v4318, %v4335
      %v4342 = vadd.f32 %v4319, %v4335
      %v4343 = vadd.f32 %v4320, %v4335
      %v4344 = vadd.f32 %v4321, %v4335
      %v4345 = vadd.f32 %v4322, %v4335
      %v4346 = vadd.f32 %v4323, %v4335
      %v4347 = vadd.f32 %v4324, %v4335
      %v4348 = vadd.f32 %v4325, %v4335
      %v4349 = vadd.f32 %v4326, %v4335
      %v4350 = vadd.f32 %v4327, %v4335
      %v4351 = vadd.f32 %v4328, %v4335
      %v4352 = vadd.f32 %v4329, %v4335
      %s4353 = sadd.s32 %s386, 1
      %s4354 = smul.u32 %s4353, 24
      %s4355 = scalar_lea.vmem %s373, %s4354
      %v4356 = vld [vmem:[%s4355 + $0x1] sm:$0xff]
      %v4357 = vld [vmem:[%s4355 + $0x9] sm:$0xff]
      %v4358 = vld [vmem:[%s4355 + $0x19] sm:$0xff]
      %v4359 = vld [vmem:[%s4355 + $0x21] sm:$0xff]
      %v4360 = vld [vmem:[%s4355 + $0x31] sm:$0xff]
      %v4361 = vld [vmem:[%s4355 + $0x39] sm:$0xff]
      %v4362 = vld [vmem:[%s4355 + $0x49] sm:$0xff]
      %v4363 = vld [vmem:[%s4355 + $0x51] sm:$0xff]
      %v4364 = vld [vmem:[%s4355 + $0x61] sm:$0xff]
      %v4365 = vld [vmem:[%s4355 + $0x69] sm:$0xff]
      %v4366 = vld [vmem:[%s4355 + $0x79] sm:$0xff]
      %v4367 = vld [vmem:[%s4355 + $0x81] sm:$0xff]
      %v4368 = vld [vmem:[%s4355 + $0x91] sm:$0xff]
      %v4369 = vld [vmem:[%s4355 + $0x99] sm:$0xff]
      %v4370 = vld [vmem:[%s4355 + $0xa9] sm:$0xff]
      %v4371 = vld [vmem:[%s4355 + $0xb1] sm:$0xff]
      %v4372 = vadd.f32 %v4337, %v4356
      %v4373 = vadd.f32 %v4338, %v4357
      %v4374 = vadd.f32 %v4339, %v4358
      %v4375 = vadd.f32 %v4340, %v4359
      %v4376 = vadd.f32 %v4341, %v4360
      %v4377 = vadd.f32 %v4342, %v4361
      %v4378 = vadd.f32 %v4343, %v4362
      %v4379 = vadd.f32 %v4344, %v4363
      %v4380 = vadd.f32 %v4345, %v4364
      %v4381 = vadd.f32 %v4346, %v4365
      %v4382 = vadd.f32 %v4347, %v4366
      %v4383 = vadd.f32 %v4348, %v4367
      %v4384 = vadd.f32 %v4349, %v4368
      %v4385 = vadd.f32 %v4350, %v4369
      %v4386 = vadd.f32 %v4351, %v4370
      %v4387 = vadd.f32 %v4352, %v4371
      %4388 = vst.msk [vmem:[%s383] sm:$0xff] %vm1277, %v4372
      %4389 = vst.msk [vmem:[%s383 + $0x8] sm:$0xff] %vm1277, %v4373
      %4390 = vst.msk [vmem:[%s383 + $0x10] sm:$0xff] %vm1277, %v4374
      %4391 = vst.msk [vmem:[%s383 + $0x18] sm:$0xff] %vm1277, %v4375
      %4392 = vst.msk [vmem:[%s383 + $0x20] sm:$0xff] %vm1277, %v4376
      %4393 = vst.msk [vmem:[%s383 + $0x28] sm:$0xff] %vm1277, %v4377
      %4394 = vst.msk [vmem:[%s383 + $0x30] sm:$0xff] %vm1277, %v4378
      %4395 = vst.msk [vmem:[%s383 + $0x38] sm:$0xff] %vm1277, %v4379
      %4396 = vst.msk [vmem:[%s383 + $0x40] sm:$0xff] %vm1277, %v4380
      %4397 = vst.msk [vmem:[%s383 + $0x48] sm:$0xff] %vm1277, %v4381
      %4398 = vst.msk [vmem:[%s383 + $0x50] sm:$0xff] %vm1277, %v4382
      %4399 = vst.msk [vmem:[%s383 + $0x58] sm:$0xff] %vm1277, %v4383
      %4400 = vst.msk [vmem:[%s383 + $0x60] sm:$0xff] %vm1277, %v4384
      %4401 = vst.msk [vmem:[%s383 + $0x68] sm:$0xff] %vm1277, %v4385
      %4402 = vst.msk [vmem:[%s383 + $0x70] sm:$0xff] %vm1277, %v4386
      %4403 = vst.msk [vmem:[%s383 + $0x78] sm:$0xff] %vm1277, %v4387
      %s4404 = smul.u32 8, %s26
      %p4405 = scmp.lt.s32.totalorder %s25, 1
      %s4406 = scalar_select %p4405, %s25, 1
      %p4407 = scmp.lt.s32.totalorder %s4404, 15
      %s4408 = scalar_select %p4407, %s4404, 15
      %s4409 = smul.addr %s4408, 2
      %s4410 = smul.addr %s4406, 32
      %s4411 = sadd.s32 %s4409, %s4410
      %s4412 = smul.addr %s4411, 8
      %s4413 = scalar_lea.vmem %s10, %s4412
      // Predicated region
      $region61: #{inverted_residual.1} parent=59 // pred_check
        %p4414 = pneg %p268
      $region62: #{inverted_residual.1} parent=59 // pred_check_branch
        %4416 = sbr.rel (%p4414) target = $region64
      $region63: #{inverted_residual.1} parent=59 // pred_region
        %s4417 = smul.u32 8, %s26
      $region64: #{inverted_residual.1} parent=59 // pred_fallthru
        _
    $region60: #{inverted_residual.1} parent=5 // pred_fallthru
      _
    %p4418 = scmp.le.s32.totalorder 2, %s16
    // Predicated region
    $region65: #{inverted_residual.1} parent=5 // pred_check
      %p4419 = pneg %p4418
    $region66: #{inverted_residual.1} parent=5 // pred_check_branch
      %4421 = sbr.rel (%p4419) target = $region68
    $region67: #{inverted_residual.1} parent=5 // pred_region
      %s4422 = ssub.s32 %s16, 2
      // Predicated region
      $region69: #{inverted_residual.1} parent=67 // pred_check
        %p4423 = pneg %p274
      $region70: #{inverted_residual.1} parent=67 // pred_check_branch
        %4425 = sbr.rel (%p4423) target = $region72
      $region71: #{inverted_residual.1} parent=67 // pred_region
        %s4426 = smul.u32 8, %s28
        %p4427 = scmp.lt.s32.totalorder %s27, 1
        %s4428 = scalar_select %p4427, %s27, 1
        %p4429 = scmp.lt.s32.totalorder %s4426, 15
        %s4430 = scalar_select %p4429, %s4426, 15
        %s4431 = smul.addr %s4430, 2
        %s4432 = smul.addr %s4428, 32
        %s4433 = sadd.s32 %s4431, %s4432
        %s4434 = smul.addr %s4433, 8
        %s4435 = scalar_lea.vmem %s10, %s4434
      $region72: #{inverted_residual.1} parent=67 // pred_fallthru
        _
    $region68: #{inverted_residual.1} parent=5 // pred_fallthru
      _
  $region6: #{inverted_residual.1} parent=0 // loop_footer
    %s20 = sadd.s32 1, %s16
  $region7: #{inverted_residual.1} parent=0 // loop_footer_branch
    %15 = sbr.rel target = $region3
  $region8: #{inverted_residual.1} parent=0 // loop_exit
    _

</llo_original>
